<compile_context>
chip_gen: v6e
topology: v6e:2x2x1
jax: 0.10.0
libtpu: 0.0.40
codegen_flags: <defaults>
</compile_context>

<pallas_src>
import jax
import jax.numpy as jnp
from jax import lax
from jax.experimental import pallas as pl
from jax.experimental.pallas import tpu as pltpu

# ---------------- small synthetic config ----------------
B = 2          # batch
S = 8          # word sequence length
SD = 8         # context-doc sequence length
VOCAB = 50
E = 256        # embedding size  (stands for 4608 in the real model)
D = 128        # d_model         (stands for 1536)
H = 4          # n_head
FF = 256       # feedforward_dim
N_DOCS = 10
N_TASKS = 6
T = 16         # tags per task
NT_PAD = 128   # lane-padded width for the fused 6-head output (6*16=96 -> 128)
NEG_INF = -1e9


def _derive_vmem_limit():
    # v5e/v6e: 128 MiB physical VMEM, v7x: 64 MiB -> derive the scoped limit
    # per chip instead of hard-coding it.
    try:
        cap = int(pltpu.get_tpu_info().vmem_capacity_bytes)
        cap = max(cap, 32 * 1024 * 1024)
    except Exception:
        cap = 64 * 1024 * 1024
    return min(cap * 3 // 4, 96 * 1024 * 1024)


VMEM_LIMIT = _derive_vmem_limit()


def _round_up(x, m):
    return -(-x // m) * m


def _choose_row_tile(m, max_tile=256):
    """Row tile and padded row count for an M-tiled 'parallel' grid."""
    if m <= max_tile:
        return m, m
    return max_tile, _round_up(m, max_tile)


# ---------------- Pallas kernel: stacked linear (per-doc / shared weight) ----------------
def _stacked_linear_fullk_kernel(x_ref, w_ref, b_ref, o_ref):
    # Full K per step: one MXU dot, no accumulator scratch, no K grid axis.
    o_ref[0] = (jnp.dot(x_ref[0], w_ref[0], preferred_element_type=jnp.float32)
                + b_ref[0]).astype(o_ref.dtype)


def _stacked_linear_ktiled_kernel(x_ref, w_ref, b_ref, o_ref, acc_ref):
    # grid = (stack, N tiles, K tiles); K (reduction) innermost.
    @pl.when(pl.program_id(2) == 0)
    def _():
        acc_ref[...] = jnp.zeros_like(acc_ref)

    acc_ref[...] += jnp.dot(x_ref[0], w_ref[0], preferred_element_type=jnp.float32)

    @pl.when(pl.program_id(2) == pl.num_programs(2) - 1)
    def _():
        o_ref[0] = (acc_ref[...] + b_ref[0]).astype(o_ref.dtype)


def stacked_linear(x, w, b, *, tn=512, tk=1024, out_dtype=jnp.bfloat16):
    """x: (G, M, K) bf16, w: (G, K, N) bf16, b: (G, 1, N) f32 -> (G, M, N) out_dtype."""
    g, m, k = x.shape
    n = w.shape[-1]
    tn = min(tn, n)
    assert n % tn == 0

    if k <= tk:
        # full-K fast path: the x tile is fetched once per (stack, N-tile) and
        # with tn>=512 (or full N) there is no redundant activation re-read.
        return pl.pallas_call(
            _stacked_linear_fullk_kernel,
            out_shape=jax.ShapeDtypeStruct((g, m, n), out_dtype),
            grid=(g, n // tn),
            in_specs=[pl.BlockSpec((1, m, k), lambda i, j: (i, 0, 0)),
                      pl.BlockSpec((1, k, tn), lambda i, j: (i, 0, j)),
                      pl.BlockSpec((1, 1, tn), lambda i, j: (i, 0, j))],
            out_specs=pl.BlockSpec((1, m, tn), lambda i, j: (i, 0, j)),
            compiler_params=pltpu.CompilerParams(
                dimension_semantics=("parallel", "parallel"),
                vmem_limit_bytes=VMEM_LIMIT),
        )(x, w, b)

    # K-tiled fallback (real sizes, K = 4608): pick the largest divisor of K <= tk.
    if k % tk != 0:
        tk = max(d_ for d_ in range(1, tk + 1) if k % d_ == 0)
    return pl.pallas_call(
        _stacked_linear_ktiled_kernel,
        out_shape=jax.ShapeDtypeStruct((g, m, n), out_dtype),
        grid=(g, n // tn, k // tk),
        in_specs=[pl.BlockSpec((1, m, tk), lambda i, j, l: (i, 0, l)),
                  pl.BlockSpec((1, tk, tn), lambda i, j, l: (i, l, j)),
                  pl.BlockSpec((1, 1, tn), lambda i, j, l: (i, 0, j))],
        out_specs=pl.BlockSpec((1, m, tn), lambda i, j, l: (i, 0, j)),
        scratch_shapes=[pltpu.VMEM((m, tn), jnp.float32)],
        compiler_params=pltpu.CompilerParams(
            dimension_semantics=("parallel", "parallel", "arbitrary"),
            vmem_limit_bytes=VMEM_LIMIT),
    )(x, w, b)


# ---------------- Pallas kernel: per-batch self-attention (scores/softmax/PV) ----------------
def _attention_kernel(qkv_ref, maskb_ref, wo_ref, o_ref):
    # TODO(synk): the real model uses attn_type='adatrans' (relative-position
    # attention); a standard multi-head self-attention is implemented instead.
    # scale=False in the reference -> no 1/sqrt(head_dim) scaling.
    s = qkv_ref.shape[1]
    d = o_ref.shape[2]
    hd = d // H
    qkv = qkv_ref[0]                                   # (S, 3D) bf16
    maskb = maskb_ref[0]                               # (1, S) f32 additive key mask

    attn = jnp.zeros((s, d), jnp.float32)
    for h in range(H):                                 # unrolled at trace time
        qh = qkv[:, h * hd:(h + 1) * hd]
        kh = qkv[:, d + h * hd:d + (h + 1) * hd]
        vh = qkv[:, 2 * d + h * hd:2 * d + (h + 1) * hd]
        sc = lax.dot_general(qh, kh, (((1,), (1,)), ((), ())),
                             preferred_element_type=jnp.float32)      # (S, S)
        sc = sc + maskb
        m = jnp.max(sc, axis=-1, keepdims=True)
        p = jnp.exp(sc - m)
        p = p * pl.reciprocal(jnp.sum(p, axis=-1, keepdims=True), approx=True)
        ao = jnp.dot(p.astype(jnp.bfloat16), vh,
                     preferred_element_type=jnp.float32)              # (S, hd)
        # fold the output projection per head: no attn_sc scratch, no masked
        # stores, single full-lane (S, D) store at the end.
        attn = attn + jnp.dot(ao.astype(jnp.bfloat16), wo_ref[h],
                              preferred_element_type=jnp.float32)     # (S, D)

    o_ref[...] = attn.astype(o_ref.dtype).reshape(1, s, d)


def attention(qkv, maskb, wo_hdk):
    b, s, d3 = qkv.shape
    d = d3 // 3
    return pl.pallas_call(
        _attention_kernel,
        out_shape=jax.ShapeDtypeStruct((b, s, d), jnp.bfloat16),
        grid=(b,),
        in_specs=[pl.BlockSpec((1, s, d3), lambda i: (i, 0, 0)),
                  pl.BlockSpec((1, 1, s), lambda i: (i, 0, 0)),
                  pl.BlockSpec(wo_hdk.shape, lambda i: (0, 0, 0))],
        out_specs=pl.BlockSpec((1, s, d), lambda i: (i, 0, 0)),
        compiler_params=pltpu.CompilerParams(
            dimension_semantics=("parallel",),
            vmem_limit_bytes=VMEM_LIMIT),
    )(qkv, maskb, wo_hdk)


# ---------------- Pallas kernel: row-tiled residual + LN + FFN + LN ----------------
def _post_attn_kernel(x_ref, attn_ref, bo_ref, w1_ref, b1_ref, w2_ref, b2_ref,
                      g1_ref, be1_ref, g2_ref, be2_ref, o_ref):
    # TODO(synk): for v7x at real D=1536, single-buffer (pl.Buffered(1)) or
    # N-tile the resident w1/w2 weights so double-buffering stays under 64 MiB.
    x = x_ref[...].astype(jnp.float32)
    attn = attn_ref[...].astype(jnp.float32) + bo_ref[...]

    def layer_norm(z, g, bb):
        mu = jnp.mean(z, axis=-1, keepdims=True)
        var = jnp.mean((z - mu) ** 2, axis=-1, keepdims=True)
        return (z - mu) * lax.rsqrt(var + 1e-5) * g + bb

    y = layer_norm(x + attn, g1_ref[...], be1_ref[...])     # after_norm=True (post-norm)
    hmid = jnp.maximum(
        jnp.dot(y.astype(jnp.bfloat16), w1_ref[...],
                preferred_element_type=jnp.float32) + b1_ref[...], 0.0)
    ffn = (jnp.dot(hmid.astype(jnp.bfloat16), w2_ref[...],
                   preferred_element_type=jnp.float32) + b2_ref[...])
    out = layer_norm(y + ffn, g2_ref[...], be2_ref[...])
    o_ref[...] = out.astype(o_ref.dtype)


def post_attention(x, attn, params):
    m, d = x.shape
    tm, mp = _choose_row_tile(m, 256)
    if mp != m:
        x = jnp.pad(x, ((0, mp - m), (0, 0)))
        attn = jnp.pad(attn, ((0, mp - m), (0, 0)))
    wparams = (params['bo'], params['w1'], params['b1'], params['w2'], params['b2'],
               params['g1'], params['be1'], params['g2'], params['be2'])
    w_specs = [pl.BlockSpec(wp.shape, lambda i: (0, 0)) for wp in wparams]
    out = pl.pallas_call(
        _post_attn_kernel,
        out_shape=jax.ShapeDtypeStruct((mp, d), jnp.bfloat16),
        grid=(mp // tm,),
        in_specs=[pl.BlockSpec((tm, d), lambda i: (i, 0)),
                  pl.BlockSpec((tm, d), lambda i: (i, 0))] + w_specs,
        out_specs=pl.BlockSpec((tm, d), lambda i: (i, 0)),
        compiler_params=pltpu.CompilerParams(
            dimension_semantics=("parallel",),
            vmem_limit_bytes=VMEM_LIMIT),
    )(x, attn, *wparams)
    return out[:m]


# ---------------- Pallas kernel: fused 6 tag heads + per-task log-softmax ----------------
def _outfc_logsoftmax_kernel(x_ref, w_ref, b_ref, o_ref):
    # x: (tm, D) bf16; w: (D, NT_PAD) bf16 (6 tasks packed lane-dense + zero pad);
    # b: (1, NT_PAD) f32; o: (tm, NT_PAD) f32.
    logits = (jnp.dot(x_ref[...], w_ref[...],
                      preferred_element_type=jnp.float32) + b_ref[...])
    # per-task log-softmax stored directly to the output lane slices (no concat)
    for i in range(N_TASKS):
        sl = logits[:, i * T:(i + 1) * T]
        mx = jnp.max(sl, axis=-1, keepdims=True)
        lse = mx + jnp.log(jnp.sum(jnp.exp(sl - mx), axis=-1, keepdims=True))
        o_ref[:, i * T:(i + 1) * T] = sl - lse
    if NT_PAD > N_TASKS * T:
        o_ref[:, N_TASKS * T:] = logits[:, N_TASKS * T:]   # pass-through padding lanes


def outfc_logsoftmax(x, w, b):
    m, d = x.shape
    tm, mp = _choose_row_tile(m, 256)
    if mp != m:
        x = jnp.pad(x, ((0, mp - m), (0, 0)))
    out = pl.pallas_call(
        _outfc_logsoftmax_kernel,
        out_shape=jax.ShapeDtypeStruct((mp, NT_PAD), jnp.float32),
        grid=(mp // tm,),
        in_specs=[pl.BlockSpec((tm, d), lambda i: (i, 0)),
                  pl.BlockSpec(w.shape, lambda i: (0, 0)),
                  pl.BlockSpec(b.shape, lambda i: (0, 0))],
        out_specs=pl.BlockSpec((tm, NT_PAD), lambda i: (i, 0)),
        compiler_params=pltpu.CompilerParams(
            dimension_semantics=("parallel",),
            vmem_limit_bytes=VMEM_LIMIT),
    )(x, w, b)
    return out[:m]


# ---------------- CRF viterbi (plain JAX glue) ----------------
def viterbi_decode(logits, mask, trans, start_scores, end_scores):
    # TODO(synk): fastNLP allowed_transitions (BIOES constraint table) is not
    # reconstructible from the snippet; unconstrained transitions are used.
    b, l, t = logits.shape
    alpha0 = logits[:, 0, :] + start_scores[None, :]
    emits = jnp.transpose(logits[:, 1:, :], (1, 0, 2))        # (L-1, B, T)
    ms = jnp.transpose(mask[:, 1:], (1, 0))                   # (L-1, B)

    def fwd(alpha, xs):
        emit, m = xs
        scores = alpha[:, :, None] + trans[None, :, :] + emit[:, None, :]
        best_prev = jnp.argmax(scores, axis=1).astype(jnp.int32)
        new_alpha = jnp.max(scores, axis=1)
        new_alpha = jnp.where(m[:, None], new_alpha, alpha)
        best_prev = jnp.where(m[:, None], best_prev,
                              jnp.broadcast_to(jnp.arange(t, dtype=jnp.int32), (b, t)))
        return new_alpha, best_prev

    alpha, backptrs = lax.scan(fwd, alpha0, (emits, ms))
    alpha = alpha + end_scores[None, :]
    last_tag = jnp.argmax(alpha, axis=-1).astype(jnp.int32)

    def back(tag, bp):
        prev = jnp.take_along_axis(bp, tag[:, None], axis=1)[:, 0]
        return prev, tag

    first_tag, later = lax.scan(back, last_tag, backptrs, reverse=True)
    return jnp.concatenate([first_tag[:, None], jnp.transpose(later, (1, 0))], axis=1)


# ---------------- parameters ----------------
def init_params(key):
    ks = jax.random.split(key, 12)
    std = 0.02

    # in_fc (stack 0) + the 10 in_fc_docs (stacks 1..10), one stacked weight
    proj_w = jax.random.normal(ks[1], (1 + N_DOCS, E, D), jnp.float32) * std
    proj_b = jnp.zeros((1 + N_DOCS, 1, D), jnp.float32)

    # six tag heads packed lane-dense into one zero-padded (D, 128) weight
    out_w = jax.random.normal(ks[7], (N_TASKS, D, T), jnp.float32) * std
    out_w_packed = jnp.zeros((D, NT_PAD), jnp.float32).at[:, :N_TASKS * T].set(
        jnp.transpose(out_w, (1, 0, 2)).reshape(D, N_TASKS * T))

    wo = jax.random.normal(ks[4], (D, D), jnp.float32) * std

    p = {
        'embed': jax.random.normal(ks[0], (VOCAB, E), jnp.float32) * std,
        'proj_w': proj_w.astype(jnp.bfloat16),
        'proj_b': proj_b,
        'wqkv': (jax.random.normal(ks[3], (D, 3 * D), jnp.float32) * std).astype(jnp.bfloat16),
        'bqkv': jnp.zeros((1, 3 * D), jnp.float32),
        'wo_hdk': wo.reshape(H, D // H, D).astype(jnp.bfloat16),   # (H, hd, D)
        'bo': jnp.zeros((1, D), jnp.float32),
        'w1': (jax.random.normal(ks[5], (D, FF), jnp.float32) * std).astype(jnp.bfloat16),
        'b1': jnp.zeros((1, FF), jnp.float32),
        'w2': (jax.random.normal(ks[6], (FF, D), jnp.float32) * std).astype(jnp.bfloat16),
        'b2': jnp.zeros((1, D), jnp.float32),
        'g1': jnp.ones((1, D), jnp.float32), 'be1': jnp.zeros((1, D), jnp.float32),
        'g2': jnp.ones((1, D), jnp.float32), 'be2': jnp.zeros((1, D), jnp.float32),
        'out_w': out_w_packed.astype(jnp.bfloat16),
        'out_b': jnp.zeros((1, NT_PAD), jnp.float32),
        'crf_trans': jax.random.normal(ks[8], (T, T), jnp.float32) * std,
        'crf_start': jax.random.normal(ks[9], (T,), jnp.float32) * std,
        'crf_end': jax.random.normal(ks[10], (T,), jnp.float32) * std,
    }
    return p


# ---------------- forward (inference path: target=None) ----------------
@jax.jit
def forward(params, words, docs):
    # words: (B, S) int32 ids; docs: (N_DOCS, B, SD) int32 ids
    mask = words != 0                                             # (B, S)
    words_e = jnp.take(params['embed'], words, axis=0)            # (B, S, E)
    docs_e = jnp.take(params['embed'], docs, axis=0)              # (N_DOCS, B, SD, E)

    # mean-pool each context doc BEFORE the projection (mean and affine commute),
    # exactly equivalent to projecting then mean-pooling as in the reference.
    pooled_e = jnp.mean(docs_e, axis=2)                           # (N_DOCS, B, E)

    # words projection (in_fc): M = B*S rows
    chars = stacked_linear(words_e.reshape(1, B * S, E).astype(jnp.bfloat16),
                           params['proj_w'][:1], params['proj_b'][:1])[0]   # (B*S, D) bf16

    # doc projections (in_fc_docs[0..9]): only the pooled rows, M = B rounded up
    # to the 8-row sublane tile (no S x zero-padding waste).
    bpad = max(8, _round_up(B, 8))
    pooled_pad = jnp.pad(pooled_e, ((0, 0), (0, bpad - B), (0, 0)))
    pooled = stacked_linear(pooled_pad.astype(jnp.bfloat16),
                            params['proj_w'][1:], params['proj_b'][1:])[:, :B, :]  # (N_DOCS, B, D)

    # ---- transformer encoder layer ----
    maskb = jnp.where(mask, 0.0, NEG_INF)[:, None, :].astype(jnp.float32)   # (B,1,S)
    # QKV projection hoisted out of the per-batch grid: M = B*S rows on the MXU
    qkv = stacked_linear(chars.reshape(1, B * S, D),
                         params['wqkv'][None], params['bqkv'][None])[0]     # (B*S, 3D) bf16
    attn_ctx = attention(qkv.reshape(B, S, 3 * D), maskb, params['wo_hdk']) # (B, S, D) bf16
    words_h = post_attention(chars, attn_ctx.reshape(B * S, D), params)     # (B*S, D) bf16
    words_h = words_h.reshape(B, S, D)          # fc_dropout is identity (eval)

    # reproduce the original torch raw reshape: torch.stack(...) -> (10,B,1,D),
    # then .reshape(B,10,D) (a raw reinterpretation, NOT a transpose).
    joker = jnp.reshape(pooled, (B, N_DOCS, D))
    words_cat = jnp.concatenate([words_h, joker], axis=1)         # (B, S+10, D) bf16

    # fused six tag heads + per-task log_softmax (Pallas, lane-dense, M-tiled)
    logits_flat = outfc_logsoftmax(words_cat.reshape(B * (S + N_DOCS), D),
                                   params['out_w'], params['out_b'])        # (M, NT_PAD)
    logits = logits_flat[:, :N_TASKS * T].reshape(B, S + N_DOCS, N_TASKS, T)
    logits = jnp.transpose(logits, (2, 0, 1, 3))                  # (N_TASKS, B, S+10, T)

    joker_mask = jnp.concatenate([mask, jnp.ones((B, N_DOCS), dtype=bool)], axis=1)

    results = {}
    results['pred'] = viterbi_decode(logits[0], joker_mask,
                                     params['crf_trans'],
                                     params['crf_start'],
                                     params['crf_end'])[:, :-N_DOCS]
    for i in range(1, N_TASKS):
        results['pred' + str(i)] = jnp.argmax(logits[i], axis=2)[:, :-N_DOCS]
    return results


if __name__ == "__main__":
    key = jax.random.PRNGKey(0)
    pkey, wkey, dkey = jax.random.split(key, 3)
    params = init_params(pkey)
    # token ids >= 1 so words.ne(0) mask is all True (no padding in this demo)
    words = jax.random.randint(wkey, (B, S), 1, VOCAB, dtype=jnp.int32)
    docs = jax.random.randint(dkey, (N_DOCS, B, SD), 1, VOCAB, dtype=jnp.int32)

    out = forward(params, words, docs)
    out = jax.tree_util.tree_map(jax.block_until_ready, out)

    assert out['pred'].shape == (B, S)
    for i in range(1, N_TASKS):
        assert out['pred' + str(i)].shape == (B, S)
    print("KERNEL_OK")
</pallas_src>

<mosaic_0001>
module attributes {stable_mosaic.version = 11 : i64} {
  func.func @_stacked_linear_fullk_kernel(%arg0: i32, %arg1: i32, %arg2: memref<1x8x256xbf16, #tpu.memory_space<vmem>>, %arg3: memref<1x256x128xbf16, #tpu.memory_space<vmem>>, %arg4: memref<1x1x128xf32, #tpu.memory_space<vmem>>, %arg5: memref<1x8x128xbf16, #tpu.memory_space<vmem>>) attributes {dimension_semantics = [#tpu.dimension_semantics<parallel>, #tpu.dimension_semantics<parallel>], iteration_bounds = array<i64: 10, 1>, scalar_prefetch = 0 : i64, scratch_operands = 0 : i64, tpu.core_type = #tpu.core_type<tc>, window_params = [{transform_indices = @transform_0, window_bounds = array<i64: 1, 8, 256>}, {transform_indices = @transform_1, window_bounds = array<i64: 1, 256, 128>}, {transform_indices = @transform_2, window_bounds = array<i64: 1, 1, 128>}, {transform_indices = @transform_3, window_bounds = array<i64: 1, 8, 128>}]} {
    %c0 = arith.constant 0 : index
    %c0_0 = arith.constant 0 : index
    %c0_1 = arith.constant 0 : index
    %0 = vector.load %arg2[%c0, %c0_0, %c0_1] : memref<1x8x256xbf16, #tpu.memory_space<vmem>>, vector<1x8x256xbf16>
    %1 = vector.shape_cast %0 : vector<1x8x256xbf16> to vector<8x256xbf16>
    %c0_2 = arith.constant 0 : index
    %c0_3 = arith.constant 0 : index
    %c0_4 = arith.constant 0 : index
    %2 = vector.load %arg3[%c0_2, %c0_3, %c0_4] : memref<1x256x128xbf16, #tpu.memory_space<vmem>>, vector<1x256x128xbf16>
    %3 = vector.shape_cast %2 : vector<1x256x128xbf16> to vector<256x128xbf16>
    %cst = arith.constant dense<0.000000e+00> : vector<8x128xf32>
    %4 = tpu.matmul %1, %3, %cst {dimension_numbers = #tpu.dot_dimension_numbers<[1], [0], [0], [1], [0, 0, 1, 1], [], []>} : vector<8x256xbf16>, vector<256x128xbf16>, vector<8x128xf32> -> vector<8x128xf32>
    %c0_5 = arith.constant 0 : index
    %c0_6 = arith.constant 0 : index
    %c0_7 = arith.constant 0 : index
    %5 = vector.load %arg4[%c0_5, %c0_6, %c0_7] : memref<1x1x128xf32, #tpu.memory_space<vmem>>, vector<1x1x128xf32>
    %6 = vector.shape_cast %5 : vector<1x1x128xf32> to vector<1x128xf32>
    %7 = vector.broadcast %6 : vector<1x128xf32> to vector<8x128xf32>
    %8 = arith.addf %4, %7 : vector<8x128xf32>
    %9 = arith.truncf %8 : vector<8x128xf32> to vector<8x128xbf16>
    %c0_8 = arith.constant 0 : index
    %c0_9 = arith.constant 0 : index
    %c0_10 = arith.constant 0 : index
    %10 = vector.load %arg5[%c0_8, %c0_9, %c0_10] : memref<1x8x128xbf16, #tpu.memory_space<vmem>>, vector<1x8x128xbf16>
    %11 = vector.shape_cast %10 : vector<1x8x128xbf16> to vector<8x128xbf16>
    %12 = vector.shape_cast %9 : vector<8x128xbf16> to vector<1x8x128xbf16>
    tpu.vector_store %arg5[%c0_8, %c0_9, %c0_10], %12 {strides = array<i32>} : memref<1x8x128xbf16, #tpu.memory_space<vmem>>, vector<1x8x128xbf16>,
    return
  }
  func.func @transform_0(%arg0: i32, %arg1: i32) -> (i32, i32, i32) {
    %c0_i32 = arith.constant 0 : i32
    %c0_i32_0 = arith.constant 0 : i32
    %c0_i32_1 = arith.constant 0 : i32
    return %arg0, %c0_i32, %c0_i32_0 : i32, i32, i32
  }
  func.func @transform_1(%arg0: i32, %arg1: i32) -> (i32, i32, i32) {
    %c0_i32 = arith.constant 0 : i32
    %c0_i32_0 = arith.constant 0 : i32
    return %arg0, %c0_i32, %arg1 : i32, i32, i32
  }
  func.func @transform_2(%arg0: i32, %arg1: i32) -> (i32, i32, i32) {
    %c0_i32 = arith.constant 0 : i32
    %c0_i32_0 = arith.constant 0 : i32
    return %arg0, %c0_i32, %arg1 : i32, i32, i32
  }
  func.func @transform_3(%arg0: i32, %arg1: i32) -> (i32, i32, i32) {
    %c0_i32 = arith.constant 0 : i32
    %c0_i32_0 = arith.constant 0 : i32
    return %arg0, %c0_i32, %arg1 : i32, i32, i32
  }
}

module attributes {stable_mosaic.version = 11 : i64} {
  func.func @_stacked_linear_fullk_kernel(%arg0: i32, %arg1: i32, %arg2: memref<1x16x256xbf16, #tpu.memory_space<vmem>>, %arg3: memref<1x256x128xbf16, #tpu.memory_space<vmem>>, %arg4: memref<1x1x128xf32, #tpu.memory_space<vmem>>, %arg5: memref<1x16x128xbf16, #tpu.memory_space<vmem>>) attributes {dimension_semantics = [#tpu.dimension_semantics<parallel>, #tpu.dimension_semantics<parallel>], iteration_bounds = array<i64: 1, 1>, scalar_prefetch = 0 : i64, scratch_operands = 0 : i64, tpu.core_type = #tpu.core_type<tc>, window_params = [{transform_indices = @transform_0, window_bounds = array<i64: 1, 16, 256>}, {transform_indices = @transform_1, window_bounds = array<i64: 1, 256, 128>}, {transform_indices = @transform_2, window_bounds = array<i64: 1, 1, 128>}, {transform_indices = @transform_3, window_bounds = array<i64: 1, 16, 128>}]} {
    %c0 = arith.constant 0 : index
    %c0_0 = arith.constant 0 : index
    %c0_1 = arith.constant 0 : index
    %0 = vector.load %arg2[%c0, %c0_0, %c0_1] : memref<1x16x256xbf16, #tpu.memory_space<vmem>>, vector<1x16x256xbf16>
    %1 = vector.shape_cast %0 : vector<1x16x256xbf16> to vector<16x256xbf16>
    %c0_2 = arith.constant 0 : index
    %c0_3 = arith.constant 0 : index
    %c0_4 = arith.constant 0 : index
    %2 = vector.load %arg3[%c0_2, %c0_3, %c0_4] : memref<1x256x128xbf16, #tpu.memory_space<vmem>>, vector<1x256x128xbf16>
    %3 = vector.shape_cast %2 : vector<1x256x128xbf16> to vector<256x128xbf16>
    %cst = arith.constant dense<0.000000e+00> : vector<16x128xf32>
    %4 = tpu.matmul %1, %3, %cst {dimension_numbers = #tpu.dot_dimension_numbers<[1], [0], [0], [1], [0, 0, 1, 1], [], []>} : vector<16x256xbf16>, vector<256x128xbf16>, vector<16x128xf32> -> vector<16x128xf32>
    %c0_5 = arith.constant 0 : index
    %c0_6 = arith.constant 0 : index
    %c0_7 = arith.constant 0 : index
    %5 = vector.load %arg4[%c0_5, %c0_6, %c0_7] : memref<1x1x128xf32, #tpu.memory_space<vmem>>, vector<1x1x128xf32>
    %6 = vector.shape_cast %5 : vector<1x1x128xf32> to vector<1x128xf32>
    %7 = vector.broadcast %6 : vector<1x128xf32> to vector<16x128xf32>
    %8 = arith.addf %4, %7 : vector<16x128xf32>
    %9 = arith.truncf %8 : vector<16x128xf32> to vector<16x128xbf16>
    %c0_8 = arith.constant 0 : index
    %c0_9 = arith.constant 0 : index
    %c0_10 = arith.constant 0 : index
    %10 = vector.load %arg5[%c0_8, %c0_9, %c0_10] : memref<1x16x128xbf16, #tpu.memory_space<vmem>>, vector<1x16x128xbf16>
    %11 = vector.shape_cast %10 : vector<1x16x128xbf16> to vector<16x128xbf16>
    %12 = vector.shape_cast %9 : vector<16x128xbf16> to vector<1x16x128xbf16>
    tpu.vector_store %arg5[%c0_8, %c0_9, %c0_10], %12 {strides = array<i32>} : memref<1x16x128xbf16, #tpu.memory_space<vmem>>, vector<1x16x128xbf16>,
    return
  }
  func.func @transform_0(%arg0: i32, %arg1: i32) -> (i32, i32, i32) {
    %c0_i32 = arith.constant 0 : i32
    %c0_i32_0 = arith.constant 0 : i32
    %c0_i32_1 = arith.constant 0 : i32
    return %arg0, %c0_i32, %c0_i32_0 : i32, i32, i32
  }
  func.func @transform_1(%arg0: i32, %arg1: i32) -> (i32, i32, i32) {
    %c0_i32 = arith.constant 0 : i32
    %c0_i32_0 = arith.constant 0 : i32
    return %arg0, %c0_i32, %arg1 : i32, i32, i32
  }
  func.func @transform_2(%arg0: i32, %arg1: i32) -> (i32, i32, i32) {
    %c0_i32 = arith.constant 0 : i32
    %c0_i32_0 = arith.constant 0 : i32
    return %arg0, %c0_i32, %arg1 : i32, i32, i32
  }
  func.func @transform_3(%arg0: i32, %arg1: i32) -> (i32, i32, i32) {
    %c0_i32 = arith.constant 0 : i32
    %c0_i32_0 = arith.constant 0 : i32
    return %arg0, %c0_i32, %arg1 : i32, i32, i32
  }
}

module attributes {stable_mosaic.version = 11 : i64} {
  func.func @_stacked_linear_fullk_kernel(%arg0: i32, %arg1: i32, %arg2: memref<1x16x128xbf16, #tpu.memory_space<vmem>>, %arg3: memref<1x128x384xbf16, #tpu.memory_space<vmem>>, %arg4: memref<1x1x384xf32, #tpu.memory_space<vmem>>, %arg5: memref<1x16x384xbf16, #tpu.memory_space<vmem>>) attributes {dimension_semantics = [#tpu.dimension_semantics<parallel>, #tpu.dimension_semantics<parallel>], iteration_bounds = array<i64: 1, 1>, scalar_prefetch = 0 : i64, scratch_operands = 0 : i64, tpu.core_type = #tpu.core_type<tc>, window_params = [{transform_indices = @transform_0, window_bounds = array<i64: 1, 16, 128>}, {transform_indices = @transform_1, window_bounds = array<i64: 1, 128, 384>}, {transform_indices = @transform_2, window_bounds = array<i64: 1, 1, 384>}, {transform_indices = @transform_3, window_bounds = array<i64: 1, 16, 384>}]} {
    %c0 = arith.constant 0 : index
    %c0_0 = arith.constant 0 : index
    %c0_1 = arith.constant 0 : index
    %0 = vector.load %arg2[%c0, %c0_0, %c0_1] : memref<1x16x128xbf16, #tpu.memory_space<vmem>>, vector<1x16x128xbf16>
    %1 = vector.shape_cast %0 : vector<1x16x128xbf16> to vector<16x128xbf16>
    %c0_2 = arith.constant 0 : index
    %c0_3 = arith.constant 0 : index
    %c0_4 = arith.constant 0 : index
    %2 = vector.load %arg3[%c0_2, %c0_3, %c0_4] : memref<1x128x384xbf16, #tpu.memory_space<vmem>>, vector<1x128x384xbf16>
    %3 = vector.shape_cast %2 : vector<1x128x384xbf16> to vector<128x384xbf16>
    %cst = arith.constant dense<0.000000e+00> : vector<16x384xf32>
    %4 = tpu.matmul %1, %3, %cst {dimension_numbers = #tpu.dot_dimension_numbers<[1], [0], [0], [1], [0, 0, 1, 1], [], []>} : vector<16x128xbf16>, vector<128x384xbf16>, vector<16x384xf32> -> vector<16x384xf32>
    %c0_5 = arith.constant 0 : index
    %c0_6 = arith.constant 0 : index
    %c0_7 = arith.constant 0 : index
    %5 = vector.load %arg4[%c0_5, %c0_6, %c0_7] : memref<1x1x384xf32, #tpu.memory_space<vmem>>, vector<1x1x384xf32>
    %6 = vector.shape_cast %5 : vector<1x1x384xf32> to vector<1x384xf32>
    %7 = vector.broadcast %6 : vector<1x384xf32> to vector<16x384xf32>
    %8 = arith.addf %4, %7 : vector<16x384xf32>
    %9 = arith.truncf %8 : vector<16x384xf32> to vector<16x384xbf16>
    %c0_8 = arith.constant 0 : index
    %c0_9 = arith.constant 0 : index
    %c0_10 = arith.constant 0 : index
    %10 = vector.load %arg5[%c0_8, %c0_9, %c0_10] : memref<1x16x384xbf16, #tpu.memory_space<vmem>>, vector<1x16x384xbf16>
    %11 = vector.shape_cast %10 : vector<1x16x384xbf16> to vector<16x384xbf16>
    %12 = vector.shape_cast %9 : vector<16x384xbf16> to vector<1x16x384xbf16>
    tpu.vector_store %arg5[%c0_8, %c0_9, %c0_10], %12 {strides = array<i32>} : memref<1x16x384xbf16, #tpu.memory_space<vmem>>, vector<1x16x384xbf16>,
    return
  }
  func.func @transform_0(%arg0: i32, %arg1: i32) -> (i32, i32, i32) {
    %c0_i32 = arith.constant 0 : i32
    %c0_i32_0 = arith.constant 0 : i32
    %c0_i32_1 = arith.constant 0 : i32
    return %arg0, %c0_i32, %c0_i32_0 : i32, i32, i32
  }
  func.func @transform_1(%arg0: i32, %arg1: i32) -> (i32, i32, i32) {
    %c0_i32 = arith.constant 0 : i32
    %c0_i32_0 = arith.constant 0 : i32
    return %arg0, %c0_i32, %arg1 : i32, i32, i32
  }
  func.func @transform_2(%arg0: i32, %arg1: i32) -> (i32, i32, i32) {
    %c0_i32 = arith.constant 0 : i32
    %c0_i32_0 = arith.constant 0 : i32
    return %arg0, %c0_i32, %arg1 : i32, i32, i32
  }
  func.func @transform_3(%arg0: i32, %arg1: i32) -> (i32, i32, i32) {
    %c0_i32 = arith.constant 0 : i32
    %c0_i32_0 = arith.constant 0 : i32
    return %arg0, %c0_i32, %arg1 : i32, i32, i32
  }
}

module attributes {stable_mosaic.version = 11 : i64} {
  func.func @_attention_kernel(%arg0: i32, %arg1: memref<1x8x384xbf16, #tpu.memory_space<vmem>>, %arg2: memref<1x1x8xf32, #tpu.memory_space<vmem>>, %arg3: memref<4x32x128xbf16, #tpu.memory_space<vmem>>, %arg4: memref<1x8x128xbf16, #tpu.memory_space<vmem>>) attributes {dimension_semantics = [#tpu.dimension_semantics<parallel>], iteration_bounds = array<i64: 2>, scalar_prefetch = 0 : i64, scratch_operands = 0 : i64, tpu.core_type = #tpu.core_type<tc>, window_params = [{transform_indices = @transform_0, window_bounds = array<i64: 1, 8, 384>}, {transform_indices = @transform_1, window_bounds = array<i64: 1, 1, 8>}, {pipeline_mode = #tpu.pipeline_mode<synchronous>, transform_indices = @transform_2, window_bounds = array<i64: 4, 32, 128>}, {transform_indices = @transform_3, window_bounds = array<i64: 1, 8, 128>}]} {
    %c0 = arith.constant 0 : index
    %c0_0 = arith.constant 0 : index
    %c0_1 = arith.constant 0 : index
    %0 = vector.load %arg1[%c0, %c0_0, %c0_1] : memref<1x8x384xbf16, #tpu.memory_space<vmem>>, vector<1x8x384xbf16>
    %1 = vector.shape_cast %0 : vector<1x8x384xbf16> to vector<8x384xbf16>
    %c0_2 = arith.constant 0 : index
    %c0_3 = arith.constant 0 : index
    %c0_4 = arith.constant 0 : index
    %2 = vector.load %arg2[%c0_2, %c0_3, %c0_4] : memref<1x1x8xf32, #tpu.memory_space<vmem>>, vector<1x1x8xf32>
    %3 = vector.shape_cast %2 : vector<1x1x8xf32> to vector<1x8xf32>
    %cst = arith.constant 0.000000e+00 : f32
    %4 = vector.broadcast %cst : f32 to vector<8x128xf32>
    %5 = vector.extract_strided_slice %1 {offsets = [0, 0], sizes = [8, 32], strides = [1, 1]} : vector<8x384xbf16> to vector<8x32xbf16>
    %6 = vector.extract_strided_slice %1 {offsets = [0, 128], sizes = [8, 32], strides = [1, 1]} : vector<8x384xbf16> to vector<8x32xbf16>
    %7 = vector.extract_strided_slice %1 {offsets = [0, 256], sizes = [8, 32], strides = [1, 1]} : vector<8x384xbf16> to vector<8x32xbf16>
    %cst_5 = arith.constant dense<0.000000e+00> : vector<8x8xf32>
    %8 = tpu.matmul %5, %6, %cst_5 {dimension_numbers = #tpu.dot_dimension_numbers<[1], [1], [0], [0], [0, 0, 1, 0], [], []>} : vector<8x32xbf16>, vector<8x32xbf16>, vector<8x8xf32> -> vector<8x8xf32>
    %9 = vector.broadcast %3 : vector<1x8xf32> to vector<8x8xf32>
    %10 = arith.addf %8, %9 : vector<8x8xf32>
    %cst_6 = arith.constant dense<0xFF800000> : vector<8xf32>
    %11 = vector.multi_reduction <maximumf>, %10, %cst_6 [1] : vector<8x8xf32> to vector<8xf32>
    %12 = vector.shape_cast %11 : vector<8xf32> to vector<8x1xf32>
    %13 = vector.broadcast %12 : vector<8x1xf32> to vector<8x8xf32>
    %14 = arith.subf %10, %13 : vector<8x8xf32>
    %15 = math.exp %14 : vector<8x8xf32>
    %cst_7 = arith.constant dense<0.000000e+00> : vector<8xf32>
    %16 = vector.multi_reduction <add>, %15, %cst_7 [1] : vector<8x8xf32> to vector<8xf32>
    %17 = vector.shape_cast %16 : vector<8xf32> to vector<8x1xf32>
    %18 = tpu.reciprocal %17 {approx = true} : vector<8x1xf32> -> vector<8x1xf32>
    %19 = vector.broadcast %18 : vector<8x1xf32> to vector<8x8xf32>
    %20 = arith.mulf %15, %19 : vector<8x8xf32>
    %21 = arith.truncf %20 : vector<8x8xf32> to vector<8x8xbf16>
    %cst_8 = arith.constant dense<0.000000e+00> : vector<8x32xf32>
    %22 = tpu.matmul %21, %7, %cst_8 {dimension_numbers = #tpu.dot_dimension_numbers<[1], [0], [0], [1], [0, 0, 1, 1], [], []>} : vector<8x8xbf16>, vector<8x32xbf16>, vector<8x32xf32> -> vector<8x32xf32>
    %23 = arith.truncf %22 : vector<8x32xf32> to vector<8x32xbf16>
    %c0_9 = arith.constant 0 : index
    %c0_10 = arith.constant 0 : index
    %c0_11 = arith.constant 0 : index
    %24 = vector.load %arg3[%c0_9, %c0_10, %c0_11] : memref<4x32x128xbf16, #tpu.memory_space<vmem>>, vector<1x32x128xbf16>
    %25 = vector.shape_cast %24 : vector<1x32x128xbf16> to vector<32x128xbf16>
    %cst_12 = arith.constant dense<0.000000e+00> : vector<8x128xf32>
    %26 = tpu.matmul %23, %25, %cst_12 {dimension_numbers = #tpu.dot_dimension_numbers<[1], [0], [0], [1], [0, 0, 1, 1], [], []>} : vector<8x32xbf16>, vector<32x128xbf16>, vector<8x128xf32> -> vector<8x128xf32>
    %27 = arith.addf %4, %26 : vector<8x128xf32>
    %28 = vector.extract_strided_slice %1 {offsets = [0, 32], sizes = [8, 32], strides = [1, 1]} : vector<8x384xbf16> to vector<8x32xbf16>
    %29 = vector.extract_strided_slice %1 {offsets = [0, 160], sizes = [8, 32], strides = [1, 1]} : vector<8x384xbf16> to vector<8x32xbf16>
    %30 = vector.extract_strided_slice %1 {offsets = [0, 288], sizes = [8, 32], strides = [1, 1]} : vector<8x384xbf16> to vector<8x32xbf16>
    %cst_13 = arith.constant dense<0.000000e+00> : vector<8x8xf32>
    %31 = tpu.matmul %28, %29, %cst_13 {dimension_numbers = #tpu.dot_dimension_numbers<[1], [1], [0], [0], [0, 0, 1, 0], [], []>} : vector<8x32xbf16>, vector<8x32xbf16>, vector<8x8xf32> -> vector<8x8xf32>
    %32 = vector.broadcast %3 : vector<1x8xf32> to vector<8x8xf32>
    %33 = arith.addf %31, %32 : vector<8x8xf32>
    %cst_14 = arith.constant dense<0xFF800000> : vector<8xf32>
    %34 = vector.multi_reduction <maximumf>, %33, %cst_14 [1] : vector<8x8xf32> to vector<8xf32>
    %35 = vector.shape_cast %34 : vector<8xf32> to vector<8x1xf32>
    %36 = vector.broadcast %35 : vector<8x1xf32> to vector<8x8xf32>
    %37 = arith.subf %33, %36 : vector<8x8xf32>
    %38 = math.exp %37 : vector<8x8xf32>
    %cst_15 = arith.constant dense<0.000000e+00> : vector<8xf32>
    %39 = vector.multi_reduction <add>, %38, %cst_15 [1] : vector<8x8xf32> to vector<8xf32>
    %40 = vector.shape_cast %39 : vector<8xf32> to vector<8x1xf32>
    %41 = tpu.reciprocal %40 {approx = true} : vector<8x1xf32> -> vector<8x1xf32>
    %42 = vector.broadcast %41 : vector<8x1xf32> to vector<8x8xf32>
    %43 = arith.mulf %38, %42 : vector<8x8xf32>
    %44 = arith.truncf %43 : vector<8x8xf32> to vector<8x8xbf16>
    %cst_16 = arith.constant dense<0.000000e+00> : vector<8x32xf32>
    %45 = tpu.matmul %44, %30, %cst_16 {dimension_numbers = #tpu.dot_dimension_numbers<[1], [0], [0], [1], [0, 0, 1, 1], [], []>} : vector<8x8xbf16>, vector<8x32xbf16>, vector<8x32xf32> -> vector<8x32xf32>
    %46 = arith.truncf %45 : vector<8x32xf32> to vector<8x32xbf16>
    %c1 = arith.constant 1 : index
    %c0_17 = arith.constant 0 : index
    %c0_18 = arith.constant 0 : index
    %47 = vector.load %arg3[%c1, %c0_17, %c0_18] : memref<4x32x128xbf16, #tpu.memory_space<vmem>>, vector<1x32x128xbf16>
    %48 = vector.shape_cast %47 : vector<1x32x128xbf16> to vector<32x128xbf16>
    %cst_19 = arith.constant dense<0.000000e+00> : vector<8x128xf32>
    %49 = tpu.matmul %46, %48, %cst_19 {dimension_numbers = #tpu.dot_dimension_numbers<[1], [0], [0], [1], [0, 0, 1, 1], [], []>} : vector<8x32xbf16>, vector<32x128xbf16>, vector<8x128xf32> -> vector<8x128xf32>
    %50 = arith.addf %27, %49 : vector<8x128xf32>
    %51 = vector.extract_strided_slice %1 {offsets = [0, 64], sizes = [8, 32], strides = [1, 1]} : vector<8x384xbf16> to vector<8x32xbf16>
    %52 = vector.extract_strided_slice %1 {offsets = [0, 192], sizes = [8, 32], strides = [1, 1]} : vector<8x384xbf16> to vector<8x32xbf16>
    %53 = vector.extract_strided_slice %1 {offsets = [0, 320], sizes = [8, 32], strides = [1, 1]} : vector<8x384xbf16> to vector<8x32xbf16>
    %cst_20 = arith.constant dense<0.000000e+00> : vector<8x8xf32>
    %54 = tpu.matmul %51, %52, %cst_20 {dimension_numbers = #tpu.dot_dimension_numbers<[1], [1], [0], [0], [0, 0, 1, 0], [], []>} : vector<8x32xbf16>, vector<8x32xbf16>, vector<8x8xf32> -> vector<8x8xf32>
    %55 = vector.broadcast %3 : vector<1x8xf32> to vector<8x8xf32>
    %56 = arith.addf %54, %55 : vector<8x8xf32>
    %cst_21 = arith.constant dense<0xFF800000> : vector<8xf32>
    %57 = vector.multi_reduction <maximumf>, %56, %cst_21 [1] : vector<8x8xf32> to vector<8xf32>
    %58 = vector.shape_cast %57 : vector<8xf32> to vector<8x1xf32>
    %59 = vector.broadcast %58 : vector<8x1xf32> to vector<8x8xf32>
    %60 = arith.subf %56, %59 : vector<8x8xf32>
    %61 = math.exp %60 : vector<8x8xf32>
    %cst_22 = arith.constant dense<0.000000e+00> : vector<8xf32>
    %62 = vector.multi_reduction <add>, %61, %cst_22 [1] : vector<8x8xf32> to vector<8xf32>
    %63 = vector.shape_cast %62 : vector<8xf32> to vector<8x1xf32>
    %64 = tpu.reciprocal %63 {approx = true} : vector<8x1xf32> -> vector<8x1xf32>
    %65 = vector.broadcast %64 : vector<8x1xf32> to vector<8x8xf32>
    %66 = arith.mulf %61, %65 : vector<8x8xf32>
    %67 = arith.truncf %66 : vector<8x8xf32> to vector<8x8xbf16>
    %cst_23 = arith.constant dense<0.000000e+00> : vector<8x32xf32>
    %68 = tpu.matmul %67, %53, %cst_23 {dimension_numbers = #tpu.dot_dimension_numbers<[1], [0], [0], [1], [0, 0, 1, 1], [], []>} : vector<8x8xbf16>, vector<8x32xbf16>, vector<8x32xf32> -> vector<8x32xf32>
    %69 = arith.truncf %68 : vector<8x32xf32> to vector<8x32xbf16>
    %c2 = arith.constant 2 : index
    %c0_24 = arith.constant 0 : index
    %c0_25 = arith.constant 0 : index
    %70 = vector.load %arg3[%c2, %c0_24, %c0_25] : memref<4x32x128xbf16, #tpu.memory_space<vmem>>, vector<1x32x128xbf16>
    %71 = vector.shape_cast %70 : vector<1x32x128xbf16> to vector<32x128xbf16>
    %cst_26 = arith.constant dense<0.000000e+00> : vector<8x128xf32>
    %72 = tpu.matmul %69, %71, %cst_26 {dimension_numbers = #tpu.dot_dimension_numbers<[1], [0], [0], [1], [0, 0, 1, 1], [], []>} : vector<8x32xbf16>, vector<32x128xbf16>, vector<8x128xf32> -> vector<8x128xf32>
    %73 = arith.addf %50, %72 : vector<8x128xf32>
    %74 = vector.extract_strided_slice %1 {offsets = [0, 96], sizes = [8, 32], strides = [1, 1]} : vector<8x384xbf16> to vector<8x32xbf16>
    %75 = vector.extract_strided_slice %1 {offsets = [0, 224], sizes = [8, 32], strides = [1, 1]} : vector<8x384xbf16> to vector<8x32xbf16>
    %76 = vector.extract_strided_slice %1 {offsets = [0, 352], sizes = [8, 32], strides = [1, 1]} : vector<8x384xbf16> to vector<8x32xbf16>
    %cst_27 = arith.constant dense<0.000000e+00> : vector<8x8xf32>
    %77 = tpu.matmul %74, %75, %cst_27 {dimension_numbers = #tpu.dot_dimension_numbers<[1], [1], [0], [0], [0, 0, 1, 0], [], []>} : vector<8x32xbf16>, vector<8x32xbf16>, vector<8x8xf32> -> vector<8x8xf32>
    %78 = vector.broadcast %3 : vector<1x8xf32> to vector<8x8xf32>
    %79 = arith.addf %77, %78 : vector<8x8xf32>
    %cst_28 = arith.constant dense<0xFF800000> : vector<8xf32>
    %80 = vector.multi_reduction <maximumf>, %79, %cst_28 [1] : vector<8x8xf32> to vector<8xf32>
    %81 = vector.shape_cast %80 : vector<8xf32> to vector<8x1xf32>
    %82 = vector.broadcast %81 : vector<8x1xf32> to vector<8x8xf32>
    %83 = arith.subf %79, %82 : vector<8x8xf32>
    %84 = math.exp %83 : vector<8x8xf32>
    %cst_29 = arith.constant dense<0.000000e+00> : vector<8xf32>
    %85 = vector.multi_reduction <add>, %84, %cst_29 [1] : vector<8x8xf32> to vector<8xf32>
    %86 = vector.shape_cast %85 : vector<8xf32> to vector<8x1xf32>
    %87 = tpu.reciprocal %86 {approx = true} : vector<8x1xf32> -> vector<8x1xf32>
    %88 = vector.broadcast %87 : vector<8x1xf32> to vector<8x8xf32>
    %89 = arith.mulf %84, %88 : vector<8x8xf32>
    %90 = arith.truncf %89 : vector<8x8xf32> to vector<8x8xbf16>
    %cst_30 = arith.constant dense<0.000000e+00> : vector<8x32xf32>
    %91 = tpu.matmul %90, %76, %cst_30 {dimension_numbers = #tpu.dot_dimension_numbers<[1], [0], [0], [1], [0, 0, 1, 1], [], []>} : vector<8x8xbf16>, vector<8x32xbf16>, vector<8x32xf32> -> vector<8x32xf32>
    %92 = arith.truncf %91 : vector<8x32xf32> to vector<8x32xbf16>
    %c3 = arith.constant 3 : index
    %c0_31 = arith.constant 0 : index
    %c0_32 = arith.constant 0 : index
    %93 = vector.load %arg3[%c3, %c0_31, %c0_32] : memref<4x32x128xbf16, #tpu.memory_space<vmem>>, vector<1x32x128xbf16>
    %94 = vector.shape_cast %93 : vector<1x32x128xbf16> to vector<32x128xbf16>
    %cst_33 = arith.constant dense<0.000000e+00> : vector<8x128xf32>
    %95 = tpu.matmul %92, %94, %cst_33 {dimension_numbers = #tpu.dot_dimension_numbers<[1], [0], [0], [1], [0, 0, 1, 1], [], []>} : vector<8x32xbf16>, vector<32x128xbf16>, vector<8x128xf32> -> vector<8x128xf32>
    %96 = arith.addf %73, %95 : vector<8x128xf32>
    %97 = arith.truncf %96 : vector<8x128xf32> to vector<8x128xbf16>
    %98 = vector.shape_cast %97 : vector<8x128xbf16> to vector<1x8x128xbf16>
    %c0_34 = arith.constant 0 : index
    %c0_35 = arith.constant 0 : index
    %c0_36 = arith.constant 0 : index
    %99 = vector.load %arg4[%c0_34, %c0_35, %c0_36] : memref<1x8x128xbf16, #tpu.memory_space<vmem>>, vector<1x8x128xbf16>
    tpu.vector_store %arg4[%c0_34, %c0_35, %c0_36], %98 {strides = array<i32>} : memref<1x8x128xbf16, #tpu.memory_space<vmem>>, vector<1x8x128xbf16>,
    return
  }
  func.func @transform_0(%arg0: i32) -> (i32, i32, i32) {
    %c0_i32 = arith.constant 0 : i32
    %c0_i32_0 = arith.constant 0 : i32
    %c0_i32_1 = arith.constant 0 : i32
    return %arg0, %c0_i32, %c0_i32_0 : i32, i32, i32
  }
  func.func @transform_1(%arg0: i32) -> (i32, i32, i32) {
    %c0_i32 = arith.constant 0 : i32
    %c0_i32_0 = arith.constant 0 : i32
    %c0_i32_1 = arith.constant 0 : i32
    return %arg0, %c0_i32, %c0_i32_0 : i32, i32, i32
  }
  func.func @transform_2(%arg0: i32) -> (i32, i32, i32) {
    %c0_i32 = arith.constant 0 : i32
    %c0_i32_0 = arith.constant 0 : i32
    %c0_i32_1 = arith.constant 0 : i32
    %c0_i32_2 = arith.constant 0 : i32
    return %c0_i32, %c0_i32_0, %c0_i32_1 : i32, i32, i32
  }
  func.func @transform_3(%arg0: i32) -> (i32, i32, i32) {
    %c0_i32 = arith.constant 0 : i32
    %c0_i32_0 = arith.constant 0 : i32
    %c0_i32_1 = arith.constant 0 : i32
    return %arg0, %c0_i32, %c0_i32_0 : i32, i32, i32
  }
}

module attributes {stable_mosaic.version = 11 : i64} {
  func.func @_post_attn_kernel(%arg0: i32, %arg1: memref<16x128xbf16, #tpu.memory_space<vmem>>, %arg2: memref<16x128xbf16, #tpu.memory_space<vmem>>, %arg3: memref<1x128xf32, #tpu.memory_space<vmem>>, %arg4: memref<128x256xbf16, #tpu.memory_space<vmem>>, %arg5: memref<1x256xf32, #tpu.memory_space<vmem>>, %arg6: memref<256x128xbf16, #tpu.memory_space<vmem>>, %arg7: memref<1x128xf32, #tpu.memory_space<vmem>>, %arg8: memref<1x128xf32, #tpu.memory_space<vmem>>, %arg9: memref<1x128xf32, #tpu.memory_space<vmem>>, %arg10: memref<1x128xf32, #tpu.memory_space<vmem>>, %arg11: memref<1x128xf32, #tpu.memory_space<vmem>>, %arg12: memref<16x128xbf16, #tpu.memory_space<vmem>>) attributes {dimension_semantics = [#tpu.dimension_semantics<parallel>], iteration_bounds = array<i64: 1>, scalar_prefetch = 0 : i64, scratch_operands = 0 : i64, tpu.core_type = #tpu.core_type<tc>, window_params = [{transform_indices = @transform_0, window_bounds = array<i64: 16, 128>}, {transform_indices = @transform_1, window_bounds = array<i64: 16, 128>}, {pipeline_mode = #tpu.pipeline_mode<synchronous>, transform_indices = @transform_2, window_bounds = array<i64: 1, 128>}, {pipeline_mode = #tpu.pipeline_mode<synchronous>, transform_indices = @transform_3, window_bounds = array<i64: 128, 256>}, {pipeline_mode = #tpu.pipeline_mode<synchronous>, transform_indices = @transform_4, window_bounds = array<i64: 1, 256>}, {pipeline_mode = #tpu.pipeline_mode<synchronous>, transform_indices = @transform_5, window_bounds = array<i64: 256, 128>}, {pipeline_mode = #tpu.pipeline_mode<synchronous>, transform_indices = @transform_6, window_bounds = array<i64: 1, 128>}, {pipeline_mode = #tpu.pipeline_mode<synchronous>, transform_indices = @transform_7, window_bounds = array<i64: 1, 128>}, {pipeline_mode = #tpu.pipeline_mode<synchronous>, transform_indices = @transform_8, window_bounds = array<i64: 1, 128>}, {pipeline_mode = #tpu.pipeline_mode<synchronous>, transform_indices = @transform_9, window_bounds = array<i64: 1, 128>}, {pipeline_mode = #tpu.pipeline_mode<synchronous>, transform_indices = @transform_10, window_bounds = array<i64: 1, 128>}, {transform_indices = @transform_11, window_bounds = array<i64: 16, 128>}]} {
    %c0 = arith.constant 0 : index
    %c0_0 = arith.constant 0 : index
    %0 = vector.load %arg1[%c0, %c0_0] : memref<16x128xbf16, #tpu.memory_space<vmem>>, vector<16x128xbf16>
    %1 = arith.extf %0 : vector<16x128xbf16> to vector<16x128xf32>
    %c0_1 = arith.constant 0 : index
    %c0_2 = arith.constant 0 : index
    %2 = vector.load %arg2[%c0_1, %c0_2] : memref<16x128xbf16, #tpu.memory_space<vmem>>, vector<16x128xbf16>
    %3 = arith.extf %2 : vector<16x128xbf16> to vector<16x128xf32>
    %c0_3 = arith.constant 0 : index
    %c0_4 = arith.constant 0 : index
    %4 = vector.load %arg3[%c0_3, %c0_4] : memref<1x128xf32, #tpu.memory_space<vmem>>, vector<1x128xf32>
    %5 = vector.broadcast %4 : vector<1x128xf32> to vector<16x128xf32>
    %6 = arith.addf %3, %5 : vector<16x128xf32>
    %7 = arith.addf %1, %6 : vector<16x128xf32>
    %c0_5 = arith.constant 0 : index
    %c0_6 = arith.constant 0 : index
    %8 = vector.load %arg8[%c0_5, %c0_6] : memref<1x128xf32, #tpu.memory_space<vmem>>, vector<1x128xf32>
    %c0_7 = arith.constant 0 : index
    %c0_8 = arith.constant 0 : index
    %9 = vector.load %arg9[%c0_7, %c0_8] : memref<1x128xf32, #tpu.memory_space<vmem>>, vector<1x128xf32>
    %cst = arith.constant dense<0.000000e+00> : vector<16xf32>
    %10 = vector.multi_reduction <add>, %7, %cst [1] : vector<16x128xf32> to vector<16xf32>
    %11 = vector.shape_cast %10 : vector<16xf32> to vector<16x1xf32>
    %cst_9 = arith.constant 1.280000e+02 : f32
    %12 = vector.broadcast %cst_9 : f32 to vector<16x1xf32>
    %13 = arith.divf %11, %12 : vector<16x1xf32>
    %14 = vector.broadcast %13 : vector<16x1xf32> to vector<16x128xf32>
    %15 = arith.subf %7, %14 : vector<16x128xf32>
    %16 = arith.mulf %15, %15 : vector<16x128xf32>
    %cst_10 = arith.constant dense<0.000000e+00> : vector<16xf32>
    %17 = vector.multi_reduction <add>, %16, %cst_10 [1] : vector<16x128xf32> to vector<16xf32>
    %18 = vector.shape_cast %17 : vector<16xf32> to vector<16x1xf32>
    %cst_11 = arith.constant 1.280000e+02 : f32
    %19 = vector.broadcast %cst_11 : f32 to vector<16x1xf32>
    %20 = arith.divf %18, %19 : vector<16x1xf32>
    %21 = vector.broadcast %13 : vector<16x1xf32> to vector<16x128xf32>
    %22 = arith.subf %7, %21 : vector<16x128xf32>
    %cst_12 = arith.constant 9.99999974E-6 : f32
    %23 = vector.broadcast %cst_12 : f32 to vector<16x1xf32>
    %24 = arith.addf %20, %23 : vector<16x1xf32>
    %25 = math.rsqrt %24 : vector<16x1xf32>
    %26 = vector.broadcast %25 : vector<16x1xf32> to vector<16x128xf32>
    %27 = arith.mulf %22, %26 : vector<16x128xf32>
    %28 = vector.broadcast %8 : vector<1x128xf32> to vector<16x128xf32>
    %29 = arith.mulf %27, %28 : vector<16x128xf32>
    %30 = vector.broadcast %9 : vector<1x128xf32> to vector<16x128xf32>
    %31 = arith.addf %29, %30 : vector<16x128xf32>
    %32 = arith.truncf %31 : vector<16x128xf32> to vector<16x128xbf16>
    %c0_13 = arith.constant 0 : index
    %c0_14 = arith.constant 0 : index
    %33 = vector.load %arg4[%c0_13, %c0_14] : memref<128x256xbf16, #tpu.memory_space<vmem>>, vector<128x256xbf16>
    %cst_15 = arith.constant dense<0.000000e+00> : vector<16x256xf32>
    %34 = tpu.matmul %32, %33, %cst_15 {dimension_numbers = #tpu.dot_dimension_numbers<[1], [0], [0], [1], [0, 0, 1, 1], [], []>} : vector<16x128xbf16>, vector<128x256xbf16>, vector<16x256xf32> -> vector<16x256xf32>
    %c0_16 = arith.constant 0 : index
    %c0_17 = arith.constant 0 : index
    %35 = vector.load %arg5[%c0_16, %c0_17] : memref<1x256xf32, #tpu.memory_space<vmem>>, vector<1x256xf32>
    %36 = vector.broadcast %35 : vector<1x256xf32> to vector<16x256xf32>
    %37 = arith.addf %34, %36 : vector<16x256xf32>
    %cst_18 = arith.constant 0.000000e+00 : f32
    %38 = vector.broadcast %cst_18 : f32 to vector<16x256xf32>
    %39 = arith.maximumf %37, %38 : vector<16x256xf32>
    %40 = arith.truncf %39 : vector<16x256xf32> to vector<16x256xbf16>
    %c0_19 = arith.constant 0 : index
    %c0_20 = arith.constant 0 : index
    %41 = vector.load %arg6[%c0_19, %c0_20] : memref<256x128xbf16, #tpu.memory_space<vmem>>, vector<256x128xbf16>
    %cst_21 = arith.constant dense<0.000000e+00> : vector<16x128xf32>
    %42 = tpu.matmul %40, %41, %cst_21 {dimension_numbers = #tpu.dot_dimension_numbers<[1], [0], [0], [1], [0, 0, 1, 1], [], []>} : vector<16x256xbf16>, vector<256x128xbf16>, vector<16x128xf32> -> vector<16x128xf32>
    %c0_22 = arith.constant 0 : index
    %c0_23 = arith.constant 0 : index
    %43 = vector.load %arg7[%c0_22, %c0_23] : memref<1x128xf32, #tpu.memory_space<vmem>>, vector<1x128xf32>
    %44 = vector.broadcast %43 : vector<1x128xf32> to vector<16x128xf32>
    %45 = arith.addf %42, %44 : vector<16x128xf32>
    %46 = arith.addf %31, %45 : vector<16x128xf32>
    %c0_24 = arith.constant 0 : index
    %c0_25 = arith.constant 0 : index
    %47 = vector.load %arg10[%c0_24, %c0_25] : memref<1x128xf32, #tpu.memory_space<vmem>>, vector<1x128xf32>
    %c0_26 = arith.constant 0 : index
    %c0_27 = arith.constant 0 : index
    %48 = vector.load %arg11[%c0_26, %c0_27] : memref<1x128xf32, #tpu.memory_space<vmem>>, vector<1x128xf32>
    %cst_28 = arith.constant dense<0.000000e+00> : vector<16xf32>
    %49 = vector.multi_reduction <add>, %46, %cst_28 [1] : vector<16x128xf32> to vector<16xf32>
    %50 = vector.shape_cast %49 : vector<16xf32> to vector<16x1xf32>
    %cst_29 = arith.constant 1.280000e+02 : f32
    %51 = vector.broadcast %cst_29 : f32 to vector<16x1xf32>
    %52 = arith.divf %50, %51 : vector<16x1xf32>
    %53 = vector.broadcast %52 : vector<16x1xf32> to vector<16x128xf32>
    %54 = arith.subf %46, %53 : vector<16x128xf32>
    %55 = arith.mulf %54, %54 : vector<16x128xf32>
    %cst_30 = arith.constant dense<0.000000e+00> : vector<16xf32>
    %56 = vector.multi_reduction <add>, %55, %cst_30 [1] : vector<16x128xf32> to vector<16xf32>
    %57 = vector.shape_cast %56 : vector<16xf32> to vector<16x1xf32>
    %cst_31 = arith.constant 1.280000e+02 : f32
    %58 = vector.broadcast %cst_31 : f32 to vector<16x1xf32>
    %59 = arith.divf %57, %58 : vector<16x1xf32>
    %60 = vector.broadcast %52 : vector<16x1xf32> to vector<16x128xf32>
    %61 = arith.subf %46, %60 : vector<16x128xf32>
    %cst_32 = arith.constant 9.99999974E-6 : f32
    %62 = vector.broadcast %cst_32 : f32 to vector<16x1xf32>
    %63 = arith.addf %59, %62 : vector<16x1xf32>
    %64 = math.rsqrt %63 : vector<16x1xf32>
    %65 = vector.broadcast %64 : vector<16x1xf32> to vector<16x128xf32>
    %66 = arith.mulf %61, %65 : vector<16x128xf32>
    %67 = vector.broadcast %47 : vector<1x128xf32> to vector<16x128xf32>
    %68 = arith.mulf %66, %67 : vector<16x128xf32>
    %69 = vector.broadcast %48 : vector<1x128xf32> to vector<16x128xf32>
    %70 = arith.addf %68, %69 : vector<16x128xf32>
    %71 = arith.truncf %70 : vector<16x128xf32> to vector<16x128xbf16>
    %c0_33 = arith.constant 0 : index
    %c0_34 = arith.constant 0 : index
    %72 = vector.load %arg12[%c0_33, %c0_34] : memref<16x128xbf16, #tpu.memory_space<vmem>>, vector<16x128xbf16>
    tpu.vector_store %arg12[%c0_33, %c0_34], %71 {strides = array<i32>} : memref<16x128xbf16, #tpu.memory_space<vmem>>, vector<16x128xbf16>,
    return
  }
  func.func @transform_0(%arg0: i32) -> (i32, i32) {
    %c0_i32 = arith.constant 0 : i32
    %c0_i32_0 = arith.constant 0 : i32
    return %arg0, %c0_i32 : i32, i32
  }
  func.func @transform_1(%arg0: i32) -> (i32, i32) {
    %c0_i32 = arith.constant 0 : i32
    %c0_i32_0 = arith.constant 0 : i32
    return %arg0, %c0_i32 : i32, i32
  }
  func.func @transform_2(%arg0: i32) -> (i32, i32) {
    %c0_i32 = arith.constant 0 : i32
    %c0_i32_0 = arith.constant 0 : i32
    %c0_i32_1 = arith.constant 0 : i32
    return %c0_i32, %c0_i32_0 : i32, i32
  }
  func.func @transform_3(%arg0: i32) -> (i32, i32) {
    %c0_i32 = arith.constant 0 : i32
    %c0_i32_0 = arith.constant 0 : i32
    %c0_i32_1 = arith.constant 0 : i32
    return %c0_i32, %c0_i32_0 : i32, i32
  }
  func.func @transform_4(%arg0: i32) -> (i32, i32) {
    %c0_i32 = arith.constant 0 : i32
    %c0_i32_0 = arith.constant 0 : i32
    %c0_i32_1 = arith.constant 0 : i32
    return %c0_i32, %c0_i32_0 : i32, i32
  }
  func.func @transform_5(%arg0: i32) -> (i32, i32) {
    %c0_i32 = arith.constant 0 : i32
    %c0_i32_0 = arith.constant 0 : i32
    %c0_i32_1 = arith.constant 0 : i32
    return %c0_i32, %c0_i32_0 : i32, i32
  }
  func.func @transform_6(%arg0: i32) -> (i32, i32) {
    %c0_i32 = arith.constant 0 : i32
    %c0_i32_0 = arith.constant 0 : i32
    %c0_i32_1 = arith.constant 0 : i32
    return %c0_i32, %c0_i32_0 : i32, i32
  }
  func.func @transform_7(%arg0: i32) -> (i32, i32) {
    %c0_i32 = arith.constant 0 : i32
    %c0_i32_0 = arith.constant 0 : i32
    %c0_i32_1 = arith.constant 0 : i32
    return %c0_i32, %c0_i32_0 : i32, i32
  }
  func.func @transform_8(%arg0: i32) -> (i32, i32) {
    %c0_i32 = arith.constant 0 : i32
    %c0_i32_0 = arith.constant 0 : i32
    %c0_i32_1 = arith.constant 0 : i32
    return %c0_i32, %c0_i32_0 : i32, i32
  }
  func.func @transform_9(%arg0: i32) -> (i32, i32) {
    %c0_i32 = arith.constant 0 : i32
    %c0_i32_0 = arith.constant 0 : i32
    %c0_i32_1 = arith.constant 0 : i32
    return %c0_i32, %c0_i32_0 : i32, i32
  }
  func.func @transform_10(%arg0: i32) -> (i32, i32) {
    %c0_i32 = arith.constant 0 : i32
    %c0_i32_0 = arith.constant 0 : i32
    %c0_i32_1 = arith.constant 0 : i32
    return %c0_i32, %c0_i32_0 : i32, i32
  }
  func.func @transform_11(%arg0: i32) -> (i32, i32) {
    %c0_i32 = arith.constant 0 : i32
    %c0_i32_0 = arith.constant 0 : i32
    return %arg0, %c0_i32 : i32, i32
  }
}

module attributes {stable_mosaic.version = 11 : i64} {
  func.func @_outfc_logsoftmax_kernel(%arg0: i32, %arg1: memref<36x128xbf16, #tpu.memory_space<vmem>>, %arg2: memref<128x128xbf16, #tpu.memory_space<vmem>>, %arg3: memref<1x128xf32, #tpu.memory_space<vmem>>, %arg4: memref<36x128xf32, #tpu.memory_space<vmem>>) attributes {dimension_semantics = [#tpu.dimension_semantics<parallel>], iteration_bounds = array<i64: 1>, scalar_prefetch = 0 : i64, scratch_operands = 0 : i64, tpu.core_type = #tpu.core_type<tc>, window_params = [{transform_indices = @transform_0, window_bounds = array<i64: 36, 128>}, {pipeline_mode = #tpu.pipeline_mode<synchronous>, transform_indices = @transform_1, window_bounds = array<i64: 128, 128>}, {pipeline_mode = #tpu.pipeline_mode<synchronous>, transform_indices = @transform_2, window_bounds = array<i64: 1, 128>}, {transform_indices = @transform_3, window_bounds = array<i64: 36, 128>}]} {
    %c0 = arith.constant 0 : index
    %c0_0 = arith.constant 0 : index
    %0 = vector.load %arg1[%c0, %c0_0] : memref<36x128xbf16, #tpu.memory_space<vmem>>, vector<36x128xbf16>
    %c0_1 = arith.constant 0 : index
    %c0_2 = arith.constant 0 : index
    %1 = vector.load %arg2[%c0_1, %c0_2] : memref<128x128xbf16, #tpu.memory_space<vmem>>, vector<128x128xbf16>
    %cst = arith.constant dense<0.000000e+00> : vector<36x128xf32>
    %2 = tpu.matmul %0, %1, %cst {dimension_numbers = #tpu.dot_dimension_numbers<[1], [0], [0], [1], [0, 0, 1, 1], [], []>} : vector<36x128xbf16>, vector<128x128xbf16>, vector<36x128xf32> -> vector<36x128xf32>
    %c0_3 = arith.constant 0 : index
    %c0_4 = arith.constant 0 : index
    %3 = vector.load %arg3[%c0_3, %c0_4] : memref<1x128xf32, #tpu.memory_space<vmem>>, vector<1x128xf32>
    %4 = vector.broadcast %3 : vector<1x128xf32> to vector<36x128xf32>
    %5 = arith.addf %2, %4 : vector<36x128xf32>
    %6 = vector.extract_strided_slice %5 {offsets = [0, 0], sizes = [36, 16], strides = [1, 1]} : vector<36x128xf32> to vector<36x16xf32>
    %cst_5 = arith.constant dense<0xFF800000> : vector<36xf32>
    %7 = vector.multi_reduction <maximumf>, %6, %cst_5 [1] : vector<36x16xf32> to vector<36xf32>
    %8 = vector.shape_cast %7 : vector<36xf32> to vector<36x1xf32>
    %9 = vector.broadcast %8 : vector<36x1xf32> to vector<36x16xf32>
    %10 = arith.subf %6, %9 : vector<36x16xf32>
    %11 = math.exp %10 : vector<36x16xf32>
    %cst_6 = arith.constant dense<0.000000e+00> : vector<36xf32>
    %12 = vector.multi_reduction <add>, %11, %cst_6 [1] : vector<36x16xf32> to vector<36xf32>
    %13 = vector.shape_cast %12 : vector<36xf32> to vector<36x1xf32>
    %14 = math.log %13 : vector<36x1xf32>
    %15 = arith.addf %8, %14 : vector<36x1xf32>
    %16 = vector.broadcast %15 : vector<36x1xf32> to vector<36x16xf32>
    %17 = arith.subf %6, %16 : vector<36x16xf32>
    %c0_7 = arith.constant 0 : index
    %c0_8 = arith.constant 0 : index
    %18 = vector.load %arg4[%c0_7, %c0_8] : memref<36x128xf32, #tpu.memory_space<vmem>>, vector<36x16xf32>
    tpu.vector_store %arg4[%c0_7, %c0_8], %17 {strides = array<i32>} : memref<36x128xf32, #tpu.memory_space<vmem>>, vector<36x16xf32>,
    %19 = vector.extract_strided_slice %5 {offsets = [0, 16], sizes = [36, 16], strides = [1, 1]} : vector<36x128xf32> to vector<36x16xf32>
    %cst_9 = arith.constant dense<0xFF800000> : vector<36xf32>
    %20 = vector.multi_reduction <maximumf>, %19, %cst_9 [1] : vector<36x16xf32> to vector<36xf32>
    %21 = vector.shape_cast %20 : vector<36xf32> to vector<36x1xf32>
    %22 = vector.broadcast %21 : vector<36x1xf32> to vector<36x16xf32>
    %23 = arith.subf %19, %22 : vector<36x16xf32>
    %24 = math.exp %23 : vector<36x16xf32>
    %cst_10 = arith.constant dense<0.000000e+00> : vector<36xf32>
    %25 = vector.multi_reduction <add>, %24, %cst_10 [1] : vector<36x16xf32> to vector<36xf32>
    %26 = vector.shape_cast %25 : vector<36xf32> to vector<36x1xf32>
    %27 = math.log %26 : vector<36x1xf32>
    %28 = arith.addf %21, %27 : vector<36x1xf32>
    %29 = vector.broadcast %28 : vector<36x1xf32> to vector<36x16xf32>
    %30 = arith.subf %19, %29 : vector<36x16xf32>
    %c0_11 = arith.constant 0 : index
    %c16 = arith.constant 16 : index
    %31 = vector.load %arg4[%c0_11, %c16] : memref<36x128xf32, #tpu.memory_space<vmem>>, vector<36x16xf32>
    tpu.vector_store %arg4[%c0_11, %c16], %30 {strides = array<i32>} : memref<36x128xf32, #tpu.memory_space<vmem>>, vector<36x16xf32>,
    %32 = vector.extract_strided_slice %5 {offsets = [0, 32], sizes = [36, 16], strides = [1, 1]} : vector<36x128xf32> to vector<36x16xf32>
    %cst_12 = arith.constant dense<0xFF800000> : vector<36xf32>
    %33 = vector.multi_reduction <maximumf>, %32, %cst_12 [1] : vector<36x16xf32> to vector<36xf32>
    %34 = vector.shape_cast %33 : vector<36xf32> to vector<36x1xf32>
    %35 = vector.broadcast %34 : vector<36x1xf32> to vector<36x16xf32>
    %36 = arith.subf %32, %35 : vector<36x16xf32>
    %37 = math.exp %36 : vector<36x16xf32>
    %cst_13 = arith.constant dense<0.000000e+00> : vector<36xf32>
    %38 = vector.multi_reduction <add>, %37, %cst_13 [1] : vector<36x16xf32> to vector<36xf32>
    %39 = vector.shape_cast %38 : vector<36xf32> to vector<36x1xf32>
    %40 = math.log %39 : vector<36x1xf32>
    %41 = arith.addf %34, %40 : vector<36x1xf32>
    %42 = vector.broadcast %41 : vector<36x1xf32> to vector<36x16xf32>
    %43 = arith.subf %32, %42 : vector<36x16xf32>
    %c0_14 = arith.constant 0 : index
    %c32 = arith.constant 32 : index
    %44 = vector.load %arg4[%c0_14, %c32] : memref<36x128xf32, #tpu.memory_space<vmem>>, vector<36x16xf32>
    tpu.vector_store %arg4[%c0_14, %c32], %43 {strides = array<i32>} : memref<36x128xf32, #tpu.memory_space<vmem>>, vector<36x16xf32>,
    %45 = vector.extract_strided_slice %5 {offsets = [0, 48], sizes = [36, 16], strides = [1, 1]} : vector<36x128xf32> to vector<36x16xf32>
    %cst_15 = arith.constant dense<0xFF800000> : vector<36xf32>
    %46 = vector.multi_reduction <maximumf>, %45, %cst_15 [1] : vector<36x16xf32> to vector<36xf32>
    %47 = vector.shape_cast %46 : vector<36xf32> to vector<36x1xf32>
    %48 = vector.broadcast %47 : vector<36x1xf32> to vector<36x16xf32>
    %49 = arith.subf %45, %48 : vector<36x16xf32>
    %50 = math.exp %49 : vector<36x16xf32>
    %cst_16 = arith.constant dense<0.000000e+00> : vector<36xf32>
    %51 = vector.multi_reduction <add>, %50, %cst_16 [1] : vector<36x16xf32> to vector<36xf32>
    %52 = vector.shape_cast %51 : vector<36xf32> to vector<36x1xf32>
    %53 = math.log %52 : vector<36x1xf32>
    %54 = arith.addf %47, %53 : vector<36x1xf32>
    %55 = vector.broadcast %54 : vector<36x1xf32> to vector<36x16xf32>
    %56 = arith.subf %45, %55 : vector<36x16xf32>
    %c0_17 = arith.constant 0 : index
    %c48 = arith.constant 48 : index
    %57 = vector.load %arg4[%c0_17, %c48] : memref<36x128xf32, #tpu.memory_space<vmem>>, vector<36x16xf32>
    tpu.vector_store %arg4[%c0_17, %c48], %56 {strides = array<i32>} : memref<36x128xf32, #tpu.memory_space<vmem>>, vector<36x16xf32>,
    %58 = vector.extract_strided_slice %5 {offsets = [0, 64], sizes = [36, 16], strides = [1, 1]} : vector<36x128xf32> to vector<36x16xf32>
    %cst_18 = arith.constant dense<0xFF800000> : vector<36xf32>
    %59 = vector.multi_reduction <maximumf>, %58, %cst_18 [1] : vector<36x16xf32> to vector<36xf32>
    %60 = vector.shape_cast %59 : vector<36xf32> to vector<36x1xf32>
    %61 = vector.broadcast %60 : vector<36x1xf32> to vector<36x16xf32>
    %62 = arith.subf %58, %61 : vector<36x16xf32>
    %63 = math.exp %62 : vector<36x16xf32>
    %cst_19 = arith.constant dense<0.000000e+00> : vector<36xf32>
    %64 = vector.multi_reduction <add>, %63, %cst_19 [1] : vector<36x16xf32> to vector<36xf32>
    %65 = vector.shape_cast %64 : vector<36xf32> to vector<36x1xf32>
    %66 = math.log %65 : vector<36x1xf32>
    %67 = arith.addf %60, %66 : vector<36x1xf32>
    %68 = vector.broadcast %67 : vector<36x1xf32> to vector<36x16xf32>
    %69 = arith.subf %58, %68 : vector<36x16xf32>
    %c0_20 = arith.constant 0 : index
    %c64 = arith.constant 64 : index
    %70 = vector.load %arg4[%c0_20, %c64] : memref<36x128xf32, #tpu.memory_space<vmem>>, vector<36x16xf32>
    tpu.vector_store %arg4[%c0_20, %c64], %69 {strides = array<i32>} : memref<36x128xf32, #tpu.memory_space<vmem>>, vector<36x16xf32>,
    %71 = vector.extract_strided_slice %5 {offsets = [0, 80], sizes = [36, 16], strides = [1, 1]} : vector<36x128xf32> to vector<36x16xf32>
    %cst_21 = arith.constant dense<0xFF800000> : vector<36xf32>
    %72 = vector.multi_reduction <maximumf>, %71, %cst_21 [1] : vector<36x16xf32> to vector<36xf32>
    %73 = vector.shape_cast %72 : vector<36xf32> to vector<36x1xf32>
    %74 = vector.broadcast %73 : vector<36x1xf32> to vector<36x16xf32>
    %75 = arith.subf %71, %74 : vector<36x16xf32>
    %76 = math.exp %75 : vector<36x16xf32>
    %cst_22 = arith.constant dense<0.000000e+00> : vector<36xf32>
    %77 = vector.multi_reduction <add>, %76, %cst_22 [1] : vector<36x16xf32> to vector<36xf32>
    %78 = vector.shape_cast %77 : vector<36xf32> to vector<36x1xf32>
    %79 = math.log %78 : vector<36x1xf32>
    %80 = arith.addf %73, %79 : vector<36x1xf32>
    %81 = vector.broadcast %80 : vector<36x1xf32> to vector<36x16xf32>
    %82 = arith.subf %71, %81 : vector<36x16xf32>
    %c0_23 = arith.constant 0 : index
    %c80 = arith.constant 80 : index
    %83 = vector.load %arg4[%c0_23, %c80] : memref<36x128xf32, #tpu.memory_space<vmem>>, vector<36x16xf32>
    tpu.vector_store %arg4[%c0_23, %c80], %82 {strides = array<i32>} : memref<36x128xf32, #tpu.memory_space<vmem>>, vector<36x16xf32>,
    %84 = vector.extract_strided_slice %5 {offsets = [0, 96], sizes = [36, 32], strides = [1, 1]} : vector<36x128xf32> to vector<36x32xf32>
    %c0_24 = arith.constant 0 : index
    %c96 = arith.constant 96 : index
    %85 = vector.load %arg4[%c0_24, %c96] : memref<36x128xf32, #tpu.memory_space<vmem>>, vector<36x32xf32>
    tpu.vector_store %arg4[%c0_24, %c96], %84 {strides = array<i32>} : memref<36x128xf32, #tpu.memory_space<vmem>>, vector<36x32xf32>,
    return
  }
  func.func @transform_0(%arg0: i32) -> (i32, i32) {
    %c0_i32 = arith.constant 0 : i32
    %c0_i32_0 = arith.constant 0 : i32
    return %arg0, %c0_i32 : i32, i32
  }
  func.func @transform_1(%arg0: i32) -> (i32, i32) {
    %c0_i32 = arith.constant 0 : i32
    %c0_i32_0 = arith.constant 0 : i32
    %c0_i32_1 = arith.constant 0 : i32
    return %c0_i32, %c0_i32_0 : i32, i32
  }
  func.func @transform_2(%arg0: i32) -> (i32, i32) {
    %c0_i32 = arith.constant 0 : i32
    %c0_i32_0 = arith.constant 0 : i32
    %c0_i32_1 = arith.constant 0 : i32
    return %c0_i32, %c0_i32_0 : i32, i32
  }
  func.func @transform_3(%arg0: i32) -> (i32, i32) {
    %c0_i32 = arith.constant 0 : i32
    %c0_i32_0 = arith.constant 0 : i32
    return %arg0, %c0_i32 : i32, i32
  }
}

</mosaic_0001>

<llo_original>
// kernel: forward.6
$region0: #{forward.6}
  #allocation0 [shape = 'u32[]', space=smem, size = 0x4, offset = 0x4, fixed_abs, tag = 'smem constant byte address 0x4 - core index']
  #allocation1 [shape = 'u32[144,128]{1,0:T(1,128)}', space=vmem, size = 0x12000, scoped, tag = 'internal scratch']
  %s0 = inlined_call_operand.vmem [shape: bf16[1,16,256], index: 0, kind: input, shape index: {}]
  %s1 = inlined_call_operand.vmem [shape: bf16[1,256,128], index: 1, kind: input, shape index: {}]
  %s2 = inlined_call_operand.vmem [shape: f32[1,1,128], index: 2, kind: input, shape index: {}]
  %s3 = inlined_call_operand.vmem [shape: bf16[1,16,128], index: 3, kind: output, shape index: {}]
  %s4 = sld [smem:[#allocation0]]
  $region22: #{forward.6} parent=0
    _
  %s6 = ssub.s32 1, %s4
  %s7 = scalar_select 0, %s6, %s4
  // Predicated region
  $region2: #{forward.6} parent=0 // pred_check
    _
  $region3: #{forward.6} parent=0 // pred_check_branch
    %9 = sbr.rel (0) target = $region5
  $region4: #{forward.6} parent=0 // pred_region
    _
  $region5: #{forward.6} parent=0 // pred_fallthru
    _
  // Predicated region
  $region6: #{forward.6} parent=0 // pred_check
    _
  $region7: #{forward.6} parent=0 // pred_check_branch
    %11 = sbr.rel (0) target = $region9
  $region8: #{forward.6} parent=0 // pred_region
    _
  $region9: #{forward.6} parent=0 // pred_fallthru
    _
  // Predicated region
  $region10: #{forward.6} parent=0 // pred_check
    _
  $region11: #{forward.6} parent=0 // pred_check_branch
    %13 = sbr.rel (0) target = $region13
  $region12: #{forward.6} parent=0 // pred_region
    _
  $region13: #{forward.6} parent=0 // pred_fallthru
    _
  %v15 = vld [vmem:[%s0] sm:$0xff]
  %v16 = vld [vmem:[%s0 + $0x8] sm:$0xff]
  %v17 = vld [vmem:[%s1] sm:$0xf]
  %v18 = vld [vmem:[%s1 + $0x4] sm:$0xf]
  %v19 = vld [vmem:[%s1 + $0x8] sm:$0xf]
  %v20 = vld [vmem:[%s1 + $0xc] sm:$0xf]
  %v21 = vld [vmem:[%s1 + $0x10] sm:$0xf]
  %v22 = vld [vmem:[%s1 + $0x14] sm:$0xf]
  %v23 = vld [vmem:[%s1 + $0x18] sm:$0xf]
  %v24 = vld [vmem:[%s1 + $0x1c] sm:$0xf]
  %v25 = vld [vmem:[%s1 + $0x20] sm:$0xf]
  %v26 = vld [vmem:[%s1 + $0x24] sm:$0xf]
  %v27 = vld [vmem:[%s1 + $0x28] sm:$0xf]
  %v28 = vld [vmem:[%s1 + $0x2c] sm:$0xf]
  %v29 = vld [vmem:[%s1 + $0x30] sm:$0xf]
  %v30 = vld [vmem:[%s1 + $0x34] sm:$0xf]
  %v31 = vld [vmem:[%s1 + $0x38] sm:$0xf]
  %v32 = vld [vmem:[%s1 + $0x3c] sm:$0xf]
  %v33 = vld [vmem:[%s1 + $0x40] sm:$0xf]
  %v34 = vld [vmem:[%s1 + $0x44] sm:$0xf]
  %v35 = vld [vmem:[%s1 + $0x48] sm:$0xf]
  %v36 = vld [vmem:[%s1 + $0x4c] sm:$0xf]
  %v37 = vld [vmem:[%s1 + $0x50] sm:$0xf]
  %v38 = vld [vmem:[%s1 + $0x54] sm:$0xf]
  %v39 = vld [vmem:[%s1 + $0x58] sm:$0xf]
  %v40 = vld [vmem:[%s1 + $0x5c] sm:$0xf]
  %v41 = vld [vmem:[%s1 + $0x60] sm:$0xf]
  %v42 = vld [vmem:[%s1 + $0x64] sm:$0xf]
  %v43 = vld [vmem:[%s1 + $0x68] sm:$0xf]
  %v44 = vld [vmem:[%s1 + $0x6c] sm:$0xf]
  %v45 = vld [vmem:[%s1 + $0x70] sm:$0xf]
  %v46 = vld [vmem:[%s1 + $0x74] sm:$0xf]
  %v47 = vld [vmem:[%s1 + $0x78] sm:$0xf]
  %v48 = vld [vmem:[%s1 + $0x7c] sm:$0xf]
  %v49 = vld [vmem:[%s2] sm:$0x1]
  %v51 = vlaneseq
  %v52 = vshrl.u32 %v51, 7
  %v53 = vsub.s32 0, %v52
  %v54 = vrot.slane %v49, %v53
  %v58 = vunpack.c.l.b16 %v15
  %v59 = vunpack.c.h.b16 %v15
  %v60 = vunpack.c.l.b16 %v16
  %v61 = vunpack.c.h.b16 %v16
  %v62 = vpack.c.b16 %v60, %v58
  %v63 = vpack.c.b16 %v61, %v59
  %v98 = vunpack.c.l.b16 %v17
  %v99 = vunpack.c.l.b16 %v18
  %v100 = vunpack.c.l.b16 %v19
  %v101 = vunpack.c.l.b16 %v20
  %v102 = vunpack.c.l.b16 %v21
  %v103 = vunpack.c.l.b16 %v22
  %v104 = vunpack.c.l.b16 %v23
  %v105 = vunpack.c.l.b16 %v24
  %v106 = vunpack.c.l.b16 %v25
  %v107 = vunpack.c.l.b16 %v26
  %v108 = vunpack.c.l.b16 %v27
  %v109 = vunpack.c.l.b16 %v28
  %v110 = vunpack.c.l.b16 %v29
  %v111 = vunpack.c.l.b16 %v30
  %v112 = vunpack.c.l.b16 %v31
  %v113 = vunpack.c.l.b16 %v32
  %v114 = vunpack.c.l.b16 %v33
  %v115 = vunpack.c.l.b16 %v34
  %v116 = vunpack.c.l.b16 %v35
  %v117 = vunpack.c.l.b16 %v36
  %v118 = vunpack.c.l.b16 %v37
  %v119 = vunpack.c.l.b16 %v38
  %v120 = vunpack.c.l.b16 %v39
  %v121 = vunpack.c.l.b16 %v40
  %v122 = vunpack.c.l.b16 %v41
  %v123 = vunpack.c.l.b16 %v42
  %v124 = vunpack.c.l.b16 %v43
  %v125 = vunpack.c.l.b16 %v44
  %v126 = vunpack.c.l.b16 %v45
  %v127 = vunpack.c.l.b16 %v46
  %v128 = vunpack.c.l.b16 %v47
  %v129 = vunpack.c.l.b16 %v48
  %v130 = vpack.c.b16 %v99, %v98
  %v131 = vpack.c.b16 %v101, %v100
  %v132 = vpack.c.b16 %v103, %v102
  %v133 = vpack.c.b16 %v105, %v104
  %v134 = vpack.c.b16 %v107, %v106
  %v135 = vpack.c.b16 %v109, %v108
  %v136 = vpack.c.b16 %v111, %v110
  %v137 = vpack.c.b16 %v113, %v112
  %v138 = vpack.c.b16 %v115, %v114
  %v139 = vpack.c.b16 %v117, %v116
  %v140 = vpack.c.b16 %v119, %v118
  %v141 = vpack.c.b16 %v121, %v120
  %v142 = vpack.c.b16 %v123, %v122
  %v143 = vpack.c.b16 %v125, %v124
  %v144 = vpack.c.b16 %v127, %v126
  %v145 = vpack.c.b16 %v129, %v128
  %162 = vmatprep.subr.bf16.mxu0 0
  %163 = vmatpush1.bf16.msra.mxu0 %v137
  %164 = vmatprep.subr.bf16.mxu0 0
  %165 = vmatpush1.bf16.msra.mxu0 %v136
  %166 = vmatprep.subr.bf16.mxu0 0
  %167 = vmatpush1.bf16.msra.mxu0 %v135
  %168 = vmatprep.subr.bf16.mxu0 0
  %169 = vmatpush1.bf16.msra.mxu0 %v134
  %170 = vmatprep.subr.bf16.mxu0 0
  %171 = vmatpush1.bf16.msra.mxu0 %v133
  %172 = vmatprep.subr.bf16.mxu0 0
  %173 = vmatpush1.bf16.msra.mxu0 %v132
  %174 = vmatprep.subr.bf16.mxu0 0
  %175 = vmatpush1.bf16.msra.mxu0 %v131
  %176 = vmatprep.subr.bf16.mxu0 0
  %177 = vmatpush1.bf16.msra.mxu0 %v130
  %178 = vmatprep.subr.bf16.mxu0 0
  %179 = vmatpush2.bf16.msra.mxu0 %v145
  %180 = vmatprep.subr.bf16.mxu0 0
  %181 = vmatpush2.bf16.msra.mxu0 %v144
  %182 = vmatprep.subr.bf16.mxu0 0
  %183 = vmatpush2.bf16.msra.mxu0 %v143
  %184 = vmatprep.subr.bf16.mxu0 0
  %185 = vmatpush2.bf16.msra.mxu0 %v142
  %186 = vmatprep.subr.bf16.mxu0 0
  %187 = vmatpush2.bf16.msra.mxu0 %v141
  %188 = vmatprep.subr.bf16.mxu0 0
  %189 = vmatpush2.bf16.msra.mxu0 %v140
  %190 = vmatprep.subr.bf16.mxu0 0
  %191 = vmatpush2.bf16.msra.mxu0 %v139
  %192 = vmatprep.subr.bf16.mxu0 0
  %193 = vmatpush2.bf16.msra.mxu0 %v138
  %194 = vmatprep.mubr.bf16.mxu0 %v63
  %195 = vmatmul.mubr.bf16.gmra.mxu0 %v62
  %v196 = vpop.f32.mrf.mxu0
  %v197 = vadd.f32 %v54, %v196
  %v198 = vpop.f32.mrf.mxu0
  %v199 = vpop.f32.mrf.mxu0
  %v200 = vadd.f32 %v54, %v199
  %v201 = vpop.f32.mrf.mxu0
  %202 = vdwg.mxu0
  %v203 = vpack.c.bf16 %v200, %v197
  %v205 = vunpack.c.l.b16 %v203
  %v206 = vunpack.c.h.b16 %v203
  %v207 = vpack.c.b16 %v205, %v205
  %v208 = vpack.c.b16 %v206, %v206
  %211 = vst [vmem:[%s3] sm:$0xf] %v207
  %212 = vst [vmem:[%s3 + $0x4] sm:$0xf] %v208
  // Predicated region
  $region14: #{forward.6} parent=0 // pred_check
    _
  $region15: #{forward.6} parent=0 // pred_check_branch
    %214 = sbr.rel (0) target = $region17
  $region16: #{forward.6} parent=0 // pred_region
    _
  $region17: #{forward.6} parent=0 // pred_fallthru
    _
  // Predicated region
  $region18: #{forward.6} parent=0 // pred_check
    _
  $region19: #{forward.6} parent=0 // pred_check_branch
    %216 = sbr.rel (0) target = $region21
  $region20: #{forward.6} parent=0 // pred_region
    _
  $region21: #{forward.6} parent=0 // pred_fallthru
    _

// kernel: forward.7
$region0: #{forward.7}
  #allocation0 [shape = 'u32[]', space=smem, size = 0x4, offset = 0x4, fixed_abs, tag = 'smem constant byte address 0x4 - core index']
  #allocation1 [shape = 'u32[144,128]{1,0:T(1,128)}', space=vmem, size = 0x12000, scoped, tag = 'internal scratch']
  %s0 = inlined_call_operand.vmem [shape: bf16[10,8,256], index: 0, kind: input, shape index: {}]
  %s1 = inlined_call_operand.vmem [shape: bf16[10,256,128], index: 1, kind: input, shape index: {}]
  %s2 = inlined_call_operand.vmem [shape: f32[10,1,128], index: 2, kind: input, shape index: {}]
  %s3 = inlined_call_operand.vmem [shape: bf16[10,8,128], index: 3, kind: output, shape index: {}]
  %s4 = sld [smem:[#allocation0]]
  $region45: #{forward.7} parent=0
    _
  %s6 = ssub.s32 1, %s4
  %s7 = scalar_select 0, %s6, %s4
  loop: start=0, step=1, limit=12
  $region2: #{forward.7} parent=0 // loop_pre_header
    _
  $region3: #{forward.7} parent=0 // loop_header
    %s9 = sphi 0, %s13
    %p10 = scmp.ge.s32.totalorder %s9, 12
    %s16 = sphi 0, %s28
    %s17 = sphi 0, %s24
    %s18 = sphi 0, %s16
    %s19 = sphi 0, %s17
    %s20 = sphi 0, %s18
    %s21 = sphi 0, %s19
    %s31 = sphi 0, %s33
    %s34 = sphi 0, %s31
    %s35 = sphi 0, %s34
    %s51 = sphi 0, %s35
    %s59 = sphi 0, %s61
    %s62 = sphi 0, %s59
    %s63 = sphi 0, %s62
    %s79 = sphi 0, %s63
    %s87 = sphi 0, %s89
    %s90 = sphi 0, %s87
    %s91 = sphi 0, %s90
    %s107 = sphi 0, %s91
    %s115 = sphi 0, %s117
    %s118 = sphi 0, %s115
    %s119 = sphi 0, %s118
    %s135 = sphi 0, %s119
  $region4: #{forward.7} parent=0 // loop_header_branch
    %12 = sbr.rel (%p10) target = $region8
  $region5: #{forward.7} parent=0 // loop_body
    %s14 = ssub.s32 %s9, 1
    %s15 = ssub.s32 %s9, 2
    %s22 = sadd.s32 1, %s17
    %p23 = scmp.ge.s32.totalorder %s22, 1
    %s24 = scalar_select %p23, 0, %s22
    %s25 = sadd.s32 1, %s16
    %s26 = scalar_select %p23, %s25, %s16
    %p27 = scmp.ge.s32.totalorder %s26, 10
    %s28 = scalar_select %p27, 0, %s26
    %s29 = ssub.s32 %s16, %s28
    %p30 = scmp.eq.s32.totalorder %s29, 0
    %s32 = sadd.s32 %s31, 1
    %s33 = scalar_select %p30, %s31, %s32
    %p36 = pneg %p30
    %p37 = scmp.eq.s32.totalorder %s9, 9
    %p38 = por %p36, %p37
    %p39 = scmp.ne.s32.totalorder %s31, %s34
    %p40 = scmp.eq.s32.totalorder %s9, 0
    %p41 = por %p39, %p40
    %p42 = scmp.ne.s32.totalorder %s31, %s34
    %p43 = scmp.eq.s32.totalorder %s14, 9
    %p44 = por %p42, %p43
    %p45 = scmp.ne.s32.totalorder %s34, %s35
    %p46 = scmp.eq.s32.totalorder %s14, 0
    %p47 = por %p45, %p46
    %p48 = scmp.ne.s32.totalorder %s34, %s35
    %p49 = scmp.eq.s32.totalorder %s15, 9
    %p50 = por %p48, %p49
    %p52 = scmp.ne.s32.totalorder %s35, %s51
    %p53 = scmp.eq.s32.totalorder %s15, 0
    %p54 = por %p52, %p53
    %s55 = ssub.s32 %s16, %s28
    %s56 = ssub.s32 %s17, %s24
    %s57 = sor.u32 %s55, %s56
    %p58 = scmp.eq.s32.totalorder %s57, 0
    %s60 = sadd.s32 %s59, 1
    %s61 = scalar_select %p58, %s59, %s60
    %p64 = pneg %p58
    %p65 = scmp.eq.s32.totalorder %s9, 9
    %p66 = por %p64, %p65
    %p67 = scmp.ne.s32.totalorder %s59, %s62
    %p68 = scmp.eq.s32.totalorder %s9, 0
    %p69 = por %p67, %p68
    %p70 = scmp.ne.s32.totalorder %s59, %s62
    %p71 = scmp.eq.s32.totalorder %s14, 9
    %p72 = por %p70, %p71
    %p73 = scmp.ne.s32.totalorder %s62, %s63
    %p74 = scmp.eq.s32.totalorder %s14, 0
    %p75 = por %p73, %p74
    %p76 = scmp.ne.s32.totalorder %s62, %s63
    %p77 = scmp.eq.s32.totalorder %s15, 9
    %p78 = por %p76, %p77
    %p80 = scmp.ne.s32.totalorder %s63, %s79
    %p81 = scmp.eq.s32.totalorder %s15, 0
    %p82 = por %p80, %p81
    %s83 = ssub.s32 %s16, %s28
    %s84 = ssub.s32 %s17, %s24
    %s85 = sor.u32 %s83, %s84
    %p86 = scmp.eq.s32.totalorder %s85, 0
    %s88 = sadd.s32 %s87, 1
    %s89 = scalar_select %p86, %s87, %s88
    %p92 = pneg %p86
    %p93 = scmp.eq.s32.totalorder %s9, 9
    %p94 = por %p92, %p93
    %p95 = scmp.ne.s32.totalorder %s87, %s90
    %p96 = scmp.eq.s32.totalorder %s9, 0
    %p97 = por %p95, %p96
    %p98 = scmp.ne.s32.totalorder %s87, %s90
    %p99 = scmp.eq.s32.totalorder %s14, 9
    %p100 = por %p98, %p99
    %p101 = scmp.ne.s32.totalorder %s90, %s91
    %p102 = scmp.eq.s32.totalorder %s14, 0
    %p103 = por %p101, %p102
    %p104 = scmp.ne.s32.totalorder %s90, %s91
    %p105 = scmp.eq.s32.totalorder %s15, 9
    %p106 = por %p104, %p105
    %p108 = scmp.ne.s32.totalorder %s91, %s107
    %p109 = scmp.eq.s32.totalorder %s15, 0
    %p110 = por %p108, %p109
    %s111 = ssub.s32 %s16, %s28
    %s112 = ssub.s32 %s17, %s24
    %s113 = sor.u32 %s111, %s112
    %p114 = scmp.eq.s32.totalorder %s113, 0
    %s116 = sadd.s32 %s115, 1
    %s117 = scalar_select %p114, %s115, %s116
    %p120 = pneg %p114
    %p121 = scmp.eq.s32.totalorder %s9, 9
    %p122 = por %p120, %p121
    %p123 = scmp.ne.s32.totalorder %s115, %s118
    %p124 = scmp.eq.s32.totalorder %s9, 0
    %p125 = por %p123, %p124
    %p126 = scmp.ne.s32.totalorder %s115, %s118
    %p127 = scmp.eq.s32.totalorder %s14, 9
    %p128 = por %p126, %p127
    %p129 = scmp.ne.s32.totalorder %s118, %s119
    %p130 = scmp.eq.s32.totalorder %s14, 0
    %p131 = por %p129, %p130
    %p132 = scmp.ne.s32.totalorder %s118, %s119
    %p133 = scmp.eq.s32.totalorder %s15, 9
    %p134 = por %p132, %p133
    %p136 = scmp.ne.s32.totalorder %s119, %s135
    %p137 = scmp.eq.s32.totalorder %s15, 0
    %p138 = por %p136, %p137
    %p139 = scmp.le.s32.totalorder 1, %s9
    %p140 = scmp.lt.s32.totalorder %s9, 11
    %p141 = pnand %p139, %p140
    %p142 = pneg %p141
    // Predicated region
    $region9: #{forward.7} parent=5 // pred_check
      _
    $region10: #{forward.7} parent=5 // pred_check_branch
      %144 = sbr.rel (%p141) target = $region12
    $region11: #{forward.7} parent=5 // pred_region
      %s145 = ssub.s32 %s9, 1
    $region12: #{forward.7} parent=5 // pred_fallthru
      _
    %p146 = scmp.lt.s32.totalorder %s9, 10
    // Predicated region
    $region13: #{forward.7} parent=5 // pred_check
      %p147 = pneg %p146
    $region14: #{forward.7} parent=5 // pred_check_branch
      %149 = sbr.rel (%p147) target = $region16
    $region15: #{forward.7} parent=5 // pred_region
      // Predicated region
      $region17: #{forward.7} parent=15 // pred_check
        %p150 = pneg %p41
      $region18: #{forward.7} parent=15 // pred_check_branch
        %152 = sbr.rel (%p150) target = $region20
      $region19: #{forward.7} parent=15 // pred_region
        %p153 = scmp.lt.s32.totalorder %s16, 9
        %s154 = scalar_select %p153, %s16, 9
        %s155 = smul.addr %s154, 2
        %s156 = smul.addr %s155, 4
        %s157 = scalar_lea.vmem %s0, %s156
      $region20: #{forward.7} parent=15 // pred_fallthru
        _
      // Predicated region
      $region21: #{forward.7} parent=15 // pred_check
        %p158 = pneg %p69
      $region22: #{forward.7} parent=15 // pred_check_branch
        %160 = sbr.rel (%p158) target = $region24
      $region23: #{forward.7} parent=15 // pred_region
        %p161 = scmp.lt.s32.totalorder %s16, 9
        %s162 = scalar_select %p161, %s16, 9
        %p163 = scmp.lt.s32.totalorder %s17, 0
        %s164 = scalar_select %p163, %s17, 0
        %s165 = smul.addr %s162, 32
        %s166 = sadd.s32 %s164, %s165
        %s167 = smul.addr %s166, 4
        %s168 = scalar_lea.vmem %s1, %s167
      $region24: #{forward.7} parent=15 // pred_fallthru
        _
      // Predicated region
      $region25: #{forward.7} parent=15 // pred_check
        %p169 = pneg %p97
      $region26: #{forward.7} parent=15 // pred_check_branch
        %171 = sbr.rel (%p169) target = $region28
      $region27: #{forward.7} parent=15 // pred_region
        %p172 = scmp.lt.s32.totalorder %s16, 9
        %s173 = scalar_select %p172, %s16, 9
        %p174 = scmp.lt.s32.totalorder %s17, 0
        %s175 = scalar_select %p174, %s17, 0
        %s176 = sadd.s32 %s175, %s173
        %s177 = scalar_lea.vmem %s2, %s176
      $region28: #{forward.7} parent=15 // pred_fallthru
        _
    $region16: #{forward.7} parent=5 // pred_fallthru
      _
    %p178 = scmp.le.s32.totalorder 1, %s9
    %p179 = scmp.lt.s32.totalorder %s9, 11
    %p180 = pnand %p178, %p179
    %p181 = pneg %p180
    // Predicated region
    $region29: #{forward.7} parent=5 // pred_check
      _
    $region30: #{forward.7} parent=5 // pred_check_branch
      %183 = sbr.rel (%p180) target = $region32
    $region31: #{forward.7} parent=5 // pred_region
      %s184 = ssub.s32 %s9, 1
      %p185 = scmp.lt.s32.totalorder %s18, 9
      %s186 = scalar_select %p185, %s18, 9
      %s187 = smul.addr %s186, 2
      %s188 = smul.addr %s187, 4
      %s189 = scalar_lea.vmem %s0, %s188
      %p190 = pneg %p47
      %p191 = pneg %p44
      %p192 = scmp.lt.s32.totalorder %s18, 9
      %s193 = scalar_select %p192, %s18, 9
      %p194 = scmp.lt.s32.totalorder %s19, 0
      %s195 = scalar_select %p194, %s19, 0
      %s196 = smul.addr %s193, 32
      %s197 = sadd.s32 %s195, %s196
      %s198 = smul.addr %s197, 4
      %s199 = scalar_lea.vmem %s1, %s198
      %p200 = pneg %p75
      %p201 = pneg %p72
      %p202 = scmp.lt.s32.totalorder %s18, 9
      %s203 = scalar_select %p202, %s18, 9
      %p204 = scmp.lt.s32.totalorder %s19, 0
      %s205 = scalar_select %p204, %s19, 0
      %s206 = sadd.s32 %s205, %s203
      %s207 = scalar_lea.vmem %s2, %s206
      %p208 = pneg %p103
      %p209 = pneg %p100
      %p210 = pneg %p131
      %p211 = pneg %p128
      %p212 = scmp.lt.s32.totalorder %s18, 9
      %s213 = scalar_select %p212, %s18, 9
      %p214 = scmp.lt.s32.totalorder %s19, 0
      %s215 = scalar_select %p214, %s19, 0
      %s216 = sadd.s32 %s215, %s213
      %s217 = smul.addr %s216, 4
      %s218 = scalar_lea.vmem %s3, %s217
      %p219 = scmp.lt.s32.totalorder %s18, 9
      %s220 = scalar_select %p219, %s18, 9
      %s221 = smul.addr %s220, 2
      %s222 = smul.addr %s221, 4
      %s223 = scalar_lea.vmem %s0, %s222
      %p224 = scmp.lt.s32.totalorder %s18, 9
      %s225 = scalar_select %p224, %s18, 9
      %p226 = scmp.lt.s32.totalorder %s19, 0
      %s227 = scalar_select %p226, %s19, 0
      %s228 = smul.addr %s225, 32
      %s229 = sadd.s32 %s227, %s228
      %s230 = smul.addr %s229, 4
      %s231 = scalar_lea.vmem %s1, %s230
      %p232 = scmp.lt.s32.totalorder %s18, 9
      %s233 = scalar_select %p232, %s18, 9
      %p234 = scmp.lt.s32.totalorder %s19, 0
      %s235 = scalar_select %p234, %s19, 0
      %s236 = sadd.s32 %s235, %s233
      %s237 = scalar_lea.vmem %s2, %s236
      %p238 = scmp.lt.s32.totalorder %s18, 9
      %s239 = scalar_select %p238, %s18, 9
      %p240 = scmp.lt.s32.totalorder %s19, 0
      %s241 = scalar_select %p240, %s19, 0
      %s242 = sadd.s32 %s241, %s239
      %s243 = smul.addr %s242, 4
      %s244 = scalar_lea.vmem %s3, %s243
      %v246 = vld [vmem:[%s223] sm:$0xff]
      %v247 = vld [vmem:[%s231] sm:$0xf]
      %v248 = vld [vmem:[%s231 + $0x4] sm:$0xf]
      %v249 = vld [vmem:[%s231 + $0x8] sm:$0xf]
      %v250 = vld [vmem:[%s231 + $0xc] sm:$0xf]
      %v251 = vld [vmem:[%s231 + $0x10] sm:$0xf]
      %v252 = vld [vmem:[%s231 + $0x14] sm:$0xf]
      %v253 = vld [vmem:[%s231 + $0x18] sm:$0xf]
      %v254 = vld [vmem:[%s231 + $0x1c] sm:$0xf]
      %v255 = vld [vmem:[%s231 + $0x20] sm:$0xf]
      %v256 = vld [vmem:[%s231 + $0x24] sm:$0xf]
      %v257 = vld [vmem:[%s231 + $0x28] sm:$0xf]
      %v258 = vld [vmem:[%s231 + $0x2c] sm:$0xf]
      %v259 = vld [vmem:[%s231 + $0x30] sm:$0xf]
      %v260 = vld [vmem:[%s231 + $0x34] sm:$0xf]
      %v261 = vld [vmem:[%s231 + $0x38] sm:$0xf]
      %v262 = vld [vmem:[%s231 + $0x3c] sm:$0xf]
      %v263 = vld [vmem:[%s231 + $0x40] sm:$0xf]
      %v264 = vld [vmem:[%s231 + $0x44] sm:$0xf]
      %v265 = vld [vmem:[%s231 + $0x48] sm:$0xf]
      %v266 = vld [vmem:[%s231 + $0x4c] sm:$0xf]
      %v267 = vld [vmem:[%s231 + $0x50] sm:$0xf]
      %v268 = vld [vmem:[%s231 + $0x54] sm:$0xf]
      %v269 = vld [vmem:[%s231 + $0x58] sm:$0xf]
      %v270 = vld [vmem:[%s231 + $0x5c] sm:$0xf]
      %v271 = vld [vmem:[%s231 + $0x60] sm:$0xf]
      %v272 = vld [vmem:[%s231 + $0x64] sm:$0xf]
      %v273 = vld [vmem:[%s231 + $0x68] sm:$0xf]
      %v274 = vld [vmem:[%s231 + $0x6c] sm:$0xf]
      %v275 = vld [vmem:[%s231 + $0x70] sm:$0xf]
      %v276 = vld [vmem:[%s231 + $0x74] sm:$0xf]
      %v277 = vld [vmem:[%s231 + $0x78] sm:$0xf]
      %v278 = vld [vmem:[%s231 + $0x7c] sm:$0xf]
      %v279 = vld [vmem:[%s237] sm:$0x1]
      %v281 = vlaneseq
      %v282 = vshrl.u32 %v281, 7
      %v283 = vsub.s32 0, %v282
      %v284 = vrot.slane %v279, %v283
      %v287 = vunpack.c.l.b16 %v246
      %v288 = vunpack.c.h.b16 %v246
      %v289 = vpack.c.b16 %v287, %v287
      %v290 = vpack.c.b16 %v288, %v288
      %v325 = vunpack.c.l.b16 %v247
      %v326 = vunpack.c.l.b16 %v248
      %v327 = vunpack.c.l.b16 %v249
      %v328 = vunpack.c.l.b16 %v250
      %v329 = vunpack.c.l.b16 %v251
      %v330 = vunpack.c.l.b16 %v252
      %v331 = vunpack.c.l.b16 %v253
      %v332 = vunpack.c.l.b16 %v254
      %v333 = vunpack.c.l.b16 %v255
      %v334 = vunpack.c.l.b16 %v256
      %v335 = vunpack.c.l.b16 %v257
      %v336 = vunpack.c.l.b16 %v258
      %v337 = vunpack.c.l.b16 %v259
      %v338 = vunpack.c.l.b16 %v260
      %v339 = vunpack.c.l.b16 %v261
      %v340 = vunpack.c.l.b16 %v262
      %v341 = vunpack.c.l.b16 %v263
      %v342 = vunpack.c.l.b16 %v264
      %v343 = vunpack.c.l.b16 %v265
      %v344 = vunpack.c.l.b16 %v266
      %v345 = vunpack.c.l.b16 %v267
      %v346 = vunpack.c.l.b16 %v268
      %v347 = vunpack.c.l.b16 %v269
      %v348 = vunpack.c.l.b16 %v270
      %v349 = vunpack.c.l.b16 %v271
      %v350 = vunpack.c.l.b16 %v272
      %v351 = vunpack.c.l.b16 %v273
      %v352 = vunpack.c.l.b16 %v274
      %v353 = vunpack.c.l.b16 %v275
      %v354 = vunpack.c.l.b16 %v276
      %v355 = vunpack.c.l.b16 %v277
      %v356 = vunpack.c.l.b16 %v278
      %v357 = vpack.c.b16 %v326, %v325
      %v358 = vpack.c.b16 %v328, %v327
      %v359 = vpack.c.b16 %v330, %v329
      %v360 = vpack.c.b16 %v332, %v331
      %v361 = vpack.c.b16 %v334, %v333
      %v362 = vpack.c.b16 %v336, %v335
      %v363 = vpack.c.b16 %v338, %v337
      %v364 = vpack.c.b16 %v340, %v339
      %v365 = vpack.c.b16 %v342, %v341
      %v366 = vpack.c.b16 %v344, %v343
      %v367 = vpack.c.b16 %v346, %v345
      %v368 = vpack.c.b16 %v348, %v347
      %v369 = vpack.c.b16 %v350, %v349
      %v370 = vpack.c.b16 %v352, %v351
      %v371 = vpack.c.b16 %v354, %v353
      %v372 = vpack.c.b16 %v356, %v355
      %389 = vmatprep.subr.bf16.mxu0 0
      %390 = vmatpush1.bf16.msra.mxu0 %v364
      %391 = vmatprep.subr.bf16.mxu0 0
      %392 = vmatpush1.bf16.msra.mxu0 %v363
      %393 = vmatprep.subr.bf16.mxu0 0
      %394 = vmatpush1.bf16.msra.mxu0 %v362
      %395 = vmatprep.subr.bf16.mxu0 0
      %396 = vmatpush1.bf16.msra.mxu0 %v361
      %397 = vmatprep.subr.bf16.mxu0 0
      %398 = vmatpush1.bf16.msra.mxu0 %v360
      %399 = vmatprep.subr.bf16.mxu0 0
      %400 = vmatpush1.bf16.msra.mxu0 %v359
      %401 = vmatprep.subr.bf16.mxu0 0
      %402 = vmatpush1.bf16.msra.mxu0 %v358
      %403 = vmatprep.subr.bf16.mxu0 0
      %404 = vmatpush1.bf16.msra.mxu0 %v357
      %405 = vmatprep.subr.bf16.mxu0 0
      %406 = vmatpush2.bf16.msra.mxu0 %v372
      %407 = vmatprep.subr.bf16.mxu0 0
      %408 = vmatpush2.bf16.msra.mxu0 %v371
      %409 = vmatprep.subr.bf16.mxu0 0
      %410 = vmatpush2.bf16.msra.mxu0 %v370
      %411 = vmatprep.subr.bf16.mxu0 0
      %412 = vmatpush2.bf16.msra.mxu0 %v369
      %413 = vmatprep.subr.bf16.mxu0 0
      %414 = vmatpush2.bf16.msra.mxu0 %v368
      %415 = vmatprep.subr.bf16.mxu0 0
      %416 = vmatpush2.bf16.msra.mxu0 %v367
      %417 = vmatprep.subr.bf16.mxu0 0
      %418 = vmatpush2.bf16.msra.mxu0 %v366
      %419 = vmatprep.subr.bf16.mxu0 0
      %420 = vmatpush2.bf16.msra.mxu0 %v365
      %421 = vmatprep.mubr.bf16.mxu0 %v290
      %422 = vmatmul.mubr.bf16.gmra.mxu0 %v289
      %v423 = vpop.f32.mrf.mxu0
      %v424 = vadd.f32 %v284, %v423
      %v425 = vpop.f32.mrf.mxu0
      %v426 = vpop.f32.mrf.mxu0
      %v427 = vpop.f32.mrf.mxu0
      %428 = vdwg.mxu0
      %v429 = vpack.c.bf16 %v424, %v424
      %430 = vst [vmem:[%s244] sm:$0xf] %v429
      %p431 = scmp.lt.s32.totalorder %s18, 9
      %s432 = scalar_select %p431, %s18, 9
      %p433 = scmp.lt.s32.totalorder %s19, 0
      %s434 = scalar_select %p433, %s19, 0
      %s435 = sadd.s32 %s434, %s432
      %s436 = smul.addr %s435, 4
      %s437 = scalar_lea.vmem %s3, %s436
      // Predicated region
      $region33: #{forward.7} parent=31 // pred_check
        %p438 = pneg %p128
      $region34: #{forward.7} parent=31 // pred_check_branch
        %440 = sbr.rel (%p438) target = $region36
      $region35: #{forward.7} parent=31 // pred_region
        _
      $region36: #{forward.7} parent=31 // pred_fallthru
        _
    $region32: #{forward.7} parent=5 // pred_fallthru
      _
    %p441 = scmp.le.s32.totalorder 2, %s9
    // Predicated region
    $region37: #{forward.7} parent=5 // pred_check
      %p442 = pneg %p441
    $region38: #{forward.7} parent=5 // pred_check_branch
      %444 = sbr.rel (%p442) target = $region40
    $region39: #{forward.7} parent=5 // pred_region
      %s445 = ssub.s32 %s9, 2
      // Predicated region
      $region41: #{forward.7} parent=39 // pred_check
        %p446 = pneg %p134
      $region42: #{forward.7} parent=39 // pred_check_branch
        %448 = sbr.rel (%p446) target = $region44
      $region43: #{forward.7} parent=39 // pred_region
        %p449 = scmp.lt.s32.totalorder %s20, 9
        %s450 = scalar_select %p449, %s20, 9
        %p451 = scmp.lt.s32.totalorder %s21, 0
        %s452 = scalar_select %p451, %s21, 0
        %s453 = sadd.s32 %s452, %s450
        %s454 = smul.addr %s453, 4
        %s455 = scalar_lea.vmem %s3, %s454
      $region44: #{forward.7} parent=39 // pred_fallthru
        _
    $region40: #{forward.7} parent=5 // pred_fallthru
      _
  $region6: #{forward.7} parent=0 // loop_footer
    %s13 = sadd.s32 1, %s9
  $region7: #{forward.7} parent=0 // loop_footer_branch
    %8 = sbr.rel target = $region3
  $region8: #{forward.7} parent=0 // loop_exit
    _

// kernel: forward.8
$region0: #{forward.8}
  #allocation0 [shape = 'u32[]', space=smem, size = 0x4, offset = 0x4, fixed_abs, tag = 'smem constant byte address 0x4 - core index']
  #allocation1 [shape = 'u32[144,128]{1,0:T(1,128)}', space=vmem, size = 0x12000, scoped, tag = 'internal scratch']
  %s0 = inlined_call_operand.vmem [shape: bf16[1,16,128], index: 0, kind: input, shape index: {}]
  %s1 = inlined_call_operand.vmem [shape: bf16[1,128,384], index: 1, kind: input, shape index: {}]
  %s2 = inlined_call_operand.vmem [shape: f32[1,1,384], index: 2, kind: input, shape index: {}]
  %s3 = inlined_call_operand.vmem [shape: bf16[1,16,384], index: 3, kind: output, shape index: {}]
  %s4 = sld [smem:[#allocation0]]
  $region22: #{forward.8} parent=0
    _
  %s6 = ssub.s32 1, %s4
  %s7 = scalar_select 0, %s6, %s4
  // Predicated region
  $region2: #{forward.8} parent=0 // pred_check
    _
  $region3: #{forward.8} parent=0 // pred_check_branch
    %9 = sbr.rel (0) target = $region5
  $region4: #{forward.8} parent=0 // pred_region
    _
  $region5: #{forward.8} parent=0 // pred_fallthru
    _
  // Predicated region
  $region6: #{forward.8} parent=0 // pred_check
    _
  $region7: #{forward.8} parent=0 // pred_check_branch
    %11 = sbr.rel (0) target = $region9
  $region8: #{forward.8} parent=0 // pred_region
    _
  $region9: #{forward.8} parent=0 // pred_fallthru
    _
  // Predicated region
  $region10: #{forward.8} parent=0 // pred_check
    _
  $region11: #{forward.8} parent=0 // pred_check_branch
    %13 = sbr.rel (0) target = $region13
  $region12: #{forward.8} parent=0 // pred_region
    _
  $region13: #{forward.8} parent=0 // pred_fallthru
    _
  %v15 = vld [vmem:[%s0] sm:$0xf]
  %v16 = vld [vmem:[%s0 + $0x4] sm:$0xf]
  %v17 = vld [vmem:[%s1] sm:$0xff]
  %v18 = vld [vmem:[%s1 + $0x8] sm:$0xf]
  %v19 = vld [vmem:[%s1 + $0xc] sm:$0xff]
  %v20 = vld [vmem:[%s1 + $0x14] sm:$0xf]
  %v21 = vld [vmem:[%s1 + $0x18] sm:$0xff]
  %v22 = vld [vmem:[%s1 + $0x20] sm:$0xf]
  %v23 = vld [vmem:[%s1 + $0x24] sm:$0xff]
  %v24 = vld [vmem:[%s1 + $0x2c] sm:$0xf]
  %v25 = vld [vmem:[%s1 + $0x30] sm:$0xff]
  %v26 = vld [vmem:[%s1 + $0x38] sm:$0xf]
  %v27 = vld [vmem:[%s1 + $0x3c] sm:$0xff]
  %v28 = vld [vmem:[%s1 + $0x44] sm:$0xf]
  %v29 = vld [vmem:[%s1 + $0x48] sm:$0xff]
  %v30 = vld [vmem:[%s1 + $0x50] sm:$0xf]
  %v31 = vld [vmem:[%s1 + $0x54] sm:$0xff]
  %v32 = vld [vmem:[%s1 + $0x5c] sm:$0xf]
  %v33 = vld [vmem:[%s1 + $0x60] sm:$0xff]
  %v34 = vld [vmem:[%s1 + $0x68] sm:$0xf]
  %v35 = vld [vmem:[%s1 + $0x6c] sm:$0xff]
  %v36 = vld [vmem:[%s1 + $0x74] sm:$0xf]
  %v37 = vld [vmem:[%s1 + $0x78] sm:$0xff]
  %v38 = vld [vmem:[%s1 + $0x80] sm:$0xf]
  %v39 = vld [vmem:[%s1 + $0x84] sm:$0xff]
  %v40 = vld [vmem:[%s1 + $0x8c] sm:$0xf]
  %v41 = vld [vmem:[%s1 + $0x90] sm:$0xff]
  %v42 = vld [vmem:[%s1 + $0x98] sm:$0xf]
  %v43 = vld [vmem:[%s1 + $0x9c] sm:$0xff]
  %v44 = vld [vmem:[%s1 + $0xa4] sm:$0xf]
  %v45 = vld [vmem:[%s1 + $0xa8] sm:$0xff]
  %v46 = vld [vmem:[%s1 + $0xb0] sm:$0xf]
  %v47 = vld [vmem:[%s1 + $0xb4] sm:$0xff]
  %v48 = vld [vmem:[%s1 + $0xbc] sm:$0xf]
  %v49 = vld [vmem:[%s2] sm:$0x7]
  %v51 = vlaneseq
  %v52 = vshrl.u32 %v51, 7
  %v53 = vsub.s32 0, %v52
  %v54 = vrot.slane %v49, %v53
  %v55 = vlaneseq
  %v56 = vshrl.u32 %v55, 7
  %v57 = vsub.s32 1, %v56
  %v58 = vrot.slane %v49, %v57
  %v59 = vlaneseq
  %v60 = vshrl.u32 %v59, 7
  %v61 = vsub.s32 2, %v60
  %v62 = vrot.slane %v49, %v61
  %v68 = vunpack.c.l.b16 %v15
  %v69 = vunpack.c.l.b16 %v16
  %v70 = vpack.c.b16 %v69, %v68
  %v104 = vunpack.c.l.b16 %v17
  %v105 = vunpack.c.h.b16 %v17
  %v106 = vunpack.c.l.b16 %v18
  %v107 = vunpack.c.l.b16 %v19
  %v108 = vunpack.c.h.b16 %v19
  %v109 = vunpack.c.l.b16 %v20
  %v110 = vunpack.c.l.b16 %v21
  %v111 = vunpack.c.h.b16 %v21
  %v112 = vunpack.c.l.b16 %v22
  %v113 = vunpack.c.l.b16 %v23
  %v114 = vunpack.c.h.b16 %v23
  %v115 = vunpack.c.l.b16 %v24
  %v116 = vunpack.c.l.b16 %v25
  %v117 = vunpack.c.h.b16 %v25
  %v118 = vunpack.c.l.b16 %v26
  %v119 = vunpack.c.l.b16 %v27
  %v120 = vunpack.c.h.b16 %v27
  %v121 = vunpack.c.l.b16 %v28
  %v122 = vunpack.c.l.b16 %v29
  %v123 = vunpack.c.h.b16 %v29
  %v124 = vunpack.c.l.b16 %v30
  %v125 = vunpack.c.l.b16 %v31
  %v126 = vunpack.c.h.b16 %v31
  %v127 = vunpack.c.l.b16 %v32
  %v128 = vunpack.c.l.b16 %v33
  %v129 = vunpack.c.h.b16 %v33
  %v130 = vunpack.c.l.b16 %v34
  %v131 = vunpack.c.l.b16 %v35
  %v132 = vunpack.c.h.b16 %v35
  %v133 = vunpack.c.l.b16 %v36
  %v134 = vunpack.c.l.b16 %v37
  %v135 = vunpack.c.h.b16 %v37
  %v136 = vunpack.c.l.b16 %v38
  %v137 = vunpack.c.l.b16 %v39
  %v138 = vunpack.c.h.b16 %v39
  %v139 = vunpack.c.l.b16 %v40
  %v140 = vunpack.c.l.b16 %v41
  %v141 = vunpack.c.h.b16 %v41
  %v142 = vunpack.c.l.b16 %v42
  %v143 = vunpack.c.l.b16 %v43
  %v144 = vunpack.c.h.b16 %v43
  %v145 = vunpack.c.l.b16 %v44
  %v146 = vunpack.c.l.b16 %v45
  %v147 = vunpack.c.h.b16 %v45
  %v148 = vunpack.c.l.b16 %v46
  %v149 = vunpack.c.l.b16 %v47
  %v150 = vunpack.c.h.b16 %v47
  %v151 = vunpack.c.l.b16 %v48
  %v152 = vpack.c.b16 %v107, %v104
  %v153 = vpack.c.b16 %v108, %v105
  %v154 = vpack.c.b16 %v109, %v106
  %v155 = vpack.c.b16 %v113, %v110
  %v156 = vpack.c.b16 %v114, %v111
  %v157 = vpack.c.b16 %v115, %v112
  %v158 = vpack.c.b16 %v119, %v116
  %v159 = vpack.c.b16 %v120, %v117
  %v160 = vpack.c.b16 %v121, %v118
  %v161 = vpack.c.b16 %v125, %v122
  %v162 = vpack.c.b16 %v126, %v123
  %v163 = vpack.c.b16 %v127, %v124
  %v164 = vpack.c.b16 %v131, %v128
  %v165 = vpack.c.b16 %v132, %v129
  %v166 = vpack.c.b16 %v133, %v130
  %v167 = vpack.c.b16 %v137, %v134
  %v168 = vpack.c.b16 %v138, %v135
  %v169 = vpack.c.b16 %v139, %v136
  %v170 = vpack.c.b16 %v143, %v140
  %v171 = vpack.c.b16 %v144, %v141
  %v172 = vpack.c.b16 %v145, %v142
  %v173 = vpack.c.b16 %v149, %v146
  %v174 = vpack.c.b16 %v150, %v147
  %v175 = vpack.c.b16 %v151, %v148
  %200 = vmatprep.subr.bf16.mxu0 %v174
  %201 = vmatpush1.bf16.msra.mxu0 %v173
  %202 = vmatprep.subr.bf16.mxu0 %v171
  %203 = vmatpush1.bf16.msra.mxu0 %v170
  %204 = vmatprep.subr.bf16.mxu0 %v168
  %205 = vmatpush1.bf16.msra.mxu0 %v167
  %206 = vmatprep.subr.bf16.mxu0 %v165
  %207 = vmatpush1.bf16.msra.mxu0 %v164
  %208 = vmatprep.subr.bf16.mxu0 %v162
  %209 = vmatpush1.bf16.msra.mxu0 %v161
  %210 = vmatprep.subr.bf16.mxu0 %v159
  %211 = vmatpush1.bf16.msra.mxu0 %v158
  %212 = vmatprep.subr.bf16.mxu0 %v156
  %213 = vmatpush1.bf16.msra.mxu0 %v155
  %214 = vmatprep.subr.bf16.mxu0 %v153
  %215 = vmatpush1.bf16.msra.mxu0 %v152
  %216 = vmatprep.subr.bf16.mxu0 0
  %217 = vmatpush2.bf16.msra.mxu0 0
  %218 = vmatprep.subr.bf16.mxu0 0
  %219 = vmatpush2.bf16.msra.mxu0 0
  %220 = vmatprep.subr.bf16.mxu0 0
  %221 = vmatpush2.bf16.msra.mxu0 0
  %222 = vmatprep.subr.bf16.mxu0 0
  %223 = vmatpush2.bf16.msra.mxu0 0
  %224 = vmatprep.subr.bf16.mxu0 0
  %225 = vmatpush2.bf16.msra.mxu0 0
  %226 = vmatprep.subr.bf16.mxu0 0
  %227 = vmatpush2.bf16.msra.mxu0 0
  %228 = vmatprep.subr.bf16.mxu0 0
  %229 = vmatpush2.bf16.msra.mxu0 0
  %230 = vmatprep.subr.bf16.mxu0 0
  %231 = vmatpush2.bf16.msra.mxu0 0
  %232 = vmatprep.mubr.bf16.mxu0 0
  %233 = vmatmul.mubr.bf16.gmra.mxu0 %v70
  %v234 = vpop.f32.mrf.mxu0
  %v235 = vadd.f32 %v54, %v234
  %v236 = vpop.f32.mrf.mxu0
  %v237 = vadd.f32 %v58, %v236
  %v238 = vpop.f32.mrf.mxu0
  %v239 = vadd.f32 %v54, %v238
  %v240 = vpop.f32.mrf.mxu0
  %v241 = vadd.f32 %v58, %v240
  %242 = vdwg.mxu0
  %243 = vmatprep.subr.bf16.mxu0 0
  %244 = vmatpush1.bf16.msra.mxu0 %v175
  %245 = vmatprep.subr.bf16.mxu0 0
  %246 = vmatpush1.bf16.msra.mxu0 %v172
  %247 = vmatprep.subr.bf16.mxu0 0
  %248 = vmatpush1.bf16.msra.mxu0 %v169
  %249 = vmatprep.subr.bf16.mxu0 0
  %250 = vmatpush1.bf16.msra.mxu0 %v166
  %251 = vmatprep.subr.bf16.mxu0 0
  %252 = vmatpush1.bf16.msra.mxu0 %v163
  %253 = vmatprep.subr.bf16.mxu0 0
  %254 = vmatpush1.bf16.msra.mxu0 %v160
  %255 = vmatprep.subr.bf16.mxu0 0
  %256 = vmatpush1.bf16.msra.mxu0 %v157
  %257 = vmatprep.subr.bf16.mxu0 0
  %258 = vmatpush1.bf16.msra.mxu0 %v154
  %259 = vmatprep.subr.bf16.mxu0 0
  %260 = vmatpush2.bf16.msra.mxu0 0
  %261 = vmatprep.subr.bf16.mxu0 0
  %262 = vmatpush2.bf16.msra.mxu0 0
  %263 = vmatprep.subr.bf16.mxu0 0
  %264 = vmatpush2.bf16.msra.mxu0 0
  %265 = vmatprep.subr.bf16.mxu0 0
  %266 = vmatpush2.bf16.msra.mxu0 0
  %267 = vmatprep.subr.bf16.mxu0 0
  %268 = vmatpush2.bf16.msra.mxu0 0
  %269 = vmatprep.subr.bf16.mxu0 0
  %270 = vmatpush2.bf16.msra.mxu0 0
  %271 = vmatprep.subr.bf16.mxu0 0
  %272 = vmatpush2.bf16.msra.mxu0 0
  %273 = vmatprep.subr.bf16.mxu0 0
  %274 = vmatpush2.bf16.msra.mxu0 0
  %275 = vmatprep.mubr.bf16.mxu0 0
  %276 = vmatmul.mubr.bf16.gmra.mxu0 %v70
  %v277 = vpop.f32.mrf.mxu0
  %v278 = vadd.f32 %v62, %v277
  %v279 = vpop.f32.mrf.mxu0
  %v280 = vpop.f32.mrf.mxu0
  %v281 = vadd.f32 %v62, %v280
  %v282 = vpop.f32.mrf.mxu0
  %283 = vdwg.mxu0
  %v284 = vpack.c.bf16 %v239, %v235
  %v285 = vpack.c.bf16 %v241, %v237
  %v286 = vpack.c.bf16 %v281, %v278
  %v290 = vunpack.c.l.b16 %v284
  %v291 = vunpack.c.l.b16 %v285
  %v292 = vunpack.c.l.b16 %v286
  %v293 = vunpack.c.h.b16 %v284
  %v294 = vunpack.c.h.b16 %v285
  %v295 = vunpack.c.h.b16 %v286
  %v296 = vpack.c.b16 %v291, %v290
  %v297 = vpack.c.b16 %v292, %v292
  %v298 = vpack.c.b16 %v294, %v293
  %v299 = vpack.c.b16 %v295, %v295
  %304 = vst [vmem:[%s3] sm:$0xff] %v296
  %305 = vst [vmem:[%s3 + $0x8] sm:$0xf] %v297
  %306 = vst [vmem:[%s3 + $0xc] sm:$0xff] %v298
  %307 = vst [vmem:[%s3 + $0x14] sm:$0xf] %v299
  // Predicated region
  $region14: #{forward.8} parent=0 // pred_check
    _
  $region15: #{forward.8} parent=0 // pred_check_branch
    %309 = sbr.rel (0) target = $region17
  $region16: #{forward.8} parent=0 // pred_region
    _
  $region17: #{forward.8} parent=0 // pred_fallthru
    _
  // Predicated region
  $region18: #{forward.8} parent=0 // pred_check
    _
  $region19: #{forward.8} parent=0 // pred_check_branch
    %311 = sbr.rel (0) target = $region21
  $region20: #{forward.8} parent=0 // pred_region
    _
  $region21: #{forward.8} parent=0 // pred_fallthru
    _

// kernel: forward.9
$region0: #{forward.9}
  #allocation0 [shape = 'u32[]', space=smem, size = 0x4, offset = 0x4, fixed_abs, tag = 'smem constant byte address 0x4 - core index']
  #allocation1 [shape = 'u32[144,128]{1,0:T(1,128)}', space=vmem, size = 0x12000, scoped, tag = 'internal scratch']
  %s0 = inlined_call_operand.vmem [shape: bf16[2,8,384], index: 0, kind: input, shape index: {}]
  %s1 = inlined_call_operand.vmem [shape: f32[2,1,8], index: 1, kind: input, shape index: {}]
  %s2 = inlined_call_operand.vmem [shape: bf16[4,32,128], index: 2, kind: input, shape index: {}]
  %s3 = inlined_call_operand.vmem [shape: bf16[2,8,128], index: 3, kind: output, shape index: {}]
  %s4 = sld [smem:[#allocation0]]
  $region45: #{forward.9} parent=0
    _
  %s6 = ssub.s32 1, %s4
  %s7 = scalar_select 0, %s6, %s4
  loop: start=0, step=1, limit=4
  $region2: #{forward.9} parent=0 // loop_pre_header
    _
  $region3: #{forward.9} parent=0 // loop_header
    %s9 = sphi 0, %s13
    %p10 = scmp.ge.s32.totalorder %s9, 4
    %s19 = sphi 0, %s21
    %s22 = sphi 0, %s19
    %s23 = sphi 0, %s22
    %s39 = sphi 0, %s23
    %s45 = sphi 0, %s47
    %s48 = sphi 0, %s45
    %s49 = sphi 0, %s48
    %s65 = sphi 0, %s49
    %s69 = sphi 0, %s69
    %s71 = sphi 0, %s69
    %s72 = sphi 0, %s71
    %s86 = sphi 0, %s72
    %s92 = sphi 0, %s94
    %s95 = sphi 0, %s92
    %s96 = sphi 0, %s95
    %s112 = sphi 0, %s96
  $region4: #{forward.9} parent=0 // loop_header_branch
    %12 = sbr.rel (%p10) target = $region8
  $region5: #{forward.9} parent=0 // loop_body
    %s14 = ssub.s32 %s9, 1
    %s15 = ssub.s32 %s9, 2
    %s16 = sadd.s32 %s9, 1
    %s17 = ssub.s32 %s9, %s16
    %p18 = scmp.eq.s32.totalorder %s17, 0
    %s20 = sadd.s32 %s19, 1
    %s21 = scalar_select %p18, %s19, %s20
    %p24 = pneg %p18
    %p25 = scmp.eq.s32.totalorder %s9, 1
    %p26 = por %p24, %p25
    %p27 = scmp.ne.s32.totalorder %s19, %s22
    %p28 = scmp.eq.s32.totalorder %s9, 0
    %p29 = por %p27, %p28
    %p30 = scmp.ne.s32.totalorder %s19, %s22
    %p31 = scmp.eq.s32.totalorder %s14, 1
    %p32 = por %p30, %p31
    %p33 = scmp.ne.s32.totalorder %s22, %s23
    %p34 = scmp.eq.s32.totalorder %s14, 0
    %p35 = por %p33, %p34
    %p36 = scmp.ne.s32.totalorder %s22, %s23
    %p37 = scmp.eq.s32.totalorder %s15, 1
    %p38 = por %p36, %p37
    %p40 = scmp.ne.s32.totalorder %s23, %s39
    %p41 = scmp.eq.s32.totalorder %s15, 0
    %p42 = por %p40, %p41
    %s43 = ssub.s32 %s9, %s16
    %p44 = scmp.eq.s32.totalorder %s43, 0
    %s46 = sadd.s32 %s45, 1
    %s47 = scalar_select %p44, %s45, %s46
    %p50 = pneg %p44
    %p51 = scmp.eq.s32.totalorder %s9, 1
    %p52 = por %p50, %p51
    %p53 = scmp.ne.s32.totalorder %s45, %s48
    %p54 = scmp.eq.s32.totalorder %s9, 0
    %p55 = por %p53, %p54
    %p56 = scmp.ne.s32.totalorder %s45, %s48
    %p57 = scmp.eq.s32.totalorder %s14, 1
    %p58 = por %p56, %p57
    %p59 = scmp.ne.s32.totalorder %s48, %s49
    %p60 = scmp.eq.s32.totalorder %s14, 0
    %p61 = por %p59, %p60
    %p62 = scmp.ne.s32.totalorder %s48, %s49
    %p63 = scmp.eq.s32.totalorder %s15, 1
    %p64 = por %p62, %p63
    %p66 = scmp.ne.s32.totalorder %s49, %s65
    %p67 = scmp.eq.s32.totalorder %s15, 0
    %p68 = por %p66, %p67
    %s70 = sadd.s32 %s69, 1
    %p73 = scmp.eq.s32.totalorder %s9, 1
    %p74 = scmp.ne.s32.totalorder %s69, %s71
    %p75 = scmp.eq.s32.totalorder %s9, 0
    %p76 = por %p74, %p75
    %p77 = scmp.ne.s32.totalorder %s69, %s71
    %p78 = scmp.eq.s32.totalorder %s14, 1
    %p79 = por %p77, %p78
    %p80 = scmp.ne.s32.totalorder %s71, %s72
    %p81 = scmp.eq.s32.totalorder %s14, 0
    %p82 = por %p80, %p81
    %p83 = scmp.ne.s32.totalorder %s71, %s72
    %p84 = scmp.eq.s32.totalorder %s15, 1
    %p85 = por %p83, %p84
    %p87 = scmp.ne.s32.totalorder %s72, %s86
    %p88 = scmp.eq.s32.totalorder %s15, 0
    %p89 = por %p87, %p88
    %s90 = ssub.s32 %s9, %s16
    %p91 = scmp.eq.s32.totalorder %s90, 0
    %s93 = sadd.s32 %s92, 1
    %s94 = scalar_select %p91, %s92, %s93
    %p97 = pneg %p91
    %p98 = scmp.eq.s32.totalorder %s9, 1
    %p99 = por %p97, %p98
    %p100 = scmp.ne.s32.totalorder %s92, %s95
    %p101 = scmp.eq.s32.totalorder %s9, 0
    %p102 = por %p100, %p101
    %p103 = scmp.ne.s32.totalorder %s92, %s95
    %p104 = scmp.eq.s32.totalorder %s14, 1
    %p105 = por %p103, %p104
    %p106 = scmp.ne.s32.totalorder %s95, %s96
    %p107 = scmp.eq.s32.totalorder %s14, 0
    %p108 = por %p106, %p107
    %p109 = scmp.ne.s32.totalorder %s95, %s96
    %p110 = scmp.eq.s32.totalorder %s15, 1
    %p111 = por %p109, %p110
    %p113 = scmp.ne.s32.totalorder %s96, %s112
    %p114 = scmp.eq.s32.totalorder %s15, 0
    %p115 = por %p113, %p114
    %p116 = scmp.le.s32.totalorder 1, %s9
    %p117 = scmp.lt.s32.totalorder %s9, 3
    %p118 = pnand %p116, %p117
    %p119 = pneg %p118
    // Predicated region
    $region9: #{forward.9} parent=5 // pred_check
      _
    $region10: #{forward.9} parent=5 // pred_check_branch
      %121 = sbr.rel (%p118) target = $region12
    $region11: #{forward.9} parent=5 // pred_region
      %s122 = ssub.s32 %s9, 1
      // Predicated region
      $region13: #{forward.9} parent=11 // pred_check
        %p123 = pneg %p82
      $region14: #{forward.9} parent=11 // pred_check_branch
        %125 = sbr.rel (%p123) target = $region16
      $region15: #{forward.9} parent=11 // pred_region
        _
      $region16: #{forward.9} parent=11 // pred_fallthru
        _
    $region12: #{forward.9} parent=5 // pred_fallthru
      _
    %p126 = scmp.lt.s32.totalorder %s9, 2
    // Predicated region
    $region17: #{forward.9} parent=5 // pred_check
      %p127 = pneg %p126
    $region18: #{forward.9} parent=5 // pred_check_branch
      %129 = sbr.rel (%p127) target = $region20
    $region19: #{forward.9} parent=5 // pred_region
      // Predicated region
      $region21: #{forward.9} parent=19 // pred_check
        %p130 = pneg %p29
      $region22: #{forward.9} parent=19 // pred_check_branch
        %132 = sbr.rel (%p130) target = $region24
      $region23: #{forward.9} parent=19 // pred_region
        %p133 = scmp.lt.s32.totalorder %s9, 1
        %s134 = scalar_select %p133, %s9, 1
        %s135 = smul.addr %s134, 3
        %s136 = smul.addr %s135, 4
        %s137 = scalar_lea.vmem %s0, %s136
      $region24: #{forward.9} parent=19 // pred_fallthru
        _
      // Predicated region
      $region25: #{forward.9} parent=19 // pred_check
        %p138 = pneg %p55
      $region26: #{forward.9} parent=19 // pred_check_branch
        %140 = sbr.rel (%p138) target = $region28
      $region27: #{forward.9} parent=19 // pred_region
        %p141 = scmp.lt.s32.totalorder %s9, 1
        %s142 = scalar_select %p141, %s9, 1
        %s143 = scalar_lea.vmem %s1, %s142
      $region28: #{forward.9} parent=19 // pred_fallthru
        _
    $region20: #{forward.9} parent=5 // pred_fallthru
      _
    %p144 = scmp.le.s32.totalorder 1, %s9
    %p145 = scmp.lt.s32.totalorder %s9, 3
    %p146 = pnand %p144, %p145
    %p147 = pneg %p146
    // Predicated region
    $region29: #{forward.9} parent=5 // pred_check
      _
    $region30: #{forward.9} parent=5 // pred_check_branch
      %149 = sbr.rel (%p146) target = $region32
    $region31: #{forward.9} parent=5 // pred_region
      %s150 = ssub.s32 %s9, 1
      %p151 = scmp.lt.s32.totalorder %s14, 1
      %s152 = scalar_select %p151, %s14, 1
      %s153 = smul.addr %s152, 3
      %s154 = smul.addr %s153, 4
      %s155 = scalar_lea.vmem %s0, %s154
      %p156 = pneg %p35
      %p157 = pneg %p32
      %p158 = scmp.lt.s32.totalorder %s14, 1
      %s159 = scalar_select %p158, %s14, 1
      %s160 = scalar_lea.vmem %s1, %s159
      %p161 = pneg %p61
      %p162 = pneg %p58
      %p163 = pneg %p82
      %p164 = pneg %p79
      %p165 = pneg %p108
      %p166 = pneg %p105
      %p167 = scmp.lt.s32.totalorder %s14, 1
      %s168 = scalar_select %p167, %s14, 1
      %s169 = smul.addr %s168, 4
      %s170 = scalar_lea.vmem %s3, %s169
      %p171 = scmp.lt.s32.totalorder %s14, 1
      %s172 = scalar_select %p171, %s14, 1
      %s173 = smul.addr %s172, 3
      %s174 = smul.addr %s173, 4
      %s175 = scalar_lea.vmem %s0, %s174
      %p176 = scmp.lt.s32.totalorder %s14, 1
      %s177 = scalar_select %p176, %s14, 1
      %s178 = scalar_lea.vmem %s1, %s177
      %p179 = scmp.lt.s32.totalorder %s14, 1
      %s180 = scalar_select %p179, %s14, 1
      %s181 = smul.addr %s180, 4
      %s182 = scalar_lea.vmem %s3, %s181
      %v184 = vld [vmem:[%s175] sm:$0xff]
      %v185 = vld [vmem:[%s175 + $0x8] sm:$0xf]
      %v186 = vld [vmem:[%s178] sm:$0x1]
      %v188 = vlaneseq
      %v189 = vshrl.u32 %v188, 7
      %v190 = vsub.s32 0, %v189
      %v191 = vrot.slane %v186, %v190
      %v194 = vunpack.c.h.b16 %v184
      %v195 = vpack.c.b16 %v194, %v194
      %vm196 = vcmask 261120
      %v198 = vsel %vm196, %v184, 0
      %v201 = vsel %vm196, %v195, 0
      %203 = vmatprep.subr.bf16.mxu0 0
      %204 = vmatpush1.bf16.xpose.msra.mxu0 0
      %205 = vmatprep.subr.bf16.mxu0 0
      %206 = vmatpush1.bf16.xpose.msra.mxu0 0
      %207 = vmatprep.subr.bf16.mxu0 0
      %208 = vmatpush1.bf16.xpose.msra.mxu0 0
      %209 = vmatprep.subr.bf16.mxu0 0
      %210 = vmatpush1.bf16.xpose.msra.mxu0 0
      %211 = vmatprep.subr.bf16.mxu0 0
      %212 = vmatpush1.bf16.xpose.msra.mxu0 0
      %213 = vmatprep.subr.bf16.mxu0 0
      %214 = vmatpush1.bf16.xpose.msra.mxu0 0
      %215 = vmatprep.subr.bf16.mxu0 0
      %216 = vmatpush1.bf16.xpose.msra.mxu0 0
      %217 = vmatprep.subr.bf16.mxu0 0
      %218 = vmatpush1.bf16.xpose.msra.mxu0 %v201
      %219 = vmatprep.subr.bf16.mxu0 0
      %220 = vmatpush2.bf16.xpose.msra.mxu0 0
      %221 = vmatprep.subr.bf16.mxu0 0
      %222 = vmatpush2.bf16.xpose.msra.mxu0 0
      %223 = vmatprep.subr.bf16.mxu0 0
      %224 = vmatpush2.bf16.xpose.msra.mxu0 0
      %225 = vmatprep.subr.bf16.mxu0 0
      %226 = vmatpush2.bf16.xpose.msra.mxu0 0
      %227 = vmatprep.subr.bf16.mxu0 0
      %228 = vmatpush2.bf16.xpose.msra.mxu0 0
      %229 = vmatprep.subr.bf16.mxu0 0
      %230 = vmatpush2.bf16.xpose.msra.mxu0 0
      %231 = vmatprep.subr.bf16.mxu0 0
      %232 = vmatpush2.bf16.xpose.msra.mxu0 0
      %233 = vmatprep.subr.bf16.mxu0 0
      %234 = vmatpush2.bf16.xpose.msra.mxu0 0
      %235 = vmatprep.mubr.bf16.mxu0 0
      %236 = vmatmul.mubr.bf16.gmra.mxu0 %v198
      %v237 = vpop.f32.mrf.mxu0
      %v238 = vadd.f32 %v191, %v237
      %v239 = vpop.f32.mrf.mxu0
      %v240 = vpop.f32.mrf.mxu0
      %v241 = vpop.f32.mrf.mxu0
      %242 = vdwg.mxu0
      %vm243 = vcmask 64512
      %v244 = vsel %vm243, %v238, -inf
      %245 = vmax.xlane.f32.xlu0 %v244
      %v246 = vpop.xlane.xlu0 %245
      %v247 = vsub.f32 %v238, %v246
      %v248 = vmul.f32 %v247, 1.442695
      %v249 = vpow.pop %v248
      %v250 = vsel %vm243, %v249, 0.0
      %251 = vadd.xlane.f32.xlu0 %v250
      %v252 = vpop.xlane.xlu0 %251
      %v253 = vrcp.pop %v252
      %v254 = vmul.f32 %v249, %v253
      %v255 = vpack.c.bf16 %v254, %v254
      %v257 = vsel %vm243, %v255, 0
      %vm259 = vcmask 1043456
      %v261 = vsel %vm259, %v185, 0
      %263 = vmatprep.subr.bf16.mxu0 0
      %264 = vmatpush1.bf16.msra.mxu0 0
      %265 = vmatprep.subr.bf16.mxu0 0
      %266 = vmatpush1.bf16.msra.mxu0 0
      %267 = vmatprep.subr.bf16.mxu0 0
      %268 = vmatpush1.bf16.msra.mxu0 0
      %269 = vmatprep.subr.bf16.mxu0 0
      %270 = vmatpush1.bf16.msra.mxu0 0
      %271 = vmatprep.subr.bf16.mxu0 0
      %272 = vmatpush1.bf16.msra.mxu0 0
      %273 = vmatprep.subr.bf16.mxu0 0
      %274 = vmatpush1.bf16.msra.mxu0 0
      %275 = vmatprep.subr.bf16.mxu0 0
      %276 = vmatpush1.bf16.msra.mxu0 0
      %277 = vmatprep.subr.bf16.mxu0 0
      %278 = vmatpush1.bf16.msra.mxu0 %v261
      %279 = vmatprep.subr.bf16.mxu0 0
      %280 = vmatpush2.bf16.msra.mxu0 0
      %281 = vmatprep.subr.bf16.mxu0 0
      %282 = vmatpush2.bf16.msra.mxu0 0
      %283 = vmatprep.subr.bf16.mxu0 0
      %284 = vmatpush2.bf16.msra.mxu0 0
      %285 = vmatprep.subr.bf16.mxu0 0
      %286 = vmatpush2.bf16.msra.mxu0 0
      %287 = vmatprep.subr.bf16.mxu0 0
      %288 = vmatpush2.bf16.msra.mxu0 0
      %289 = vmatprep.subr.bf16.mxu0 0
      %290 = vmatpush2.bf16.msra.mxu0 0
      %291 = vmatprep.subr.bf16.mxu0 0
      %292 = vmatpush2.bf16.msra.mxu0 0
      %293 = vmatprep.subr.bf16.mxu0 0
      %294 = vmatpush2.bf16.msra.mxu0 0
      %295 = vmatprep.mubr.bf16.mxu0 0
      %296 = vmatmul.mubr.bf16.gmra.mxu0 %v257
      %v297 = vpop.f32.mrf.mxu0
      %v298 = vadd.f32 0.0, %v297
      %v299 = vpop.f32.mrf.mxu0
      %v300 = vpop.f32.mrf.mxu0
      %v301 = vpop.f32.mrf.mxu0
      %302 = vdwg.mxu0
      %v303 = vpack.c.bf16 %v298, %v298
      %v304 = vld [vmem:[%s2] sm:$0xf]
      %v305 = vld [vmem:[%s2 + $0x4] sm:$0xf]
      %v306 = vld [vmem:[%s2 + $0x8] sm:$0xf]
      %v307 = vld [vmem:[%s2 + $0xc] sm:$0xf]
      %v308 = vunpack.c.l.b16 %v184
      %v309 = vpack.c.b16 %v308, %v308
      %310 = vrot.lane.b32.xlu0 %v309, 96
      %v311 = vpop.permute.xlu0 %310
      %312 = vrot.lane.b32.xlu0 %v195, 96
      %v313 = vpop.permute.xlu0 %312
      %v315 = vsel %vm196, %v311, 0
      %v318 = vsel %vm196, %v313, 0
      %320 = vmatprep.subr.bf16.mxu0 0
      %321 = vmatpush1.bf16.xpose.msra.mxu0 0
      %322 = vmatprep.subr.bf16.mxu0 0
      %323 = vmatpush1.bf16.xpose.msra.mxu0 0
      %324 = vmatprep.subr.bf16.mxu0 0
      %325 = vmatpush1.bf16.xpose.msra.mxu0 0
      %326 = vmatprep.subr.bf16.mxu0 0
      %327 = vmatpush1.bf16.xpose.msra.mxu0 0
      %328 = vmatprep.subr.bf16.mxu0 0
      %329 = vmatpush1.bf16.xpose.msra.mxu0 0
      %330 = vmatprep.subr.bf16.mxu0 0
      %331 = vmatpush1.bf16.xpose.msra.mxu0 0
      %332 = vmatprep.subr.bf16.mxu0 0
      %333 = vmatpush1.bf16.xpose.msra.mxu0 0
      %334 = vmatprep.subr.bf16.mxu0 0
      %335 = vmatpush1.bf16.xpose.msra.mxu0 %v318
      %336 = vmatprep.subr.bf16.mxu0 0
      %337 = vmatpush2.bf16.xpose.msra.mxu0 0
      %338 = vmatprep.subr.bf16.mxu0 0
      %339 = vmatpush2.bf16.xpose.msra.mxu0 0
      %340 = vmatprep.subr.bf16.mxu0 0
      %341 = vmatpush2.bf16.xpose.msra.mxu0 0
      %342 = vmatprep.subr.bf16.mxu0 0
      %343 = vmatpush2.bf16.xpose.msra.mxu0 0
      %344 = vmatprep.subr.bf16.mxu0 0
      %345 = vmatpush2.bf16.xpose.msra.mxu0 0
      %346 = vmatprep.subr.bf16.mxu0 0
      %347 = vmatpush2.bf16.xpose.msra.mxu0 0
      %348 = vmatprep.subr.bf16.mxu0 0
      %349 = vmatpush2.bf16.xpose.msra.mxu0 0
      %350 = vmatprep.subr.bf16.mxu0 0
      %351 = vmatpush2.bf16.xpose.msra.mxu0 0
      %352 = vmatprep.mubr.bf16.mxu0 0
      %353 = vmatmul.mubr.bf16.gmra.mxu0 %v315
      %v354 = vpop.f32.mrf.mxu0
      %v355 = vadd.f32 %v191, %v354
      %v356 = vpop.f32.mrf.mxu0
      %v357 = vpop.f32.mrf.mxu0
      %v358 = vpop.f32.mrf.mxu0
      %359 = vdwg.mxu0
      %v360 = vsel %vm243, %v355, -inf
      %361 = vmax.xlane.f32.xlu0 %v360
      %v362 = vpop.xlane.xlu0 %361
      %v363 = vsub.f32 %v355, %v362
      %v364 = vmul.f32 %v363, 1.442695
      %v365 = vpow.pop %v364
      %v366 = vsel %vm243, %v365, 0.0
      %367 = vadd.xlane.f32.xlu0 %v366
      %v368 = vpop.xlane.xlu0 %367
      %v369 = vrcp.pop %v368
      %v370 = vmul.f32 %v365, %v369
      %v371 = vpack.c.bf16 %v370, %v370
      %v373 = vunpack.c.l.b16 %v185
      %v374 = vpack.c.b16 %v373, %v373
      %375 = vrot.lane.b32.xlu0 %v374, 96
      %v376 = vpop.permute.xlu0 %375
      %v378 = vsel %vm243, %v371, 0
      %v381 = vsel %vm259, %v376, 0
      %383 = vmatprep.subr.bf16.mxu0 0
      %384 = vmatpush1.bf16.msra.mxu0 0
      %385 = vmatprep.subr.bf16.mxu0 0
      %386 = vmatpush1.bf16.msra.mxu0 0
      %387 = vmatprep.subr.bf16.mxu0 0
      %388 = vmatpush1.bf16.msra.mxu0 0
      %389 = vmatprep.subr.bf16.mxu0 0
      %390 = vmatpush1.bf16.msra.mxu0 0
      %391 = vmatprep.subr.bf16.mxu0 0
      %392 = vmatpush1.bf16.msra.mxu0 0
      %393 = vmatprep.subr.bf16.mxu0 0
      %394 = vmatpush1.bf16.msra.mxu0 0
      %395 = vmatprep.subr.bf16.mxu0 0
      %396 = vmatpush1.bf16.msra.mxu0 0
      %397 = vmatprep.subr.bf16.mxu0 0
      %398 = vmatpush1.bf16.msra.mxu0 %v381
      %399 = vmatprep.subr.bf16.mxu0 0
      %400 = vmatpush2.bf16.msra.mxu0 0
      %401 = vmatprep.subr.bf16.mxu0 0
      %402 = vmatpush2.bf16.msra.mxu0 0
      %403 = vmatprep.subr.bf16.mxu0 0
      %404 = vmatpush2.bf16.msra.mxu0 0
      %405 = vmatprep.subr.bf16.mxu0 0
      %406 = vmatpush2.bf16.msra.mxu0 0
      %407 = vmatprep.subr.bf16.mxu0 0
      %408 = vmatpush2.bf16.msra.mxu0 0
      %409 = vmatprep.subr.bf16.mxu0 0
      %410 = vmatpush2.bf16.msra.mxu0 0
      %411 = vmatprep.subr.bf16.mxu0 0
      %412 = vmatpush2.bf16.msra.mxu0 0
      %413 = vmatprep.subr.bf16.mxu0 0
      %414 = vmatpush2.bf16.msra.mxu0 0
      %415 = vmatprep.mubr.bf16.mxu0 0
      %416 = vmatmul.mubr.bf16.gmra.mxu0 %v378
      %v417 = vpop.f32.mrf.mxu0
      %v418 = vadd.f32 0.0, %v417
      %v419 = vpop.f32.mrf.mxu0
      %v420 = vpop.f32.mrf.mxu0
      %v421 = vpop.f32.mrf.mxu0
      %422 = vdwg.mxu0
      %v423 = vpack.c.bf16 %v418, %v418
      %s424 = scalar_lea.vmem %s2, 16
      %v425 = vld [vmem:[%s424] sm:$0xf]
      %v426 = vld [vmem:[%s424 + $0x4] sm:$0xf]
      %v427 = vld [vmem:[%s424 + $0x8] sm:$0xf]
      %v428 = vld [vmem:[%s424 + $0xc] sm:$0xf]
      %v433 = vunpack.c.l.b16 %v425
      %v434 = vunpack.c.l.b16 %v426
      %v435 = vunpack.c.l.b16 %v427
      %v436 = vunpack.c.l.b16 %v428
      %v437 = vpack.c.b16 %v434, %v433
      %v438 = vpack.c.b16 %v436, %v435
      %v442 = vsel %vm196, %v423, 0
      %444 = vmatprep.subr.bf16.mxu0 0
      %445 = vmatpush1.bf16.msra.mxu0 0
      %446 = vmatprep.subr.bf16.mxu0 0
      %447 = vmatpush1.bf16.msra.mxu0 0
      %448 = vmatprep.subr.bf16.mxu0 0
      %449 = vmatpush1.bf16.msra.mxu0 0
      %450 = vmatprep.subr.bf16.mxu0 0
      %451 = vmatpush1.bf16.msra.mxu0 0
      %452 = vmatprep.subr.bf16.mxu0 0
      %453 = vmatpush1.bf16.msra.mxu0 0
      %454 = vmatprep.subr.bf16.mxu0 0
      %455 = vmatpush1.bf16.msra.mxu0 0
      %456 = vmatprep.subr.bf16.mxu0 0
      %457 = vmatpush1.bf16.msra.mxu0 %v438
      %458 = vmatprep.subr.bf16.mxu0 0
      %459 = vmatpush1.bf16.msra.mxu0 %v437
      %460 = vmatprep.subr.bf16.mxu0 0
      %461 = vmatpush2.bf16.msra.mxu0 0
      %462 = vmatprep.subr.bf16.mxu0 0
      %463 = vmatpush2.bf16.msra.mxu0 0
      %464 = vmatprep.subr.bf16.mxu0 0
      %465 = vmatpush2.bf16.msra.mxu0 0
      %466 = vmatprep.subr.bf16.mxu0 0
      %467 = vmatpush2.bf16.msra.mxu0 0
      %468 = vmatprep.subr.bf16.mxu0 0
      %469 = vmatpush2.bf16.msra.mxu0 0
      %470 = vmatprep.subr.bf16.mxu0 0
      %471 = vmatpush2.bf16.msra.mxu0 0
      %472 = vmatprep.subr.bf16.mxu0 0
      %473 = vmatpush2.bf16.msra.mxu0 0
      %474 = vmatprep.subr.bf16.mxu0 0
      %475 = vmatpush2.bf16.msra.mxu0 0
      %476 = vmatprep.mubr.bf16.mxu0 0
      %477 = vmatmul.mubr.bf16.gmra.mxu0 %v442
      %v478 = vpop.f32.mrf.mxu0
      %v479 = vadd.f32 0.0, %v478
      %v480 = vpop.f32.mrf.mxu0
      %v481 = vpop.f32.mrf.mxu0
      %v482 = vpop.f32.mrf.mxu0
      %483 = vdwg.mxu0
      %v488 = vunpack.c.l.b16 %v304
      %v489 = vunpack.c.l.b16 %v305
      %v490 = vunpack.c.l.b16 %v306
      %v491 = vunpack.c.l.b16 %v307
      %v492 = vpack.c.b16 %v489, %v488
      %v493 = vpack.c.b16 %v491, %v490
      %v497 = vsel %vm196, %v303, 0
      %499 = vmatprep.subr.bf16.mxu0 0
      %500 = vmatpush1.bf16.msra.mxu0 0
      %501 = vmatprep.subr.bf16.mxu0 0
      %502 = vmatpush1.bf16.msra.mxu0 0
      %503 = vmatprep.subr.bf16.mxu0 0
      %504 = vmatpush1.bf16.msra.mxu0 0
      %505 = vmatprep.subr.bf16.mxu0 0
      %506 = vmatpush1.bf16.msra.mxu0 0
      %507 = vmatprep.subr.bf16.mxu0 0
      %508 = vmatpush1.bf16.msra.mxu0 0
      %509 = vmatprep.subr.bf16.mxu0 0
      %510 = vmatpush1.bf16.msra.mxu0 0
      %511 = vmatprep.subr.bf16.mxu0 0
      %512 = vmatpush1.bf16.msra.mxu0 %v493
      %513 = vmatprep.subr.bf16.mxu0 0
      %514 = vmatpush1.bf16.msra.mxu0 %v492
      %515 = vmatprep.subr.bf16.mxu0 0
      %516 = vmatpush2.bf16.msra.mxu0 0
      %517 = vmatprep.subr.bf16.mxu0 0
      %518 = vmatpush2.bf16.msra.mxu0 0
      %519 = vmatprep.subr.bf16.mxu0 0
      %520 = vmatpush2.bf16.msra.mxu0 0
      %521 = vmatprep.subr.bf16.mxu0 0
      %522 = vmatpush2.bf16.msra.mxu0 0
      %523 = vmatprep.subr.bf16.mxu0 0
      %524 = vmatpush2.bf16.msra.mxu0 0
      %525 = vmatprep.subr.bf16.mxu0 0
      %526 = vmatpush2.bf16.msra.mxu0 0
      %527 = vmatprep.subr.bf16.mxu0 0
      %528 = vmatpush2.bf16.msra.mxu0 0
      %529 = vmatprep.subr.bf16.mxu0 0
      %530 = vmatpush2.bf16.msra.mxu0 0
      %531 = vmatprep.mubr.bf16.mxu0 0
      %532 = vmatmul.mubr.bf16.gmra.mxu0 %v497
      %v533 = vpop.f32.mrf.mxu0
      %v534 = vadd.f32 %v479, %v533
      %v535 = vpop.f32.mrf.mxu0
      %v536 = vpop.f32.mrf.mxu0
      %v537 = vpop.f32.mrf.mxu0
      %538 = vdwg.mxu0
      %539 = vrot.lane.b32.xlu0 %v309, 64
      %v540 = vpop.permute.xlu0 %539
      %541 = vrot.lane.b32.xlu0 %v195, 64
      %v542 = vpop.permute.xlu0 %541
      %v544 = vsel %vm196, %v540, 0
      %v547 = vsel %vm196, %v542, 0
      %549 = vmatprep.subr.bf16.mxu0 0
      %550 = vmatpush1.bf16.xpose.msra.mxu0 0
      %551 = vmatprep.subr.bf16.mxu0 0
      %552 = vmatpush1.bf16.xpose.msra.mxu0 0
      %553 = vmatprep.subr.bf16.mxu0 0
      %554 = vmatpush1.bf16.xpose.msra.mxu0 0
      %555 = vmatprep.subr.bf16.mxu0 0
      %556 = vmatpush1.bf16.xpose.msra.mxu0 0
      %557 = vmatprep.subr.bf16.mxu0 0
      %558 = vmatpush1.bf16.xpose.msra.mxu0 0
      %559 = vmatprep.subr.bf16.mxu0 0
      %560 = vmatpush1.bf16.xpose.msra.mxu0 0
      %561 = vmatprep.subr.bf16.mxu0 0
      %562 = vmatpush1.bf16.xpose.msra.mxu0 0
      %563 = vmatprep.subr.bf16.mxu0 0
      %564 = vmatpush1.bf16.xpose.msra.mxu0 %v547
      %565 = vmatprep.subr.bf16.mxu0 0
      %566 = vmatpush2.bf16.xpose.msra.mxu0 0
      %567 = vmatprep.subr.bf16.mxu0 0
      %568 = vmatpush2.bf16.xpose.msra.mxu0 0
      %569 = vmatprep.subr.bf16.mxu0 0
      %570 = vmatpush2.bf16.xpose.msra.mxu0 0
      %571 = vmatprep.subr.bf16.mxu0 0
      %572 = vmatpush2.bf16.xpose.msra.mxu0 0
      %573 = vmatprep.subr.bf16.mxu0 0
      %574 = vmatpush2.bf16.xpose.msra.mxu0 0
      %575 = vmatprep.subr.bf16.mxu0 0
      %576 = vmatpush2.bf16.xpose.msra.mxu0 0
      %577 = vmatprep.subr.bf16.mxu0 0
      %578 = vmatpush2.bf16.xpose.msra.mxu0 0
      %579 = vmatprep.subr.bf16.mxu0 0
      %580 = vmatpush2.bf16.xpose.msra.mxu0 0
      %581 = vmatprep.mubr.bf16.mxu0 0
      %582 = vmatmul.mubr.bf16.gmra.mxu0 %v544
      %v583 = vpop.f32.mrf.mxu0
      %v584 = vadd.f32 %v191, %v583
      %v585 = vpop.f32.mrf.mxu0
      %v586 = vpop.f32.mrf.mxu0
      %v587 = vpop.f32.mrf.mxu0
      %588 = vdwg.mxu0
      %v589 = vsel %vm243, %v584, -inf
      %590 = vmax.xlane.f32.xlu0 %v589
      %v591 = vpop.xlane.xlu0 %590
      %v592 = vsub.f32 %v584, %v591
      %v593 = vmul.f32 %v592, 1.442695
      %v594 = vpow.pop %v593
      %v595 = vsel %vm243, %v594, 0.0
      %596 = vadd.xlane.f32.xlu0 %v595
      %v597 = vpop.xlane.xlu0 %596
      %v598 = vrcp.pop %v597
      %v599 = vmul.f32 %v594, %v598
      %v600 = vpack.c.bf16 %v599, %v599
      %601 = vrot.lane.b32.xlu0 %v374, 64
      %v602 = vpop.permute.xlu0 %601
      %v604 = vsel %vm243, %v600, 0
      %v607 = vsel %vm259, %v602, 0
      %609 = vmatprep.subr.bf16.mxu0 0
      %610 = vmatpush1.bf16.msra.mxu0 0
      %611 = vmatprep.subr.bf16.mxu0 0
      %612 = vmatpush1.bf16.msra.mxu0 0
      %613 = vmatprep.subr.bf16.mxu0 0
      %614 = vmatpush1.bf16.msra.mxu0 0
      %615 = vmatprep.subr.bf16.mxu0 0
      %616 = vmatpush1.bf16.msra.mxu0 0
      %617 = vmatprep.subr.bf16.mxu0 0
      %618 = vmatpush1.bf16.msra.mxu0 0
      %619 = vmatprep.subr.bf16.mxu0 0
      %620 = vmatpush1.bf16.msra.mxu0 0
      %621 = vmatprep.subr.bf16.mxu0 0
      %622 = vmatpush1.bf16.msra.mxu0 0
      %623 = vmatprep.subr.bf16.mxu0 0
      %624 = vmatpush1.bf16.msra.mxu0 %v607
      %625 = vmatprep.subr.bf16.mxu0 0
      %626 = vmatpush2.bf16.msra.mxu0 0
      %627 = vmatprep.subr.bf16.mxu0 0
      %628 = vmatpush2.bf16.msra.mxu0 0
      %629 = vmatprep.subr.bf16.mxu0 0
      %630 = vmatpush2.bf16.msra.mxu0 0
      %631 = vmatprep.subr.bf16.mxu0 0
      %632 = vmatpush2.bf16.msra.mxu0 0
      %633 = vmatprep.subr.bf16.mxu0 0
      %634 = vmatpush2.bf16.msra.mxu0 0
      %635 = vmatprep.subr.bf16.mxu0 0
      %636 = vmatpush2.bf16.msra.mxu0 0
      %637 = vmatprep.subr.bf16.mxu0 0
      %638 = vmatpush2.bf16.msra.mxu0 0
      %639 = vmatprep.subr.bf16.mxu0 0
      %640 = vmatpush2.bf16.msra.mxu0 0
      %641 = vmatprep.mubr.bf16.mxu0 0
      %642 = vmatmul.mubr.bf16.gmra.mxu0 %v604
      %v643 = vpop.f32.mrf.mxu0
      %v644 = vadd.f32 0.0, %v643
      %v645 = vpop.f32.mrf.mxu0
      %v646 = vpop.f32.mrf.mxu0
      %v647 = vpop.f32.mrf.mxu0
      %648 = vdwg.mxu0
      %v649 = vpack.c.bf16 %v644, %v644
      %s650 = scalar_lea.vmem %s2, 32
      %v651 = vld [vmem:[%s650] sm:$0xf]
      %v652 = vld [vmem:[%s650 + $0x4] sm:$0xf]
      %v653 = vld [vmem:[%s650 + $0x8] sm:$0xf]
      %v654 = vld [vmem:[%s650 + $0xc] sm:$0xf]
      %v659 = vunpack.c.l.b16 %v651
      %v660 = vunpack.c.l.b16 %v652
      %v661 = vunpack.c.l.b16 %v653
      %v662 = vunpack.c.l.b16 %v654
      %v663 = vpack.c.b16 %v660, %v659
      %v664 = vpack.c.b16 %v662, %v661
      %v668 = vsel %vm196, %v649, 0
      %670 = vmatprep.subr.bf16.mxu0 0
      %671 = vmatpush1.bf16.msra.mxu0 0
      %672 = vmatprep.subr.bf16.mxu0 0
      %673 = vmatpush1.bf16.msra.mxu0 0
      %674 = vmatprep.subr.bf16.mxu0 0
      %675 = vmatpush1.bf16.msra.mxu0 0
      %676 = vmatprep.subr.bf16.mxu0 0
      %677 = vmatpush1.bf16.msra.mxu0 0
      %678 = vmatprep.subr.bf16.mxu0 0
      %679 = vmatpush1.bf16.msra.mxu0 0
      %680 = vmatprep.subr.bf16.mxu0 0
      %681 = vmatpush1.bf16.msra.mxu0 0
      %682 = vmatprep.subr.bf16.mxu0 0
      %683 = vmatpush1.bf16.msra.mxu0 %v664
      %684 = vmatprep.subr.bf16.mxu0 0
      %685 = vmatpush1.bf16.msra.mxu0 %v663
      %686 = vmatprep.subr.bf16.mxu0 0
      %687 = vmatpush2.bf16.msra.mxu0 0
      %688 = vmatprep.subr.bf16.mxu0 0
      %689 = vmatpush2.bf16.msra.mxu0 0
      %690 = vmatprep.subr.bf16.mxu0 0
      %691 = vmatpush2.bf16.msra.mxu0 0
      %692 = vmatprep.subr.bf16.mxu0 0
      %693 = vmatpush2.bf16.msra.mxu0 0
      %694 = vmatprep.subr.bf16.mxu0 0
      %695 = vmatpush2.bf16.msra.mxu0 0
      %696 = vmatprep.subr.bf16.mxu0 0
      %697 = vmatpush2.bf16.msra.mxu0 0
      %698 = vmatprep.subr.bf16.mxu0 0
      %699 = vmatpush2.bf16.msra.mxu0 0
      %700 = vmatprep.subr.bf16.mxu0 0
      %701 = vmatpush2.bf16.msra.mxu0 0
      %702 = vmatprep.mubr.bf16.mxu0 0
      %703 = vmatmul.mubr.bf16.gmra.mxu0 %v668
      %v704 = vpop.f32.mrf.mxu0
      %v705 = vadd.f32 0.0, %v704
      %v706 = vpop.f32.mrf.mxu0
      %v707 = vpop.f32.mrf.mxu0
      %v708 = vpop.f32.mrf.mxu0
      %709 = vdwg.mxu0
      %v710 = vadd.f32 %v534, %v705
      %711 = vrot.lane.b32.xlu0 %v309, 32
      %v712 = vpop.permute.xlu0 %711
      %713 = vrot.lane.b32.xlu0 %v195, 32
      %v714 = vpop.permute.xlu0 %713
      %v716 = vsel %vm196, %v712, 0
      %v719 = vsel %vm196, %v714, 0
      %721 = vmatprep.subr.bf16.mxu0 0
      %722 = vmatpush1.bf16.xpose.msra.mxu0 0
      %723 = vmatprep.subr.bf16.mxu0 0
      %724 = vmatpush1.bf16.xpose.msra.mxu0 0
      %725 = vmatprep.subr.bf16.mxu0 0
      %726 = vmatpush1.bf16.xpose.msra.mxu0 0
      %727 = vmatprep.subr.bf16.mxu0 0
      %728 = vmatpush1.bf16.xpose.msra.mxu0 0
      %729 = vmatprep.subr.bf16.mxu0 0
      %730 = vmatpush1.bf16.xpose.msra.mxu0 0
      %731 = vmatprep.subr.bf16.mxu0 0
      %732 = vmatpush1.bf16.xpose.msra.mxu0 0
      %733 = vmatprep.subr.bf16.mxu0 0
      %734 = vmatpush1.bf16.xpose.msra.mxu0 0
      %735 = vmatprep.subr.bf16.mxu0 0
      %736 = vmatpush1.bf16.xpose.msra.mxu0 %v719
      %737 = vmatprep.subr.bf16.mxu0 0
      %738 = vmatpush2.bf16.xpose.msra.mxu0 0
      %739 = vmatprep.subr.bf16.mxu0 0
      %740 = vmatpush2.bf16.xpose.msra.mxu0 0
      %741 = vmatprep.subr.bf16.mxu0 0
      %742 = vmatpush2.bf16.xpose.msra.mxu0 0
      %743 = vmatprep.subr.bf16.mxu0 0
      %744 = vmatpush2.bf16.xpose.msra.mxu0 0
      %745 = vmatprep.subr.bf16.mxu0 0
      %746 = vmatpush2.bf16.xpose.msra.mxu0 0
      %747 = vmatprep.subr.bf16.mxu0 0
      %748 = vmatpush2.bf16.xpose.msra.mxu0 0
      %749 = vmatprep.subr.bf16.mxu0 0
      %750 = vmatpush2.bf16.xpose.msra.mxu0 0
      %751 = vmatprep.subr.bf16.mxu0 0
      %752 = vmatpush2.bf16.xpose.msra.mxu0 0
      %753 = vmatprep.mubr.bf16.mxu0 0
      %754 = vmatmul.mubr.bf16.gmra.mxu0 %v716
      %v755 = vpop.f32.mrf.mxu0
      %v756 = vadd.f32 %v191, %v755
      %v757 = vpop.f32.mrf.mxu0
      %v758 = vpop.f32.mrf.mxu0
      %v759 = vpop.f32.mrf.mxu0
      %760 = vdwg.mxu0
      %v761 = vsel %vm243, %v756, -inf
      %762 = vmax.xlane.f32.xlu0 %v761
      %v763 = vpop.xlane.xlu0 %762
      %v764 = vsub.f32 %v756, %v763
      %v765 = vmul.f32 %v764, 1.442695
      %v766 = vpow.pop %v765
      %v767 = vsel %vm243, %v766, 0.0
      %768 = vadd.xlane.f32.xlu0 %v767
      %v769 = vpop.xlane.xlu0 %768
      %v770 = vrcp.pop %v769
      %v771 = vmul.f32 %v766, %v770
      %v772 = vpack.c.bf16 %v771, %v771
      %773 = vrot.lane.b32.xlu0 %v374, 32
      %v774 = vpop.permute.xlu0 %773
      %v776 = vsel %vm243, %v772, 0
      %v779 = vsel %vm259, %v774, 0
      %781 = vmatprep.subr.bf16.mxu0 0
      %782 = vmatpush1.bf16.msra.mxu0 0
      %783 = vmatprep.subr.bf16.mxu0 0
      %784 = vmatpush1.bf16.msra.mxu0 0
      %785 = vmatprep.subr.bf16.mxu0 0
      %786 = vmatpush1.bf16.msra.mxu0 0
      %787 = vmatprep.subr.bf16.mxu0 0
      %788 = vmatpush1.bf16.msra.mxu0 0
      %789 = vmatprep.subr.bf16.mxu0 0
      %790 = vmatpush1.bf16.msra.mxu0 0
      %791 = vmatprep.subr.bf16.mxu0 0
      %792 = vmatpush1.bf16.msra.mxu0 0
      %793 = vmatprep.subr.bf16.mxu0 0
      %794 = vmatpush1.bf16.msra.mxu0 0
      %795 = vmatprep.subr.bf16.mxu0 0
      %796 = vmatpush1.bf16.msra.mxu0 %v779
      %797 = vmatprep.subr.bf16.mxu0 0
      %798 = vmatpush2.bf16.msra.mxu0 0
      %799 = vmatprep.subr.bf16.mxu0 0
      %800 = vmatpush2.bf16.msra.mxu0 0
      %801 = vmatprep.subr.bf16.mxu0 0
      %802 = vmatpush2.bf16.msra.mxu0 0
      %803 = vmatprep.subr.bf16.mxu0 0
      %804 = vmatpush2.bf16.msra.mxu0 0
      %805 = vmatprep.subr.bf16.mxu0 0
      %806 = vmatpush2.bf16.msra.mxu0 0
      %807 = vmatprep.subr.bf16.mxu0 0
      %808 = vmatpush2.bf16.msra.mxu0 0
      %809 = vmatprep.subr.bf16.mxu0 0
      %810 = vmatpush2.bf16.msra.mxu0 0
      %811 = vmatprep.subr.bf16.mxu0 0
      %812 = vmatpush2.bf16.msra.mxu0 0
      %813 = vmatprep.mubr.bf16.mxu0 0
      %814 = vmatmul.mubr.bf16.gmra.mxu0 %v776
      %v815 = vpop.f32.mrf.mxu0
      %v816 = vadd.f32 0.0, %v815
      %v817 = vpop.f32.mrf.mxu0
      %v818 = vpop.f32.mrf.mxu0
      %v819 = vpop.f32.mrf.mxu0
      %820 = vdwg.mxu0
      %v821 = vpack.c.bf16 %v816, %v816
      %s822 = scalar_lea.vmem %s2, 48
      %v823 = vld [vmem:[%s822] sm:$0xf]
      %v824 = vld [vmem:[%s822 + $0x4] sm:$0xf]
      %v825 = vld [vmem:[%s822 + $0x8] sm:$0xf]
      %v826 = vld [vmem:[%s822 + $0xc] sm:$0xf]
      %v831 = vunpack.c.l.b16 %v823
      %v832 = vunpack.c.l.b16 %v824
      %v833 = vunpack.c.l.b16 %v825
      %v834 = vunpack.c.l.b16 %v826
      %v835 = vpack.c.b16 %v832, %v831
      %v836 = vpack.c.b16 %v834, %v833
      %v840 = vsel %vm196, %v821, 0
      %842 = vmatprep.subr.bf16.mxu0 0
      %843 = vmatpush1.bf16.msra.mxu0 0
      %844 = vmatprep.subr.bf16.mxu0 0
      %845 = vmatpush1.bf16.msra.mxu0 0
      %846 = vmatprep.subr.bf16.mxu0 0
      %847 = vmatpush1.bf16.msra.mxu0 0
      %848 = vmatprep.subr.bf16.mxu0 0
      %849 = vmatpush1.bf16.msra.mxu0 0
      %850 = vmatprep.subr.bf16.mxu0 0
      %851 = vmatpush1.bf16.msra.mxu0 0
      %852 = vmatprep.subr.bf16.mxu0 0
      %853 = vmatpush1.bf16.msra.mxu0 0
      %854 = vmatprep.subr.bf16.mxu0 0
      %855 = vmatpush1.bf16.msra.mxu0 %v836
      %856 = vmatprep.subr.bf16.mxu0 0
      %857 = vmatpush1.bf16.msra.mxu0 %v835
      %858 = vmatprep.subr.bf16.mxu0 0
      %859 = vmatpush2.bf16.msra.mxu0 0
      %860 = vmatprep.subr.bf16.mxu0 0
      %861 = vmatpush2.bf16.msra.mxu0 0
      %862 = vmatprep.subr.bf16.mxu0 0
      %863 = vmatpush2.bf16.msra.mxu0 0
      %864 = vmatprep.subr.bf16.mxu0 0
      %865 = vmatpush2.bf16.msra.mxu0 0
      %866 = vmatprep.subr.bf16.mxu0 0
      %867 = vmatpush2.bf16.msra.mxu0 0
      %868 = vmatprep.subr.bf16.mxu0 0
      %869 = vmatpush2.bf16.msra.mxu0 0
      %870 = vmatprep.subr.bf16.mxu0 0
      %871 = vmatpush2.bf16.msra.mxu0 0
      %872 = vmatprep.subr.bf16.mxu0 0
      %873 = vmatpush2.bf16.msra.mxu0 0
      %874 = vmatprep.mubr.bf16.mxu0 0
      %875 = vmatmul.mubr.bf16.gmra.mxu0 %v840
      %v876 = vpop.f32.mrf.mxu0
      %v877 = vadd.f32 0.0, %v876
      %v878 = vpop.f32.mrf.mxu0
      %v879 = vpop.f32.mrf.mxu0
      %v880 = vpop.f32.mrf.mxu0
      %881 = vdwg.mxu0
      %v882 = vadd.f32 %v710, %v877
      %v883 = vpack.c.bf16 %v882, %v882
      %884 = vst [vmem:[%s182] sm:$0xf] %v883
      %p885 = scmp.lt.s32.totalorder %s14, 1
      %s886 = scalar_select %p885, %s14, 1
      %s887 = smul.addr %s886, 4
      %s888 = scalar_lea.vmem %s3, %s887
      // Predicated region
      $region33: #{forward.9} parent=31 // pred_check
        %p889 = pneg %p105
      $region34: #{forward.9} parent=31 // pred_check_branch
        %891 = sbr.rel (%p889) target = $region36
      $region35: #{forward.9} parent=31 // pred_region
        _
      $region36: #{forward.9} parent=31 // pred_fallthru
        _
    $region32: #{forward.9} parent=5 // pred_fallthru
      _
    %p892 = scmp.le.s32.totalorder 2, %s9
    // Predicated region
    $region37: #{forward.9} parent=5 // pred_check
      %p893 = pneg %p892
    $region38: #{forward.9} parent=5 // pred_check_branch
      %895 = sbr.rel (%p893) target = $region40
    $region39: #{forward.9} parent=5 // pred_region
      %s896 = ssub.s32 %s9, 2
      // Predicated region
      $region41: #{forward.9} parent=39 // pred_check
        %p897 = pneg %p111
      $region42: #{forward.9} parent=39 // pred_check_branch
        %899 = sbr.rel (%p897) target = $region44
      $region43: #{forward.9} parent=39 // pred_region
        %p900 = scmp.lt.s32.totalorder %s15, 1
        %s901 = scalar_select %p900, %s15, 1
        %s902 = smul.addr %s901, 4
        %s903 = scalar_lea.vmem %s3, %s902
      $region44: #{forward.9} parent=39 // pred_fallthru
        _
    $region40: #{forward.9} parent=5 // pred_fallthru
      _
  $region6: #{forward.9} parent=0 // loop_footer
    %s13 = sadd.s32 1, %s9
  $region7: #{forward.9} parent=0 // loop_footer_branch
    %8 = sbr.rel target = $region3
  $region8: #{forward.9} parent=0 // loop_exit
    _

// kernel: custom-call.6
$region0: #{custom-call.6}
  %s0 = inlined_call_operand.vmem [shape: s32[17,2,16], index: 0, kind: output, shape index: {}]

// kernel: forward.11
$region0: #{forward.11}
  #allocation0 [shape = 'u32[]', space=smem, size = 0x4, offset = 0x4, fixed_abs, tag = 'smem constant byte address 0x4 - core index']
  #allocation1 [shape = 'u32[144,128]{1,0:T(1,128)}', space=vmem, size = 0x12000, scoped, tag = 'internal scratch']
  %s0 = inlined_call_operand.vmem [shape: bf16[36,128], index: 0, kind: input, shape index: {}]
  %s1 = inlined_call_operand.vmem [shape: bf16[128,128], index: 1, kind: input, shape index: {}]
  %s2 = inlined_call_operand.vmem [shape: f32[1,128], index: 2, kind: input, shape index: {}]
  %s3 = inlined_call_operand.vmem [shape: f32[36,128], index: 3, kind: output, shape index: {}]
  %s4 = sld [smem:[#allocation0]]
  $region22: #{forward.11} parent=0
    _
  %s6 = ssub.s32 1, %s4
  %s7 = scalar_select 0, %s6, %s4
  // Predicated region
  $region2: #{forward.11} parent=0 // pred_check
    _
  $region3: #{forward.11} parent=0 // pred_check_branch
    %9 = sbr.rel (0) target = $region5
  $region4: #{forward.11} parent=0 // pred_region
    _
  $region5: #{forward.11} parent=0 // pred_fallthru
    _
  // Predicated region
  $region6: #{forward.11} parent=0 // pred_check
    _
  $region7: #{forward.11} parent=0 // pred_check_branch
    %11 = sbr.rel (0) target = $region9
  $region8: #{forward.11} parent=0 // pred_region
    _
  $region9: #{forward.11} parent=0 // pred_fallthru
    _
  // Predicated region
  $region10: #{forward.11} parent=0 // pred_check
    _
  $region11: #{forward.11} parent=0 // pred_check_branch
    %13 = sbr.rel (0) target = $region13
  $region12: #{forward.11} parent=0 // pred_region
    _
  $region13: #{forward.11} parent=0 // pred_fallthru
    _
  %v15 = vld [vmem:[%s0] sm:$0xf]
  %v16 = vld [vmem:[%s0 + $0x4] sm:$0xf]
  %v17 = vld [vmem:[%s0 + $0x8] sm:$0xf]
  %v18 = vld [vmem:[%s0 + $0xc] sm:$0xf]
  %v19 = vld [vmem:[%s0 + $0x10] sm:$0x3]
  %v20 = vld [vmem:[%s1] sm:$0xf]
  %v21 = vld [vmem:[%s1 + $0x4] sm:$0xf]
  %v22 = vld [vmem:[%s1 + $0x8] sm:$0xf]
  %v23 = vld [vmem:[%s1 + $0xc] sm:$0xf]
  %v24 = vld [vmem:[%s1 + $0x10] sm:$0xf]
  %v25 = vld [vmem:[%s1 + $0x14] sm:$0xf]
  %v26 = vld [vmem:[%s1 + $0x18] sm:$0xf]
  %v27 = vld [vmem:[%s1 + $0x1c] sm:$0xf]
  %v28 = vld [vmem:[%s1 + $0x20] sm:$0xf]
  %v29 = vld [vmem:[%s1 + $0x24] sm:$0xf]
  %v30 = vld [vmem:[%s1 + $0x28] sm:$0xf]
  %v31 = vld [vmem:[%s1 + $0x2c] sm:$0xf]
  %v32 = vld [vmem:[%s1 + $0x30] sm:$0xf]
  %v33 = vld [vmem:[%s1 + $0x34] sm:$0xf]
  %v34 = vld [vmem:[%s1 + $0x38] sm:$0xf]
  %v35 = vld [vmem:[%s1 + $0x3c] sm:$0xf]
  %v36 = vld [vmem:[%s2] sm:$0x1]
  %v38 = vlaneseq
  %v39 = vshrl.u32 %v38, 7
  %v40 = vsub.s32 0, %v39
  %v41 = vrot.slane %v36, %v40
  %v48 = vunpack.c.l.b16 %v15
  %v49 = vunpack.c.l.b16 %v16
  %v50 = vunpack.c.l.b16 %v17
  %v51 = vunpack.c.l.b16 %v18
  %v52 = vunpack.c.l.b16 %v19
  %v53 = vpack.c.b16 %v49, %v48
  %v54 = vpack.c.b16 %v51, %v50
  %v55 = vpack.c.b16 %v52, %v52
  %v75 = vunpack.c.l.b16 %v20
  %v76 = vunpack.c.l.b16 %v21
  %v77 = vunpack.c.l.b16 %v22
  %v78 = vunpack.c.l.b16 %v23
  %v79 = vunpack.c.l.b16 %v24
  %v80 = vunpack.c.l.b16 %v25
  %v81 = vunpack.c.l.b16 %v26
  %v82 = vunpack.c.l.b16 %v27
  %v83 = vunpack.c.l.b16 %v28
  %v84 = vunpack.c.l.b16 %v29
  %v85 = vunpack.c.l.b16 %v30
  %v86 = vunpack.c.l.b16 %v31
  %v87 = vunpack.c.l.b16 %v32
  %v88 = vunpack.c.l.b16 %v33
  %v89 = vunpack.c.l.b16 %v34
  %v90 = vunpack.c.l.b16 %v35
  %v91 = vpack.c.b16 %v76, %v75
  %v92 = vpack.c.b16 %v78, %v77
  %v93 = vpack.c.b16 %v80, %v79
  %v94 = vpack.c.b16 %v82, %v81
  %v95 = vpack.c.b16 %v84, %v83
  %v96 = vpack.c.b16 %v86, %v85
  %v97 = vpack.c.b16 %v88, %v87
  %v98 = vpack.c.b16 %v90, %v89
  %107 = vmatprep.subr.bf16.mxu0 0
  %108 = vmatpush1.bf16.msra.mxu0 %v98
  %109 = vmatprep.subr.bf16.mxu0 0
  %110 = vmatpush1.bf16.msra.mxu0 %v97
  %111 = vmatprep.subr.bf16.mxu0 0
  %112 = vmatpush1.bf16.msra.mxu0 %v96
  %113 = vmatprep.subr.bf16.mxu0 0
  %114 = vmatpush1.bf16.msra.mxu0 %v95
  %115 = vmatprep.subr.bf16.mxu0 0
  %116 = vmatpush1.bf16.msra.mxu0 %v94
  %117 = vmatprep.subr.bf16.mxu0 0
  %118 = vmatpush1.bf16.msra.mxu0 %v93
  %119 = vmatprep.subr.bf16.mxu0 0
  %120 = vmatpush1.bf16.msra.mxu0 %v92
  %121 = vmatprep.subr.bf16.mxu0 0
  %122 = vmatpush1.bf16.msra.mxu0 %v91
  %123 = vmatprep.subr.bf16.mxu0 0
  %124 = vmatpush2.bf16.msra.mxu0 0
  %125 = vmatprep.subr.bf16.mxu0 0
  %126 = vmatpush2.bf16.msra.mxu0 0
  %127 = vmatprep.subr.bf16.mxu0 0
  %128 = vmatpush2.bf16.msra.mxu0 0
  %129 = vmatprep.subr.bf16.mxu0 0
  %130 = vmatpush2.bf16.msra.mxu0 0
  %131 = vmatprep.subr.bf16.mxu0 0
  %132 = vmatpush2.bf16.msra.mxu0 0
  %133 = vmatprep.subr.bf16.mxu0 0
  %134 = vmatpush2.bf16.msra.mxu0 0
  %135 = vmatprep.subr.bf16.mxu0 0
  %136 = vmatpush2.bf16.msra.mxu0 0
  %137 = vmatprep.subr.bf16.mxu0 0
  %138 = vmatpush2.bf16.msra.mxu0 0
  %139 = vmatprep.mubr.bf16.mxu0 0
  %140 = vmatmul.mubr.bf16.gmra.mxu0 %v53
  %v141 = vpop.f32.mrf.mxu0
  %v142 = vadd.f32 %v41, %v141
  %v143 = vpop.f32.mrf.mxu0
  %v144 = vpop.f32.mrf.mxu0
  %v145 = vadd.f32 %v41, %v144
  %v146 = vpop.f32.mrf.mxu0
  %147 = vmatprep.mubr.bf16.mxu0 0
  %148 = vmatmul.mubr.bf16.gmra.mxu0 %v54
  %v149 = vpop.f32.mrf.mxu0
  %v150 = vadd.f32 %v41, %v149
  %v151 = vpop.f32.mrf.mxu0
  %v152 = vpop.f32.mrf.mxu0
  %v153 = vadd.f32 %v41, %v152
  %v154 = vpop.f32.mrf.mxu0
  %155 = vmatprep.mubr.bf16.mxu0 0
  %156 = vmatmul.mubr.bf16.gmra.mxu0 %v55
  %v157 = vpop.f32.mrf.mxu0
  %v158 = vadd.f32 %v41, %v157
  %v159 = vpop.f32.mrf.mxu0
  %v160 = vpop.f32.mrf.mxu0
  %v161 = vpop.f32.mrf.mxu0
  %162 = vdwg.mxu0
  %vm163 = vcmask 130048
  %v164 = vsel %vm163, %v142, -inf
  %165 = vmax.xlane.f32.xlu0 %v164
  %v166 = vpop.xlane.xlu0 %165
  %v167 = vsel %vm163, %v145, -inf
  %168 = vmax.xlane.f32.xlu0 %v167
  %v169 = vpop.xlane.xlu0 %168
  %v170 = vsel %vm163, %v150, -inf
  %171 = vmax.xlane.f32.xlu0 %v170
  %v172 = vpop.xlane.xlu0 %171
  %v173 = vsel %vm163, %v153, -inf
  %174 = vmax.xlane.f32.xlu0 %v173
  %v175 = vpop.xlane.xlu0 %174
  %vm176 = vcmask 125952
  %v177 = vsel %vm176, %v158, -inf
  %178 = vmax.xlane.f32.xlu0 %v177
  %v179 = vpop.xlane.xlu0 %178
  %v180 = vsub.f32 %v142, %v166
  %v181 = vsub.f32 %v145, %v169
  %v182 = vsub.f32 %v150, %v172
  %v183 = vsub.f32 %v153, %v175
  %v184 = vsub.f32 %v158, %v179
  %v185 = vmul.f32 %v180, 1.442695
  %v186 = vpow.pop %v185
  %v187 = vmul.f32 %v181, 1.442695
  %v188 = vpow.pop %v187
  %v189 = vmul.f32 %v182, 1.442695
  %v190 = vpow.pop %v189
  %v191 = vmul.f32 %v183, 1.442695
  %v192 = vpow.pop %v191
  %v193 = vmul.f32 %v184, 1.442695
  %v194 = vpow.pop %v193
  %v195 = vsel %vm163, %v186, 0.0
  %196 = vadd.xlane.f32.xlu0 %v195
  %v197 = vpop.xlane.xlu0 %196
  %v198 = vsel %vm163, %v188, 0.0
  %199 = vadd.xlane.f32.xlu0 %v198
  %v200 = vpop.xlane.xlu0 %199
  %v201 = vsel %vm163, %v190, 0.0
  %202 = vadd.xlane.f32.xlu0 %v201
  %v203 = vpop.xlane.xlu0 %202
  %v204 = vsel %vm163, %v192, 0.0
  %205 = vadd.xlane.f32.xlu0 %v204
  %v206 = vpop.xlane.xlu0 %205
  %v207 = vsel %vm176, %v194, 0.0
  %208 = vadd.xlane.f32.xlu0 %v207
  %v209 = vpop.xlane.xlu0 %208
  %v210 = vlog2.pop %v197
  %v211 = vmul.f32 %v210, 0.6931472
  %v212 = vlog2.pop %v200
  %v213 = vmul.f32 %v212, 0.6931472
  %v214 = vlog2.pop %v203
  %v215 = vmul.f32 %v214, 0.6931472
  %v216 = vlog2.pop %v206
  %v217 = vmul.f32 %v216, 0.6931472
  %v218 = vlog2.pop %v209
  %v219 = vmul.f32 %v218, 0.6931472
  %v220 = vadd.f32 %v166, %v211
  %v221 = vadd.f32 %v169, %v213
  %v222 = vadd.f32 %v172, %v215
  %v223 = vadd.f32 %v175, %v217
  %v224 = vadd.f32 %v179, %v219
  %v225 = vsub.f32 %v142, %v220
  %v226 = vsub.f32 %v145, %v221
  %v227 = vsub.f32 %v150, %v222
  %v228 = vsub.f32 %v153, %v223
  %v229 = vsub.f32 %v158, %v224
  %230 = vst.msk [vmem:[%s3] sm:$0xff] %vm163, %v225
  %231 = vst.msk [vmem:[%s3 + $0x8] sm:$0xff] %vm163, %v226
  %232 = vst.msk [vmem:[%s3 + $0x10] sm:$0xff] %vm163, %v227
  %233 = vst.msk [vmem:[%s3 + $0x18] sm:$0xff] %vm163, %v228
  %234 = vst.msk [vmem:[%s3 + $0x20] sm:$0xf] %vm176, %v229
  %vm235 = vcmask 261248
  %v236 = vsel %vm235, %v142, -inf
  %237 = vmax.xlane.f32.xlu0 %v236
  %v238 = vpop.xlane.xlu0 %237
  %v239 = vsel %vm235, %v145, -inf
  %240 = vmax.xlane.f32.xlu0 %v239
  %v241 = vpop.xlane.xlu0 %240
  %v242 = vsel %vm235, %v150, -inf
  %243 = vmax.xlane.f32.xlu0 %v242
  %v244 = vpop.xlane.xlu0 %243
  %v245 = vsel %vm235, %v153, -inf
  %246 = vmax.xlane.f32.xlu0 %v245
  %v247 = vpop.xlane.xlu0 %246
  %vm248 = vcmask 257152
  %v249 = vsel %vm248, %v158, -inf
  %250 = vmax.xlane.f32.xlu0 %v249
  %v251 = vpop.xlane.xlu0 %250
  %v252 = vsub.f32 %v142, %v238
  %v253 = vsub.f32 %v145, %v241
  %v254 = vsub.f32 %v150, %v244
  %v255 = vsub.f32 %v153, %v247
  %v256 = vsub.f32 %v158, %v251
  %v257 = vmul.f32 %v252, 1.442695
  %v258 = vpow.pop %v257
  %v259 = vmul.f32 %v253, 1.442695
  %v260 = vpow.pop %v259
  %v261 = vmul.f32 %v254, 1.442695
  %v262 = vpow.pop %v261
  %v263 = vmul.f32 %v255, 1.442695
  %v264 = vpow.pop %v263
  %v265 = vmul.f32 %v256, 1.442695
  %v266 = vpow.pop %v265
  %272 = vrot.lane.b32.xlu0 %v258, 112
  %v273 = vpop.permute.xlu0 %272
  %274 = vrot.lane.b32.xlu0 %v260, 112
  %v275 = vpop.permute.xlu0 %274
  %276 = vrot.lane.b32.xlu0 %v262, 112
  %v277 = vpop.permute.xlu0 %276
  %278 = vrot.lane.b32.xlu0 %v264, 112
  %v279 = vpop.permute.xlu0 %278
  %280 = vrot.lane.b32.xlu0 %v266, 112
  %v281 = vpop.permute.xlu0 %280
  %v287 = vsel %vm163, %v273, 0.0
  %288 = vadd.xlane.f32.xlu0 %v287
  %v289 = vpop.xlane.xlu0 %288
  %v290 = vsel %vm163, %v275, 0.0
  %291 = vadd.xlane.f32.xlu0 %v290
  %v292 = vpop.xlane.xlu0 %291
  %v293 = vsel %vm163, %v277, 0.0
  %294 = vadd.xlane.f32.xlu0 %v293
  %v295 = vpop.xlane.xlu0 %294
  %v296 = vsel %vm163, %v279, 0.0
  %297 = vadd.xlane.f32.xlu0 %v296
  %v298 = vpop.xlane.xlu0 %297
  %v299 = vsel %vm176, %v281, 0.0
  %300 = vadd.xlane.f32.xlu0 %v299
  %v301 = vpop.xlane.xlu0 %300
  %v302 = vlog2.pop %v289
  %v303 = vmul.f32 %v302, 0.6931472
  %v304 = vlog2.pop %v292
  %v305 = vmul.f32 %v304, 0.6931472
  %v306 = vlog2.pop %v295
  %v307 = vmul.f32 %v306, 0.6931472
  %v308 = vlog2.pop %v298
  %v309 = vmul.f32 %v308, 0.6931472
  %v310 = vlog2.pop %v301
  %v311 = vmul.f32 %v310, 0.6931472
  %v312 = vadd.f32 %v238, %v303
  %v313 = vadd.f32 %v241, %v305
  %v314 = vadd.f32 %v244, %v307
  %v315 = vadd.f32 %v247, %v309
  %v316 = vadd.f32 %v251, %v311
  %v317 = vsub.f32 %v142, %v312
  %v318 = vsub.f32 %v145, %v313
  %v319 = vsub.f32 %v150, %v314
  %v320 = vsub.f32 %v153, %v315
  %v321 = vsub.f32 %v158, %v316
  %322 = vst.msk [vmem:[%s3] sm:$0xff] %vm235, %v317
  %323 = vst.msk [vmem:[%s3 + $0x8] sm:$0xff] %vm235, %v318
  %324 = vst.msk [vmem:[%s3 + $0x10] sm:$0xff] %vm235, %v319
  %325 = vst.msk [vmem:[%s3 + $0x18] sm:$0xff] %vm235, %v320
  %326 = vst.msk [vmem:[%s3 + $0x20] sm:$0xf] %vm248, %v321
  %vm327 = vcmask 392448
  %v328 = vsel %vm327, %v142, -inf
  %329 = vmax.xlane.f32.xlu0 %v328
  %v330 = vpop.xlane.xlu0 %329
  %v331 = vsel %vm327, %v145, -inf
  %332 = vmax.xlane.f32.xlu0 %v331
  %v333 = vpop.xlane.xlu0 %332
  %v334 = vsel %vm327, %v150, -inf
  %335 = vmax.xlane.f32.xlu0 %v334
  %v336 = vpop.xlane.xlu0 %335
  %v337 = vsel %vm327, %v153, -inf
  %338 = vmax.xlane.f32.xlu0 %v337
  %v339 = vpop.xlane.xlu0 %338
  %vm340 = vcmask 388352
  %v341 = vsel %vm340, %v158, -inf
  %342 = vmax.xlane.f32.xlu0 %v341
  %v343 = vpop.xlane.xlu0 %342
  %v344 = vsub.f32 %v142, %v330
  %v345 = vsub.f32 %v145, %v333
  %v346 = vsub.f32 %v150, %v336
  %v347 = vsub.f32 %v153, %v339
  %v348 = vsub.f32 %v158, %v343
  %v349 = vmul.f32 %v344, 1.442695
  %v350 = vpow.pop %v349
  %v351 = vmul.f32 %v345, 1.442695
  %v352 = vpow.pop %v351
  %v353 = vmul.f32 %v346, 1.442695
  %v354 = vpow.pop %v353
  %v355 = vmul.f32 %v347, 1.442695
  %v356 = vpow.pop %v355
  %v357 = vmul.f32 %v348, 1.442695
  %v358 = vpow.pop %v357
  %364 = vrot.lane.b32.xlu0 %v350, 96
  %v365 = vpop.permute.xlu0 %364
  %366 = vrot.lane.b32.xlu0 %v352, 96
  %v367 = vpop.permute.xlu0 %366
  %368 = vrot.lane.b32.xlu0 %v354, 96
  %v369 = vpop.permute.xlu0 %368
  %370 = vrot.lane.b32.xlu0 %v356, 96
  %v371 = vpop.permute.xlu0 %370
  %372 = vrot.lane.b32.xlu0 %v358, 96
  %v373 = vpop.permute.xlu0 %372
  %v379 = vsel %vm163, %v365, 0.0
  %380 = vadd.xlane.f32.xlu0 %v379
  %v381 = vpop.xlane.xlu0 %380
  %v382 = vsel %vm163, %v367, 0.0
  %383 = vadd.xlane.f32.xlu0 %v382
  %v384 = vpop.xlane.xlu0 %383
  %v385 = vsel %vm163, %v369, 0.0
  %386 = vadd.xlane.f32.xlu0 %v385
  %v387 = vpop.xlane.xlu0 %386
  %v388 = vsel %vm163, %v371, 0.0
  %389 = vadd.xlane.f32.xlu0 %v388
  %v390 = vpop.xlane.xlu0 %389
  %v391 = vsel %vm176, %v373, 0.0
  %392 = vadd.xlane.f32.xlu0 %v391
  %v393 = vpop.xlane.xlu0 %392
  %v394 = vlog2.pop %v381
  %v395 = vmul.f32 %v394, 0.6931472
  %v396 = vlog2.pop %v384
  %v397 = vmul.f32 %v396, 0.6931472
  %v398 = vlog2.pop %v387
  %v399 = vmul.f32 %v398, 0.6931472
  %v400 = vlog2.pop %v390
  %v401 = vmul.f32 %v400, 0.6931472
  %v402 = vlog2.pop %v393
  %v403 = vmul.f32 %v402, 0.6931472
  %v404 = vadd.f32 %v330, %v395
  %v405 = vadd.f32 %v333, %v397
  %v406 = vadd.f32 %v336, %v399
  %v407 = vadd.f32 %v339, %v401
  %v408 = vadd.f32 %v343, %v403
  %v409 = vsub.f32 %v142, %v404
  %v410 = vsub.f32 %v145, %v405
  %v411 = vsub.f32 %v150, %v406
  %v412 = vsub.f32 %v153, %v407
  %v413 = vsub.f32 %v158, %v408
  %414 = vst.msk [vmem:[%s3] sm:$0xff] %vm327, %v409
  %415 = vst.msk [vmem:[%s3 + $0x8] sm:$0xff] %vm327, %v410
  %416 = vst.msk [vmem:[%s3 + $0x10] sm:$0xff] %vm327, %v411
  %417 = vst.msk [vmem:[%s3 + $0x18] sm:$0xff] %vm327, %v412
  %418 = vst.msk [vmem:[%s3 + $0x20] sm:$0xf] %vm340, %v413
  %vm419 = vcmask 523648
  %v420 = vsel %vm419, %v142, -inf
  %421 = vmax.xlane.f32.xlu0 %v420
  %v422 = vpop.xlane.xlu0 %421
  %v423 = vsel %vm419, %v145, -inf
  %424 = vmax.xlane.f32.xlu0 %v423
  %v425 = vpop.xlane.xlu0 %424
  %v426 = vsel %vm419, %v150, -inf
  %427 = vmax.xlane.f32.xlu0 %v426
  %v428 = vpop.xlane.xlu0 %427
  %v429 = vsel %vm419, %v153, -inf
  %430 = vmax.xlane.f32.xlu0 %v429
  %v431 = vpop.xlane.xlu0 %430
  %vm432 = vcmask 519552
  %v433 = vsel %vm432, %v158, -inf
  %434 = vmax.xlane.f32.xlu0 %v433
  %v435 = vpop.xlane.xlu0 %434
  %v436 = vsub.f32 %v142, %v422
  %v437 = vsub.f32 %v145, %v425
  %v438 = vsub.f32 %v150, %v428
  %v439 = vsub.f32 %v153, %v431
  %v440 = vsub.f32 %v158, %v435
  %v441 = vmul.f32 %v436, 1.442695
  %v442 = vpow.pop %v441
  %v443 = vmul.f32 %v437, 1.442695
  %v444 = vpow.pop %v443
  %v445 = vmul.f32 %v438, 1.442695
  %v446 = vpow.pop %v445
  %v447 = vmul.f32 %v439, 1.442695
  %v448 = vpow.pop %v447
  %v449 = vmul.f32 %v440, 1.442695
  %v450 = vpow.pop %v449
  %456 = vrot.lane.b32.xlu0 %v442, 80
  %v457 = vpop.permute.xlu0 %456
  %458 = vrot.lane.b32.xlu0 %v444, 80
  %v459 = vpop.permute.xlu0 %458
  %460 = vrot.lane.b32.xlu0 %v446, 80
  %v461 = vpop.permute.xlu0 %460
  %462 = vrot.lane.b32.xlu0 %v448, 80
  %v463 = vpop.permute.xlu0 %462
  %464 = vrot.lane.b32.xlu0 %v450, 80
  %v465 = vpop.permute.xlu0 %464
  %v471 = vsel %vm163, %v457, 0.0
  %472 = vadd.xlane.f32.xlu0 %v471
  %v473 = vpop.xlane.xlu0 %472
  %v474 = vsel %vm163, %v459, 0.0
  %475 = vadd.xlane.f32.xlu0 %v474
  %v476 = vpop.xlane.xlu0 %475
  %v477 = vsel %vm163, %v461, 0.0
  %478 = vadd.xlane.f32.xlu0 %v477
  %v479 = vpop.xlane.xlu0 %478
  %v480 = vsel %vm163, %v463, 0.0
  %481 = vadd.xlane.f32.xlu0 %v480
  %v482 = vpop.xlane.xlu0 %481
  %v483 = vsel %vm176, %v465, 0.0
  %484 = vadd.xlane.f32.xlu0 %v483
  %v485 = vpop.xlane.xlu0 %484
  %v486 = vlog2.pop %v473
  %v487 = vmul.f32 %v486, 0.6931472
  %v488 = vlog2.pop %v476
  %v489 = vmul.f32 %v488, 0.6931472
  %v490 = vlog2.pop %v479
  %v491 = vmul.f32 %v490, 0.6931472
  %v492 = vlog2.pop %v482
  %v493 = vmul.f32 %v492, 0.6931472
  %v494 = vlog2.pop %v485
  %v495 = vmul.f32 %v494, 0.6931472
  %v496 = vadd.f32 %v422, %v487
  %v497 = vadd.f32 %v425, %v489
  %v498 = vadd.f32 %v428, %v491
  %v499 = vadd.f32 %v431, %v493
  %v500 = vadd.f32 %v435, %v495
  %v501 = vsub.f32 %v142, %v496
  %v502 = vsub.f32 %v145, %v497
  %v503 = vsub.f32 %v150, %v498
  %v504 = vsub.f32 %v153, %v499
  %v505 = vsub.f32 %v158, %v500
  %506 = vst.msk [vmem:[%s3] sm:$0xff] %vm419, %v501
  %507 = vst.msk [vmem:[%s3 + $0x8] sm:$0xff] %vm419, %v502
  %508 = vst.msk [vmem:[%s3 + $0x10] sm:$0xff] %vm419, %v503
  %509 = vst.msk [vmem:[%s3 + $0x18] sm:$0xff] %vm419, %v504
  %510 = vst.msk [vmem:[%s3 + $0x20] sm:$0xf] %vm432, %v505
  %vm511 = vcmask 654848
  %v512 = vsel %vm511, %v142, -inf
  %513 = vmax.xlane.f32.xlu0 %v512
  %v514 = vpop.xlane.xlu0 %513
  %v515 = vsel %vm511, %v145, -inf
  %516 = vmax.xlane.f32.xlu0 %v515
  %v517 = vpop.xlane.xlu0 %516
  %v518 = vsel %vm511, %v150, -inf
  %519 = vmax.xlane.f32.xlu0 %v518
  %v520 = vpop.xlane.xlu0 %519
  %v521 = vsel %vm511, %v153, -inf
  %522 = vmax.xlane.f32.xlu0 %v521
  %v523 = vpop.xlane.xlu0 %522
  %vm524 = vcmask 650752
  %v525 = vsel %vm524, %v158, -inf
  %526 = vmax.xlane.f32.xlu0 %v525
  %v527 = vpop.xlane.xlu0 %526
  %v528 = vsub.f32 %v142, %v514
  %v529 = vsub.f32 %v145, %v517
  %v530 = vsub.f32 %v150, %v520
  %v531 = vsub.f32 %v153, %v523
  %v532 = vsub.f32 %v158, %v527
  %v533 = vmul.f32 %v528, 1.442695
  %v534 = vpow.pop %v533
  %v535 = vmul.f32 %v529, 1.442695
  %v536 = vpow.pop %v535
  %v537 = vmul.f32 %v530, 1.442695
  %v538 = vpow.pop %v537
  %v539 = vmul.f32 %v531, 1.442695
  %v540 = vpow.pop %v539
  %v541 = vmul.f32 %v532, 1.442695
  %v542 = vpow.pop %v541
  %548 = vrot.lane.b32.xlu0 %v534, 64
  %v549 = vpop.permute.xlu0 %548
  %550 = vrot.lane.b32.xlu0 %v536, 64
  %v551 = vpop.permute.xlu0 %550
  %552 = vrot.lane.b32.xlu0 %v538, 64
  %v553 = vpop.permute.xlu0 %552
  %554 = vrot.lane.b32.xlu0 %v540, 64
  %v555 = vpop.permute.xlu0 %554
  %556 = vrot.lane.b32.xlu0 %v542, 64
  %v557 = vpop.permute.xlu0 %556
  %v563 = vsel %vm163, %v549, 0.0
  %564 = vadd.xlane.f32.xlu0 %v563
  %v565 = vpop.xlane.xlu0 %564
  %v566 = vsel %vm163, %v551, 0.0
  %567 = vadd.xlane.f32.xlu0 %v566
  %v568 = vpop.xlane.xlu0 %567
  %v569 = vsel %vm163, %v553, 0.0
  %570 = vadd.xlane.f32.xlu0 %v569
  %v571 = vpop.xlane.xlu0 %570
  %v572 = vsel %vm163, %v555, 0.0
  %573 = vadd.xlane.f32.xlu0 %v572
  %v574 = vpop.xlane.xlu0 %573
  %v575 = vsel %vm176, %v557, 0.0
  %576 = vadd.xlane.f32.xlu0 %v575
  %v577 = vpop.xlane.xlu0 %576
  %v578 = vlog2.pop %v565
  %v579 = vmul.f32 %v578, 0.6931472
  %v580 = vlog2.pop %v568
  %v581 = vmul.f32 %v580, 0.6931472
  %v582 = vlog2.pop %v571
  %v583 = vmul.f32 %v582, 0.6931472
  %v584 = vlog2.pop %v574
  %v585 = vmul.f32 %v584, 0.6931472
  %v586 = vlog2.pop %v577
  %v587 = vmul.f32 %v586, 0.6931472
  %v588 = vadd.f32 %v514, %v579
  %v589 = vadd.f32 %v517, %v581
  %v590 = vadd.f32 %v520, %v583
  %v591 = vadd.f32 %v523, %v585
  %v592 = vadd.f32 %v527, %v587
  %v593 = vsub.f32 %v142, %v588
  %v594 = vsub.f32 %v145, %v589
  %v595 = vsub.f32 %v150, %v590
  %v596 = vsub.f32 %v153, %v591
  %v597 = vsub.f32 %v158, %v592
  %598 = vst.msk [vmem:[%s3] sm:$0xff] %vm511, %v593
  %599 = vst.msk [vmem:[%s3 + $0x8] sm:$0xff] %vm511, %v594
  %600 = vst.msk [vmem:[%s3 + $0x10] sm:$0xff] %vm511, %v595
  %601 = vst.msk [vmem:[%s3 + $0x18] sm:$0xff] %vm511, %v596
  %602 = vst.msk [vmem:[%s3 + $0x20] sm:$0xf] %vm524, %v597
  %vm603 = vcmask 786048
  %v604 = vsel %vm603, %v142, -inf
  %605 = vmax.xlane.f32.xlu0 %v604
  %v606 = vpop.xlane.xlu0 %605
  %v607 = vsel %vm603, %v145, -inf
  %608 = vmax.xlane.f32.xlu0 %v607
  %v609 = vpop.xlane.xlu0 %608
  %v610 = vsel %vm603, %v150, -inf
  %611 = vmax.xlane.f32.xlu0 %v610
  %v612 = vpop.xlane.xlu0 %611
  %v613 = vsel %vm603, %v153, -inf
  %614 = vmax.xlane.f32.xlu0 %v613
  %v615 = vpop.xlane.xlu0 %614
  %vm616 = vcmask 781952
  %v617 = vsel %vm616, %v158, -inf
  %618 = vmax.xlane.f32.xlu0 %v617
  %v619 = vpop.xlane.xlu0 %618
  %v620 = vsub.f32 %v142, %v606
  %v621 = vsub.f32 %v145, %v609
  %v622 = vsub.f32 %v150, %v612
  %v623 = vsub.f32 %v153, %v615
  %v624 = vsub.f32 %v158, %v619
  %v625 = vmul.f32 %v620, 1.442695
  %v626 = vpow.pop %v625
  %v627 = vmul.f32 %v621, 1.442695
  %v628 = vpow.pop %v627
  %v629 = vmul.f32 %v622, 1.442695
  %v630 = vpow.pop %v629
  %v631 = vmul.f32 %v623, 1.442695
  %v632 = vpow.pop %v631
  %v633 = vmul.f32 %v624, 1.442695
  %v634 = vpow.pop %v633
  %640 = vrot.lane.b32.xlu0 %v626, 48
  %v641 = vpop.permute.xlu0 %640
  %642 = vrot.lane.b32.xlu0 %v628, 48
  %v643 = vpop.permute.xlu0 %642
  %644 = vrot.lane.b32.xlu0 %v630, 48
  %v645 = vpop.permute.xlu0 %644
  %646 = vrot.lane.b32.xlu0 %v632, 48
  %v647 = vpop.permute.xlu0 %646
  %648 = vrot.lane.b32.xlu0 %v634, 48
  %v649 = vpop.permute.xlu0 %648
  %v655 = vsel %vm163, %v641, 0.0
  %656 = vadd.xlane.f32.xlu0 %v655
  %v657 = vpop.xlane.xlu0 %656
  %v658 = vsel %vm163, %v643, 0.0
  %659 = vadd.xlane.f32.xlu0 %v658
  %v660 = vpop.xlane.xlu0 %659
  %v661 = vsel %vm163, %v645, 0.0
  %662 = vadd.xlane.f32.xlu0 %v661
  %v663 = vpop.xlane.xlu0 %662
  %v664 = vsel %vm163, %v647, 0.0
  %665 = vadd.xlane.f32.xlu0 %v664
  %v666 = vpop.xlane.xlu0 %665
  %v667 = vsel %vm176, %v649, 0.0
  %668 = vadd.xlane.f32.xlu0 %v667
  %v669 = vpop.xlane.xlu0 %668
  %v670 = vlog2.pop %v657
  %v671 = vmul.f32 %v670, 0.6931472
  %v672 = vlog2.pop %v660
  %v673 = vmul.f32 %v672, 0.6931472
  %v674 = vlog2.pop %v663
  %v675 = vmul.f32 %v674, 0.6931472
  %v676 = vlog2.pop %v666
  %v677 = vmul.f32 %v676, 0.6931472
  %v678 = vlog2.pop %v669
  %v679 = vmul.f32 %v678, 0.6931472
  %v680 = vadd.f32 %v606, %v671
  %v681 = vadd.f32 %v609, %v673
  %v682 = vadd.f32 %v612, %v675
  %v683 = vadd.f32 %v615, %v677
  %v684 = vadd.f32 %v619, %v679
  %v685 = vsub.f32 %v142, %v680
  %v686 = vsub.f32 %v145, %v681
  %v687 = vsub.f32 %v150, %v682
  %v688 = vsub.f32 %v153, %v683
  %v689 = vsub.f32 %v158, %v684
  %690 = vst.msk [vmem:[%s3] sm:$0xff] %vm603, %v685
  %691 = vst.msk [vmem:[%s3 + $0x8] sm:$0xff] %vm603, %v686
  %692 = vst.msk [vmem:[%s3 + $0x10] sm:$0xff] %vm603, %v687
  %693 = vst.msk [vmem:[%s3 + $0x18] sm:$0xff] %vm603, %v688
  %694 = vst.msk [vmem:[%s3 + $0x20] sm:$0xf] %vm616, %v689
  %vm695 = vcmask 1048320
  %696 = vst.msk [vmem:[%s3] sm:$0xff] %vm695, %v142
  %697 = vst.msk [vmem:[%s3 + $0x8] sm:$0xff] %vm695, %v145
  %698 = vst.msk [vmem:[%s3 + $0x10] sm:$0xff] %vm695, %v150
  %699 = vst.msk [vmem:[%s3 + $0x18] sm:$0xff] %vm695, %v153
  %vm700 = vcmask 1044224
  %701 = vst.msk [vmem:[%s3 + $0x20] sm:$0xf] %vm700, %v158
  // Predicated region
  $region14: #{forward.11} parent=0 // pred_check
    _
  $region15: #{forward.11} parent=0 // pred_check_branch
    %703 = sbr.rel (0) target = $region17
  $region16: #{forward.11} parent=0 // pred_region
    _
  $region17: #{forward.11} parent=0 // pred_fallthru
    _
  // Predicated region
  $region18: #{forward.11} parent=0 // pred_check
    _
  $region19: #{forward.11} parent=0 // pred_check_branch
    %705 = sbr.rel (0) target = $region21
  $region20: #{forward.11} parent=0 // pred_region
    _
  $region21: #{forward.11} parent=0 // pred_fallthru
    _

// kernel: forward.10
$region0: #{forward.10}
  #allocation0 [shape = 'u32[]', space=smem, size = 0x4, offset = 0x4, fixed_abs, tag = 'smem constant byte address 0x4 - core index']
  #allocation1 [shape = 'u32[144,128]{1,0:T(1,128)}', space=vmem, size = 0x12000, scoped, tag = 'internal scratch']
  %s0 = inlined_call_operand.vmem [shape: bf16[16,128], index: 0, kind: input, shape index: {}]
  %s1 = inlined_call_operand.vmem [shape: bf16[16,128], index: 1, kind: input, shape index: {}]
  %s2 = inlined_call_operand.vmem [shape: f32[1,128], index: 2, kind: input, shape index: {}]
  %s3 = inlined_call_operand.vmem [shape: bf16[128,256], index: 3, kind: input, shape index: {}]
  %s4 = inlined_call_operand.vmem [shape: f32[1,256], index: 4, kind: input, shape index: {}]
  %s5 = inlined_call_operand.vmem [shape: bf16[256,128], index: 5, kind: input, shape index: {}]
  %s6 = inlined_call_operand.vmem [shape: f32[1,128], index: 6, kind: input, shape index: {}]
  %s7 = inlined_call_operand.vmem [shape: f32[1,128], index: 7, kind: input, shape index: {}]
  %s8 = inlined_call_operand.vmem [shape: f32[1,128], index: 8, kind: input, shape index: {}]
  %s9 = inlined_call_operand.vmem [shape: f32[1,128], index: 9, kind: input, shape index: {}]
  %s10 = inlined_call_operand.vmem [shape: f32[1,128], index: 10, kind: input, shape index: {}]
  %s11 = inlined_call_operand.vmem [shape: bf16[16,128], index: 11, kind: output, shape index: {}]
  %s12 = sld [smem:[#allocation0]]
  $region54: #{forward.10} parent=0
    _
  %s14 = ssub.s32 1, %s12
  %s15 = scalar_select 0, %s14, %s12
  // Predicated region
  $region2: #{forward.10} parent=0 // pred_check
    _
  $region3: #{forward.10} parent=0 // pred_check_branch
    %17 = sbr.rel (0) target = $region5
  $region4: #{forward.10} parent=0 // pred_region
    _
  $region5: #{forward.10} parent=0 // pred_fallthru
    _
  // Predicated region
  $region6: #{forward.10} parent=0 // pred_check
    _
  $region7: #{forward.10} parent=0 // pred_check_branch
    %19 = sbr.rel (0) target = $region9
  $region8: #{forward.10} parent=0 // pred_region
    _
  $region9: #{forward.10} parent=0 // pred_fallthru
    _
  // Predicated region
  $region10: #{forward.10} parent=0 // pred_check
    _
  $region11: #{forward.10} parent=0 // pred_check_branch
    %21 = sbr.rel (0) target = $region13
  $region12: #{forward.10} parent=0 // pred_region
    _
  $region13: #{forward.10} parent=0 // pred_fallthru
    _
  // Predicated region
  $region14: #{forward.10} parent=0 // pred_check
    _
  $region15: #{forward.10} parent=0 // pred_check_branch
    %23 = sbr.rel (0) target = $region17
  $region16: #{forward.10} parent=0 // pred_region
    _
  $region17: #{forward.10} parent=0 // pred_fallthru
    _
  // Predicated region
  $region18: #{forward.10} parent=0 // pred_check
    _
  $region19: #{forward.10} parent=0 // pred_check_branch
    %25 = sbr.rel (0) target = $region21
  $region20: #{forward.10} parent=0 // pred_region
    _
  $region21: #{forward.10} parent=0 // pred_fallthru
    _
  // Predicated region
  $region22: #{forward.10} parent=0 // pred_check
    _
  $region23: #{forward.10} parent=0 // pred_check_branch
    %27 = sbr.rel (0) target = $region25
  $region24: #{forward.10} parent=0 // pred_region
    _
  $region25: #{forward.10} parent=0 // pred_fallthru
    _
  // Predicated region
  $region26: #{forward.10} parent=0 // pred_check
    _
  $region27: #{forward.10} parent=0 // pred_check_branch
    %29 = sbr.rel (0) target = $region29
  $region28: #{forward.10} parent=0 // pred_region
    _
  $region29: #{forward.10} parent=0 // pred_fallthru
    _
  // Predicated region
  $region30: #{forward.10} parent=0 // pred_check
    _
  $region31: #{forward.10} parent=0 // pred_check_branch
    %31 = sbr.rel (0) target = $region33
  $region32: #{forward.10} parent=0 // pred_region
    _
  $region33: #{forward.10} parent=0 // pred_fallthru
    _
  // Predicated region
  $region34: #{forward.10} parent=0 // pred_check
    _
  $region35: #{forward.10} parent=0 // pred_check_branch
    %33 = sbr.rel (0) target = $region37
  $region36: #{forward.10} parent=0 // pred_region
    _
  $region37: #{forward.10} parent=0 // pred_fallthru
    _
  // Predicated region
  $region38: #{forward.10} parent=0 // pred_check
    _
  $region39: #{forward.10} parent=0 // pred_check_branch
    %35 = sbr.rel (0) target = $region41
  $region40: #{forward.10} parent=0 // pred_region
    _
  $region41: #{forward.10} parent=0 // pred_fallthru
    _
  // Predicated region
  $region42: #{forward.10} parent=0 // pred_check
    _
  $region43: #{forward.10} parent=0 // pred_check_branch
    %37 = sbr.rel (0) target = $region45
  $region44: #{forward.10} parent=0 // pred_region
    _
  $region45: #{forward.10} parent=0 // pred_fallthru
    _
  %v39 = vld [vmem:[%s0] sm:$0xf]
  %v40 = vld [vmem:[%s0 + $0x4] sm:$0xf]
  %v41 = vunpack.c.l.bf16 %v39
  %v42 = vunpack.c.l.bf16 %v40
  %v43 = vld [vmem:[%s1] sm:$0xf]
  %v44 = vld [vmem:[%s1 + $0x4] sm:$0xf]
  %v45 = vunpack.c.l.bf16 %v43
  %v46 = vunpack.c.l.bf16 %v44
  %v47 = vld [vmem:[%s2] sm:$0x1]
  %v49 = vlaneseq
  %v50 = vshrl.u32 %v49, 7
  %v51 = vsub.s32 0, %v50
  %v52 = vrot.slane %v47, %v51
  %v54 = vadd.f32 %v45, %v52
  %v55 = vadd.f32 %v46, %v52
  %v56 = vadd.f32 %v41, %v54
  %v57 = vadd.f32 %v42, %v55
  %v58 = vld [vmem:[%s7] sm:$0x1]
  %v59 = vld [vmem:[%s8] sm:$0x1]
  %60 = vadd.xlane.f32.xlu0 %v56
  %v61 = vpop.xlane.xlu0 %60
  %62 = vadd.xlane.f32.xlu0 %v57
  %v63 = vpop.xlane.xlu0 %62
  %v64 = vrcp.pop 128.0
  %v65 = vmul.f32 %v61, %v64
  %v66 = vmul.f32 %v63, %v64
  %v67 = vsub.f32 %v56, %v65
  %v68 = vsub.f32 %v57, %v66
  %v69 = vmul.f32 %v67, %v67
  %v70 = vmul.f32 %v68, %v68
  %71 = vadd.xlane.f32.xlu0 %v69
  %v72 = vpop.xlane.xlu0 %71
  %73 = vadd.xlane.f32.xlu0 %v70
  %v74 = vpop.xlane.xlu0 %73
  %v75 = vmul.f32 %v72, %v64
  %v76 = vmul.f32 %v74, %v64
  %v77 = vadd.f32 %v75, 1e-05
  %v78 = vadd.f32 %v76, 1e-05
  %v79 = vrsqrt.pop %v77
  %v80 = vrsqrt.pop %v78
  %v81 = vmul.f32 %v67, %v79
  %v82 = vmul.f32 %v68, %v80
  %v84 = vlaneseq
  %v85 = vshrl.u32 %v84, 7
  %v86 = vsub.s32 0, %v85
  %v87 = vrot.slane %v58, %v86
  %v89 = vmul.f32 %v81, %v87
  %v90 = vmul.f32 %v82, %v87
  %v92 = vlaneseq
  %v93 = vshrl.u32 %v92, 7
  %v94 = vsub.s32 0, %v93
  %v95 = vrot.slane %v59, %v94
  %v97 = vadd.f32 %v89, %v95
  %v98 = vadd.f32 %v90, %v95
  %v99 = vpack.c.bf16 %v98, %v97
  %v100 = vld [vmem:[%s3] sm:$0xff]
  %v101 = vld [vmem:[%s3 + $0x8] sm:$0xff]
  %v102 = vld [vmem:[%s3 + $0x10] sm:$0xff]
  %v103 = vld [vmem:[%s3 + $0x18] sm:$0xff]
  %v104 = vld [vmem:[%s3 + $0x20] sm:$0xff]
  %v105 = vld [vmem:[%s3 + $0x28] sm:$0xff]
  %v106 = vld [vmem:[%s3 + $0x30] sm:$0xff]
  %v107 = vld [vmem:[%s3 + $0x38] sm:$0xff]
  %v108 = vld [vmem:[%s3 + $0x40] sm:$0xff]
  %v109 = vld [vmem:[%s3 + $0x48] sm:$0xff]
  %v110 = vld [vmem:[%s3 + $0x50] sm:$0xff]
  %v111 = vld [vmem:[%s3 + $0x58] sm:$0xff]
  %v112 = vld [vmem:[%s3 + $0x60] sm:$0xff]
  %v113 = vld [vmem:[%s3 + $0x68] sm:$0xff]
  %v114 = vld [vmem:[%s3 + $0x70] sm:$0xff]
  %v115 = vld [vmem:[%s3 + $0x78] sm:$0xff]
  %v116 = vld [vmem:[%s4] sm:$0x3]
  %v118 = vlaneseq
  %v119 = vshrl.u32 %v118, 7
  %v120 = vsub.s32 0, %v119
  %v121 = vrot.slane %v116, %v120
  %v122 = vlaneseq
  %v123 = vshrl.u32 %v122, 7
  %v124 = vsub.s32 1, %v123
  %v125 = vrot.slane %v116, %v124
  %v144 = vunpack.c.l.b16 %v100
  %v145 = vunpack.c.h.b16 %v100
  %v146 = vunpack.c.l.b16 %v101
  %v147 = vunpack.c.h.b16 %v101
  %v148 = vunpack.c.l.b16 %v102
  %v149 = vunpack.c.h.b16 %v102
  %v150 = vunpack.c.l.b16 %v103
  %v151 = vunpack.c.h.b16 %v103
  %v152 = vunpack.c.l.b16 %v104
  %v153 = vunpack.c.h.b16 %v104
  %v154 = vunpack.c.l.b16 %v105
  %v155 = vunpack.c.h.b16 %v105
  %v156 = vunpack.c.l.b16 %v106
  %v157 = vunpack.c.h.b16 %v106
  %v158 = vunpack.c.l.b16 %v107
  %v159 = vunpack.c.h.b16 %v107
  %v160 = vunpack.c.l.b16 %v108
  %v161 = vunpack.c.h.b16 %v108
  %v162 = vunpack.c.l.b16 %v109
  %v163 = vunpack.c.h.b16 %v109
  %v164 = vunpack.c.l.b16 %v110
  %v165 = vunpack.c.h.b16 %v110
  %v166 = vunpack.c.l.b16 %v111
  %v167 = vunpack.c.h.b16 %v111
  %v168 = vunpack.c.l.b16 %v112
  %v169 = vunpack.c.h.b16 %v112
  %v170 = vunpack.c.l.b16 %v113
  %v171 = vunpack.c.h.b16 %v113
  %v172 = vunpack.c.l.b16 %v114
  %v173 = vunpack.c.h.b16 %v114
  %v174 = vunpack.c.l.b16 %v115
  %v175 = vunpack.c.h.b16 %v115
  %v176 = vpack.c.b16 %v146, %v144
  %v177 = vpack.c.b16 %v147, %v145
  %v178 = vpack.c.b16 %v150, %v148
  %v179 = vpack.c.b16 %v151, %v149
  %v180 = vpack.c.b16 %v154, %v152
  %v181 = vpack.c.b16 %v155, %v153
  %v182 = vpack.c.b16 %v158, %v156
  %v183 = vpack.c.b16 %v159, %v157
  %v184 = vpack.c.b16 %v162, %v160
  %v185 = vpack.c.b16 %v163, %v161
  %v186 = vpack.c.b16 %v166, %v164
  %v187 = vpack.c.b16 %v167, %v165
  %v188 = vpack.c.b16 %v170, %v168
  %v189 = vpack.c.b16 %v171, %v169
  %v190 = vpack.c.b16 %v174, %v172
  %v191 = vpack.c.b16 %v175, %v173
  %208 = vmatprep.subr.bf16.mxu0 %v191
  %209 = vmatpush1.bf16.msra.mxu0 %v190
  %210 = vmatprep.subr.bf16.mxu0 %v189
  %211 = vmatpush1.bf16.msra.mxu0 %v188
  %212 = vmatprep.subr.bf16.mxu0 %v187
  %213 = vmatpush1.bf16.msra.mxu0 %v186
  %214 = vmatprep.subr.bf16.mxu0 %v185
  %215 = vmatpush1.bf16.msra.mxu0 %v184
  %216 = vmatprep.subr.bf16.mxu0 %v183
  %217 = vmatpush1.bf16.msra.mxu0 %v182
  %218 = vmatprep.subr.bf16.mxu0 %v181
  %219 = vmatpush1.bf16.msra.mxu0 %v180
  %220 = vmatprep.subr.bf16.mxu0 %v179
  %221 = vmatpush1.bf16.msra.mxu0 %v178
  %222 = vmatprep.subr.bf16.mxu0 %v177
  %223 = vmatpush1.bf16.msra.mxu0 %v176
  %224 = vmatprep.subr.bf16.mxu0 0
  %225 = vmatpush2.bf16.msra.mxu0 0
  %226 = vmatprep.subr.bf16.mxu0 0
  %227 = vmatpush2.bf16.msra.mxu0 0
  %228 = vmatprep.subr.bf16.mxu0 0
  %229 = vmatpush2.bf16.msra.mxu0 0
  %230 = vmatprep.subr.bf16.mxu0 0
  %231 = vmatpush2.bf16.msra.mxu0 0
  %232 = vmatprep.subr.bf16.mxu0 0
  %233 = vmatpush2.bf16.msra.mxu0 0
  %234 = vmatprep.subr.bf16.mxu0 0
  %235 = vmatpush2.bf16.msra.mxu0 0
  %236 = vmatprep.subr.bf16.mxu0 0
  %237 = vmatpush2.bf16.msra.mxu0 0
  %238 = vmatprep.subr.bf16.mxu0 0
  %239 = vmatpush2.bf16.msra.mxu0 0
  %240 = vmatprep.mubr.bf16.mxu0 0
  %241 = vmatmul.mubr.bf16.gmra.mxu0 %v99
  %v242 = vpop.f32.mrf.mxu0
  %v243 = vadd.f32 %v121, %v242
  %v244 = vpop.f32.mrf.mxu0
  %v245 = vadd.f32 %v125, %v244
  %v246 = vpop.f32.mrf.mxu0
  %v247 = vadd.f32 %v121, %v246
  %v248 = vpop.f32.mrf.mxu0
  %v249 = vadd.f32 %v125, %v248
  %250 = vdwg.mxu0
  %v251 = vmax.f32 %v243, 0.0
  %v252 = vmax.f32 %v245, 0.0
  %v253 = vmax.f32 %v247, 0.0
  %v254 = vmax.f32 %v249, 0.0
  %v255 = vpack.c.bf16 %v253, %v251
  %v256 = vpack.c.bf16 %v254, %v252
  %v257 = vld [vmem:[%s5] sm:$0xf]
  %v258 = vld [vmem:[%s5 + $0x4] sm:$0xf]
  %v259 = vld [vmem:[%s5 + $0x8] sm:$0xf]
  %v260 = vld [vmem:[%s5 + $0xc] sm:$0xf]
  %v261 = vld [vmem:[%s5 + $0x10] sm:$0xf]
  %v262 = vld [vmem:[%s5 + $0x14] sm:$0xf]
  %v263 = vld [vmem:[%s5 + $0x18] sm:$0xf]
  %v264 = vld [vmem:[%s5 + $0x1c] sm:$0xf]
  %v265 = vld [vmem:[%s5 + $0x20] sm:$0xf]
  %v266 = vld [vmem:[%s5 + $0x24] sm:$0xf]
  %v267 = vld [vmem:[%s5 + $0x28] sm:$0xf]
  %v268 = vld [vmem:[%s5 + $0x2c] sm:$0xf]
  %v269 = vld [vmem:[%s5 + $0x30] sm:$0xf]
  %v270 = vld [vmem:[%s5 + $0x34] sm:$0xf]
  %v271 = vld [vmem:[%s5 + $0x38] sm:$0xf]
  %v272 = vld [vmem:[%s5 + $0x3c] sm:$0xf]
  %v273 = vld [vmem:[%s5 + $0x40] sm:$0xf]
  %v274 = vld [vmem:[%s5 + $0x44] sm:$0xf]
  %v275 = vld [vmem:[%s5 + $0x48] sm:$0xf]
  %v276 = vld [vmem:[%s5 + $0x4c] sm:$0xf]
  %v277 = vld [vmem:[%s5 + $0x50] sm:$0xf]
  %v278 = vld [vmem:[%s5 + $0x54] sm:$0xf]
  %v279 = vld [vmem:[%s5 + $0x58] sm:$0xf]
  %v280 = vld [vmem:[%s5 + $0x5c] sm:$0xf]
  %v281 = vld [vmem:[%s5 + $0x60] sm:$0xf]
  %v282 = vld [vmem:[%s5 + $0x64] sm:$0xf]
  %v283 = vld [vmem:[%s5 + $0x68] sm:$0xf]
  %v284 = vld [vmem:[%s5 + $0x6c] sm:$0xf]
  %v285 = vld [vmem:[%s5 + $0x70] sm:$0xf]
  %v286 = vld [vmem:[%s5 + $0x74] sm:$0xf]
  %v287 = vld [vmem:[%s5 + $0x78] sm:$0xf]
  %v288 = vld [vmem:[%s5 + $0x7c] sm:$0xf]
  %v289 = vld [vmem:[%s6] sm:$0x1]
  %v291 = vlaneseq
  %v292 = vshrl.u32 %v291, 7
  %v293 = vsub.s32 0, %v292
  %v294 = vrot.slane %v289, %v293
  %v328 = vunpack.c.l.b16 %v257
  %v329 = vunpack.c.l.b16 %v258
  %v330 = vunpack.c.l.b16 %v259
  %v331 = vunpack.c.l.b16 %v260
  %v332 = vunpack.c.l.b16 %v261
  %v333 = vunpack.c.l.b16 %v262
  %v334 = vunpack.c.l.b16 %v263
  %v335 = vunpack.c.l.b16 %v264
  %v336 = vunpack.c.l.b16 %v265
  %v337 = vunpack.c.l.b16 %v266
  %v338 = vunpack.c.l.b16 %v267
  %v339 = vunpack.c.l.b16 %v268
  %v340 = vunpack.c.l.b16 %v269
  %v341 = vunpack.c.l.b16 %v270
  %v342 = vunpack.c.l.b16 %v271
  %v343 = vunpack.c.l.b16 %v272
  %v344 = vunpack.c.l.b16 %v273
  %v345 = vunpack.c.l.b16 %v274
  %v346 = vunpack.c.l.b16 %v275
  %v347 = vunpack.c.l.b16 %v276
  %v348 = vunpack.c.l.b16 %v277
  %v349 = vunpack.c.l.b16 %v278
  %v350 = vunpack.c.l.b16 %v279
  %v351 = vunpack.c.l.b16 %v280
  %v352 = vunpack.c.l.b16 %v281
  %v353 = vunpack.c.l.b16 %v282
  %v354 = vunpack.c.l.b16 %v283
  %v355 = vunpack.c.l.b16 %v284
  %v356 = vunpack.c.l.b16 %v285
  %v357 = vunpack.c.l.b16 %v286
  %v358 = vunpack.c.l.b16 %v287
  %v359 = vunpack.c.l.b16 %v288
  %v360 = vpack.c.b16 %v329, %v328
  %v361 = vpack.c.b16 %v331, %v330
  %v362 = vpack.c.b16 %v333, %v332
  %v363 = vpack.c.b16 %v335, %v334
  %v364 = vpack.c.b16 %v337, %v336
  %v365 = vpack.c.b16 %v339, %v338
  %v366 = vpack.c.b16 %v341, %v340
  %v367 = vpack.c.b16 %v343, %v342
  %v368 = vpack.c.b16 %v345, %v344
  %v369 = vpack.c.b16 %v347, %v346
  %v370 = vpack.c.b16 %v349, %v348
  %v371 = vpack.c.b16 %v351, %v350
  %v372 = vpack.c.b16 %v353, %v352
  %v373 = vpack.c.b16 %v355, %v354
  %v374 = vpack.c.b16 %v357, %v356
  %v375 = vpack.c.b16 %v359, %v358
  %392 = vmatprep.subr.bf16.mxu0 0
  %393 = vmatpush1.bf16.msra.mxu0 %v367
  %394 = vmatprep.subr.bf16.mxu0 0
  %395 = vmatpush1.bf16.msra.mxu0 %v366
  %396 = vmatprep.subr.bf16.mxu0 0
  %397 = vmatpush1.bf16.msra.mxu0 %v365
  %398 = vmatprep.subr.bf16.mxu0 0
  %399 = vmatpush1.bf16.msra.mxu0 %v364
  %400 = vmatprep.subr.bf16.mxu0 0
  %401 = vmatpush1.bf16.msra.mxu0 %v363
  %402 = vmatprep.subr.bf16.mxu0 0
  %403 = vmatpush1.bf16.msra.mxu0 %v362
  %404 = vmatprep.subr.bf16.mxu0 0
  %405 = vmatpush1.bf16.msra.mxu0 %v361
  %406 = vmatprep.subr.bf16.mxu0 0
  %407 = vmatpush1.bf16.msra.mxu0 %v360
  %408 = vmatprep.subr.bf16.mxu0 0
  %409 = vmatpush2.bf16.msra.mxu0 %v375
  %410 = vmatprep.subr.bf16.mxu0 0
  %411 = vmatpush2.bf16.msra.mxu0 %v374
  %412 = vmatprep.subr.bf16.mxu0 0
  %413 = vmatpush2.bf16.msra.mxu0 %v373
  %414 = vmatprep.subr.bf16.mxu0 0
  %415 = vmatpush2.bf16.msra.mxu0 %v372
  %416 = vmatprep.subr.bf16.mxu0 0
  %417 = vmatpush2.bf16.msra.mxu0 %v371
  %418 = vmatprep.subr.bf16.mxu0 0
  %419 = vmatpush2.bf16.msra.mxu0 %v370
  %420 = vmatprep.subr.bf16.mxu0 0
  %421 = vmatpush2.bf16.msra.mxu0 %v369
  %422 = vmatprep.subr.bf16.mxu0 0
  %423 = vmatpush2.bf16.msra.mxu0 %v368
  %424 = vmatprep.mubr.bf16.mxu0 %v256
  %425 = vmatmul.mubr.bf16.gmra.mxu0 %v255
  %v426 = vpop.f32.mrf.mxu0
  %v427 = vadd.f32 %v294, %v426
  %v428 = vpop.f32.mrf.mxu0
  %v429 = vpop.f32.mrf.mxu0
  %v430 = vadd.f32 %v294, %v429
  %v431 = vpop.f32.mrf.mxu0
  %432 = vdwg.mxu0
  %v433 = vadd.f32 %v97, %v427
  %v434 = vadd.f32 %v98, %v430
  %v435 = vld [vmem:[%s9] sm:$0x1]
  %v436 = vld [vmem:[%s10] sm:$0x1]
  %437 = vadd.xlane.f32.xlu0 %v433
  %v438 = vpop.xlane.xlu0 %437
  %439 = vadd.xlane.f32.xlu0 %v434
  %v440 = vpop.xlane.xlu0 %439
  %v441 = vmul.f32 %v438, %v64
  %v442 = vmul.f32 %v440, %v64
  %v443 = vsub.f32 %v433, %v441
  %v444 = vsub.f32 %v434, %v442
  %v445 = vmul.f32 %v443, %v443
  %v446 = vmul.f32 %v444, %v444
  %447 = vadd.xlane.f32.xlu0 %v445
  %v448 = vpop.xlane.xlu0 %447
  %449 = vadd.xlane.f32.xlu0 %v446
  %v450 = vpop.xlane.xlu0 %449
  %v451 = vmul.f32 %v448, %v64
  %v452 = vmul.f32 %v450, %v64
  %v453 = vadd.f32 %v451, 1e-05
  %v454 = vadd.f32 %v452, 1e-05
  %v455 = vrsqrt.pop %v453
  %v456 = vrsqrt.pop %v454
  %v457 = vmul.f32 %v443, %v455
  %v458 = vmul.f32 %v444, %v456
  %v460 = vlaneseq
  %v461 = vshrl.u32 %v460, 7
  %v462 = vsub.s32 0, %v461
  %v463 = vrot.slane %v435, %v462
  %v465 = vmul.f32 %v457, %v463
  %v466 = vmul.f32 %v458, %v463
  %v468 = vlaneseq
  %v469 = vshrl.u32 %v468, 7
  %v470 = vsub.s32 0, %v469
  %v471 = vrot.slane %v436, %v470
  %v473 = vadd.f32 %v465, %v471
  %v474 = vadd.f32 %v466, %v471
  %v475 = vpack.c.bf16 %v474, %v473
  %v477 = vunpack.c.l.b16 %v475
  %v478 = vunpack.c.h.b16 %v475
  %v479 = vpack.c.b16 %v477, %v477
  %v480 = vpack.c.b16 %v478, %v478
  %483 = vst [vmem:[%s11] sm:$0xf] %v479
  %484 = vst [vmem:[%s11 + $0x4] sm:$0xf] %v480
  // Predicated region
  $region46: #{forward.10} parent=0 // pred_check
    _
  $region47: #{forward.10} parent=0 // pred_check_branch
    %486 = sbr.rel (0) target = $region49
  $region48: #{forward.10} parent=0 // pred_region
    _
  $region49: #{forward.10} parent=0 // pred_fallthru
    _
  // Predicated region
  $region50: #{forward.10} parent=0 // pred_check
    _
  $region51: #{forward.10} parent=0 // pred_check_branch
    %488 = sbr.rel (0) target = $region53
  $region52: #{forward.10} parent=0 // pred_region
    _
  $region53: #{forward.10} parent=0 // pred_fallthru
    _

</llo_original>
